<compile_context>
chip_gen: v6e
topology: v6e:2x2x1
jax: 0.10.0
libtpu: 0.0.40
codegen_flags: <defaults>
</compile_context>

<pallas_src>
import functools
import math
from collections import namedtuple

import jax
import jax.numpy as jnp
from jax.experimental import pallas as pl
from jax.experimental.pallas import tpu as pltpu

INITRANGE = 0.04

Genotype = namedtuple("Genotype", ["recurrent", "concat"])

# Standard DARTS recurrent genotype (8 intermediate nodes).
DARTS_GENOTYPE = Genotype(
    recurrent=[
        ("sigmoid", 0),
        ("relu", 1),
        ("relu", 1),
        ("identity", 1),
        ("tanh", 2),
        ("sigmoid", 5),
        ("tanh", 3),
        ("relu", 5),
    ],
    concat=list(range(1, 9)),
)

_ACTS = {
    "tanh": jnp.tanh,
    "relu": jax.nn.relu,
    "sigmoid": jax.nn.sigmoid,
    "identity": lambda v: v,
}


def _group_schedule(genotype):
    """Group DAG edges by predecessor state.

    Processing groups in ascending-predecessor order is a valid topological
    schedule (entry i always has pred <= i, so state p is produced by a group
    with a strictly smaller key), and it lets every same-predecessor node share
    one wide MXU matmul.
    """
    groups = {}
    for i, (name, pred) in enumerate(genotype.recurrent):
        assert 0 <= pred <= i, "invalid genotype: pred must reference an earlier state"
        groups.setdefault(pred, []).append((i, name))
    return tuple((pred, tuple(groups[pred])) for pred in sorted(groups))


def _pick_time_chunk(T, B, max_chunk):
    """Largest divisor of T that is <= max_chunk and keeps the (chunk*B, .)
    block sublane-aligned; falls back to full residency (chunk == T, where the
    block equals the full array and is exempt from the (8,128) rule)."""
    for c in range(min(T, max_chunk), 0, -1):
        if T % c == 0 and (c * B) % 8 == 0:
            return c
    return T


def _darts_kernel(*refs, nhid, B, chunk, schedule, concat, matmul_dtype):
    n_groups = len(schedule)
    x_ref, h0_ref, w0x_ref, w0h_ref = refs[:4]
    w_refs = refs[4:4 + n_groups]
    out_ref = refs[4 + n_groups]
    h_scratch = refs[5 + n_groups]

    # Seed the carried hidden state on the first time-chunk only.
    @pl.when(pl.program_id(0) == 0)
    def _():
        h_scratch[...] = h0_ref[...].astype(jnp.float32)

    # Weights have constant block indices -> DMA'd once; hoist the VMEM loads
    # out of the unrolled time loop.
    w0h = w0h_ref[...]                        # (nhid, 2*nhid)        matmul_dtype
    w_packed = [r[...] for r in w_refs]       # (nhid, 2*nhid*group)  matmul_dtype

    # Non-recurrent input projection for the WHOLE chunk: one MXU matmul with
    # M = chunk*B instead of `chunk` tiny M=B matmuls on the serial chain.
    xw = jnp.dot(x_ref[...], w0x_ref[...],
                 preferred_element_type=jnp.float32)   # (chunk*B, 2*nhid) f32

    inv_n = 1.0 / float(len(concat))
    concat_set = frozenset(concat)
    pred_set = frozenset(p for p, _ in schedule)

    h = h_scratch[...]                        # (B, nhid) f32 carry
    for t in range(chunk):                    # fully static unroll
        row = t * B
        # cat([x, h], -1) @ W0 == x @ W0[:ninp] + h @ W0[ninp:]   (exact split)
        ch0 = xw[row:row + B, :] + jnp.dot(
            h.astype(matmul_dtype), w0h, preferred_element_type=jnp.float32)
        c0 = jax.nn.sigmoid(ch0[:, :nhid])
        h0 = jnp.tanh(ch0[:, nhid:])
        s0 = h + c0 * (h0 - h)

        states = {0: s0}                                      # f32, for updates
        states_mm = {0: s0.astype(matmul_dtype)} if 0 in pred_set else {}
        out_acc = s0 if 0 in concat_set else None

        for g, (pred, nodes) in enumerate(schedule):
            s_prev = states[pred]
            # One wide matmul for all DAG nodes sharing this predecessor.
            ch = jnp.dot(states_mm[pred], w_packed[g],
                         preferred_element_type=jnp.float32)
            for k, (i, name) in enumerate(nodes):
                base = 2 * nhid * k
                c = jax.nn.sigmoid(ch[:, base:base + nhid])
                hh = _ACTS[name](ch[:, base + nhid:base + 2 * nhid])
                s = s_prev + c * (hh - s_prev)
                sid = i + 1
                states[sid] = s
                if sid in pred_set:            # cast once, when produced
                    states_mm[sid] = s.astype(matmul_dtype)
                if sid in concat_set:          # incremental mean: states die early
                    out_acc = s if out_acc is None else out_acc + s

        h = out_acc * inv_n
        out_ref[row:row + B, :] = h.astype(out_ref.dtype)   # lane-dense row block

    h_scratch[...] = h                        # carry into the next time chunk


def darts_cell_forward(inputs, hidden, w0, ws, *, genotype=DARTS_GENOTYPE,
                       matmul_dtype=jnp.bfloat16, time_chunk=16):
    """Eval-mode DARTSCell.forward.

    inputs: (T, B, ninp) time-major; hidden: (1, B, nhid);
    w0: (ninp+nhid, 2*nhid); ws: (steps, nhid, 2*nhid).
    Returns (hiddens (T, B, nhid), last hidden (1, B, nhid)).

    matmul_dtype=bfloat16 feeds the MXU natively (production path on all TPU
    generations, halves weight/x VMEM + DMA); pass jnp.float32 for exact parity
    with the PyTorch module (small shapes / v5e-v6e only at production nhid).
    The gated elementwise update always runs in float32.
    """
    T, B, ninp = inputs.shape
    nhid = hidden.shape[-1]
    steps = ws.shape[0]
    assert steps == len(genotype.recurrent)
    assert w0.shape == (ninp + nhid, 2 * nhid)

    out_dtype = inputs.dtype
    schedule = _group_schedule(genotype)
    chunk = _pick_time_chunk(T, B, time_chunk)
    n_chunks = T // chunk

    # Split W0 (exact) and pack same-predecessor weights along the output dim
    # so each predecessor group becomes one wide, MXU-friendly matmul.
    w0x = w0[:ninp, :].astype(matmul_dtype)
    w0h = w0[ninp:, :].astype(matmul_dtype)
    packed_ws = [
        jnp.concatenate([ws[i] for i, _ in nodes], axis=1).astype(matmul_dtype)
        for _, nodes in schedule
    ]

    # Cast x once in the wrapper (halves x DMA/VMEM for bf16) and flatten time
    # into the row dim so the in-kernel projection is one big matmul per chunk.
    x2d = inputs.reshape(T * B, ninp).astype(matmul_dtype)
    h0 = hidden[0]

    kernel = functools.partial(
        _darts_kernel, nhid=nhid, B=B, chunk=chunk, schedule=schedule,
        concat=tuple(genotype.concat), matmul_dtype=matmul_dtype)

    in_specs = [
        pl.BlockSpec((chunk * B, ninp), lambda i: (i, 0)),    # x, streamed per chunk
        pl.BlockSpec((B, nhid), lambda i: (0, 0)),            # initial hidden
        pl.BlockSpec((ninp, 2 * nhid), lambda i: (0, 0)),     # W0[:ninp]
        pl.BlockSpec((nhid, 2 * nhid), lambda i: (0, 0)),     # W0[ninp:]
    ] + [
        pl.BlockSpec(w.shape, lambda i: (0, 0)) for w in packed_ws
    ]

    # Explicit VMEM budget: double-buffered x/out chunks, (effectively single-
    # DMA'd but double-allocated) weights, xw slab + hidden scratch, plus slack.
    def _nbytes(shape, dtype):
        return math.prod(shape) * jnp.dtype(dtype).itemsize

    weight_bytes = (_nbytes(w0x.shape, matmul_dtype)
                    + _nbytes(w0h.shape, matmul_dtype)
                    + sum(_nbytes(w.shape, matmul_dtype) for w in packed_ws))
    io_bytes = 2 * (_nbytes((chunk * B, ninp), matmul_dtype)
                    + _nbytes((chunk * B, nhid), out_dtype))
    live_bytes = (_nbytes((chunk * B, 2 * nhid), jnp.float32)
                  + _nbytes((B, nhid), jnp.float32))
    vmem_limit = 2 * (2 * weight_bytes + io_bytes + live_bytes) + (8 << 20)
    vmem_limit = int(min(max(vmem_limit, 16 << 20), 64 << 20))

    out2d = pl.pallas_call(
        kernel,
        out_shape=jax.ShapeDtypeStruct((T * B, nhid), out_dtype),
        grid_spec=pltpu.PrefetchScalarGridSpec(
            num_scalar_prefetch=0,
            grid=(n_chunks,),                  # sequential time-chunk axis
            in_specs=in_specs,
            out_specs=pl.BlockSpec((chunk * B, nhid), lambda i: (i, 0)),
            scratch_shapes=[pltpu.VMEM((B, nhid), jnp.float32)],   # carried hidden
        ),
        compiler_params=pltpu.CompilerParams(
            dimension_semantics=("arbitrary",),
            vmem_limit_bytes=vmem_limit),
    )(x2d, h0, w0x, w0h, *packed_ws)

    hiddens = out2d.reshape(T, B, nhid)
    return hiddens, hiddens[-1][None]


def darts_cell_reference(inputs, hidden, w0, ws, *, genotype=DARTS_GENOTYPE):
    """Pure-JAX reference (eval-mode DARTSCell.forward), f32 throughout."""
    nhid = hidden.shape[-1]

    def cell(h_prev, x):
        xh = jnp.concatenate([x, h_prev], axis=-1)
        ch0 = xh @ w0
        c0 = jax.nn.sigmoid(ch0[:, :nhid])
        h0 = jnp.tanh(ch0[:, nhid:])
        s0 = h_prev + c0 * (h0 - h_prev)
        states = [s0]
        for i, (name, pred) in enumerate(genotype.recurrent):
            s_prev = states[pred]
            ch = s_prev @ ws[i]
            c = jax.nn.sigmoid(ch[:, :nhid])
            h = _ACTS[name](ch[:, nhid:])
            states.append(s_prev + c * (h - s_prev))
        out = jnp.mean(jnp.stack([states[j] for j in genotype.concat], -1), -1)
        return out, out

    _, hs = jax.lax.scan(cell, hidden[0], inputs)
    return hs, hs[-1][None]


if __name__ == "__main__":
    T, B, NINP, NHID = 8, 8, 128, 128
    steps = len(DARTS_GENOTYPE.recurrent)

    key = jax.random.PRNGKey(0)
    k_x, k_h, k_w0, k_ws = jax.random.split(key, 4)

    inputs = jax.random.normal(k_x, (T, B, NINP), dtype=jnp.float32)
    hidden = jax.random.normal(k_h, (1, B, NHID), dtype=jnp.float32)
    w0 = jax.random.uniform(k_w0, (NINP + NHID, 2 * NHID),
                            minval=-INITRANGE, maxval=INITRANGE, dtype=jnp.float32)
    ws = jax.random.uniform(k_ws, (steps, NHID, 2 * NHID),
                            minval=-INITRANGE, maxval=INITRANGE, dtype=jnp.float32)

    ref_hiddens, ref_last = darts_cell_reference(inputs, hidden, w0, ws)

    # Exact-parity path (f32 MXU operands); time_chunk=4 -> grid of 2 chunks,
    # exercising the carried-hidden scratch across grid iterations.
    hs_f32, last_f32 = darts_cell_forward(inputs, hidden, w0, ws,
                                          matmul_dtype=jnp.float32, time_chunk=4)
    jax.block_until_ready((hs_f32, last_f32))
    assert hs_f32.shape == (T, B, NHID) and last_f32.shape == (1, B, NHID)
    assert jnp.allclose(hs_f32, ref_hiddens, atol=1e-5, rtol=1e-5)
    assert jnp.allclose(last_f32, ref_last, atol=1e-5, rtol=1e-5)

    # Fast path (bf16 MXU operands, f32 accumulate + f32 gated update).
    hs_bf16, last_bf16 = darts_cell_forward(inputs, hidden, w0, ws,
                                            matmul_dtype=jnp.bfloat16, time_chunk=4)
    jax.block_until_ready((hs_bf16, last_bf16))
    assert hs_bf16.shape == (T, B, NHID) and last_bf16.shape == (1, B, NHID)
    assert float(jnp.max(jnp.abs(hs_bf16 - ref_hiddens))) < 0.25

    print("KERNEL_OK")
</pallas_src>

<mosaic_0001>
module attributes {stable_mosaic.version = 11 : i64} {
  func.func @_darts_kernel(%arg0: i32, %arg1: memref<32x128xf32, #tpu.memory_space<vmem>>, %arg2: memref<8x128xf32, #tpu.memory_space<vmem>>, %arg3: memref<128x256xf32, #tpu.memory_space<vmem>>, %arg4: memref<128x256xf32, #tpu.memory_space<vmem>>, %arg5: memref<128x256xf32, #tpu.memory_space<vmem>>, %arg6: memref<128x768xf32, #tpu.memory_space<vmem>>, %arg7: memref<128x256xf32, #tpu.memory_space<vmem>>, %arg8: memref<128x256xf32, #tpu.memory_space<vmem>>, %arg9: memref<128x512xf32, #tpu.memory_space<vmem>>, %arg10: memref<32x128xf32, #tpu.memory_space<vmem>>, %arg11: memref<8x128xf32, #tpu.memory_space<vmem>>) attributes {dimension_semantics = [#tpu.dimension_semantics<arbitrary>], iteration_bounds = array<i64: 2>, scalar_prefetch = 0 : i64, scratch_operands = 1 : i64, tpu.core_type = #tpu.core_type<tc>, window_params = [{transform_indices = @transform_0, window_bounds = array<i64: 32, 128>}, {pipeline_mode = #tpu.pipeline_mode<synchronous>, transform_indices = @transform_1, window_bounds = array<i64: 8, 128>}, {pipeline_mode = #tpu.pipeline_mode<synchronous>, transform_indices = @transform_2, window_bounds = array<i64: 128, 256>}, {pipeline_mode = #tpu.pipeline_mode<synchronous>, transform_indices = @transform_3, window_bounds = array<i64: 128, 256>}, {pipeline_mode = #tpu.pipeline_mode<synchronous>, transform_indices = @transform_4, window_bounds = array<i64: 128, 256>}, {pipeline_mode = #tpu.pipeline_mode<synchronous>, transform_indices = @transform_5, window_bounds = array<i64: 128, 768>}, {pipeline_mode = #tpu.pipeline_mode<synchronous>, transform_indices = @transform_6, window_bounds = array<i64: 128, 256>}, {pipeline_mode = #tpu.pipeline_mode<synchronous>, transform_indices = @transform_7, window_bounds = array<i64: 128, 256>}, {pipeline_mode = #tpu.pipeline_mode<synchronous>, transform_indices = @transform_8, window_bounds = array<i64: 128, 512>}, {transform_indices = @transform_9, window_bounds = array<i64: 32, 128>}]} {
    %c0_i32 = arith.constant 0 : i32
    %0 = arith.cmpi eq, %arg0, %c0_i32 : i32
    %1 = arith.extui %0 : i1 to i32
    %c0_i32_0 = arith.constant 0 : i32
    %2 = arith.cmpi ne, %1, %c0_i32_0 : i32
    scf.if %2 {
      %c0_109 = arith.constant 0 : index
      %c0_110 = arith.constant 0 : index
      %522 = vector.load %arg2[%c0_109, %c0_110] : memref<8x128xf32, #tpu.memory_space<vmem>>, vector<8x128xf32>
      %c0_111 = arith.constant 0 : index
      %c0_112 = arith.constant 0 : index
      %523 = vector.load %arg11[%c0_111, %c0_112] : memref<8x128xf32, #tpu.memory_space<vmem>>, vector<8x128xf32>
      tpu.vector_store %arg11[%c0_111, %c0_112], %522 {strides = array<i32>} : memref<8x128xf32, #tpu.memory_space<vmem>>, vector<8x128xf32>,
    } else {
    }
    %c0 = arith.constant 0 : index
    %c0_1 = arith.constant 0 : index
    %3 = vector.load %arg4[%c0, %c0_1] : memref<128x256xf32, #tpu.memory_space<vmem>>, vector<128x256xf32>
    %c0_2 = arith.constant 0 : index
    %c0_3 = arith.constant 0 : index
    %4 = vector.load %arg5[%c0_2, %c0_3] : memref<128x256xf32, #tpu.memory_space<vmem>>, vector<128x256xf32>
    %c0_4 = arith.constant 0 : index
    %c0_5 = arith.constant 0 : index
    %5 = vector.load %arg6[%c0_4, %c0_5] : memref<128x768xf32, #tpu.memory_space<vmem>>, vector<128x768xf32>
    %c0_6 = arith.constant 0 : index
    %c0_7 = arith.constant 0 : index
    %6 = vector.load %arg7[%c0_6, %c0_7] : memref<128x256xf32, #tpu.memory_space<vmem>>, vector<128x256xf32>
    %c0_8 = arith.constant 0 : index
    %c0_9 = arith.constant 0 : index
    %7 = vector.load %arg8[%c0_8, %c0_9] : memref<128x256xf32, #tpu.memory_space<vmem>>, vector<128x256xf32>
    %c0_10 = arith.constant 0 : index
    %c0_11 = arith.constant 0 : index
    %8 = vector.load %arg9[%c0_10, %c0_11] : memref<128x512xf32, #tpu.memory_space<vmem>>, vector<128x512xf32>
    %c0_12 = arith.constant 0 : index
    %c0_13 = arith.constant 0 : index
    %9 = vector.load %arg1[%c0_12, %c0_13] : memref<32x128xf32, #tpu.memory_space<vmem>>, vector<32x128xf32>
    %c0_14 = arith.constant 0 : index
    %c0_15 = arith.constant 0 : index
    %10 = vector.load %arg3[%c0_14, %c0_15] : memref<128x256xf32, #tpu.memory_space<vmem>>, vector<128x256xf32>
    %cst = arith.constant dense<0.000000e+00> : vector<32x256xf32>
    %11 = tpu.matmul %9, %10, %cst {dimension_numbers = #tpu.dot_dimension_numbers<[1], [0], [0], [1], [0, 0, 1, 1], [], []>} : vector<32x128xf32>, vector<128x256xf32>, vector<32x256xf32> -> vector<32x256xf32>
    %c0_16 = arith.constant 0 : index
    %c0_17 = arith.constant 0 : index
    %12 = vector.load %arg11[%c0_16, %c0_17] : memref<8x128xf32, #tpu.memory_space<vmem>>, vector<8x128xf32>
    %13 = vector.extract_strided_slice %11 {offsets = [0, 0], sizes = [8, 256], strides = [1, 1]} : vector<32x256xf32> to vector<8x256xf32>
    %cst_18 = arith.constant dense<0.000000e+00> : vector<8x256xf32>
    %14 = tpu.matmul %12, %3, %cst_18 {dimension_numbers = #tpu.dot_dimension_numbers<[1], [0], [0], [1], [0, 0, 1, 1], [], []>} : vector<8x128xf32>, vector<128x256xf32>, vector<8x256xf32> -> vector<8x256xf32>
    %15 = arith.addf %13, %14 : vector<8x256xf32>
    %16 = vector.extract_strided_slice %15 {offsets = [0, 0], sizes = [8, 128], strides = [1, 1]} : vector<8x256xf32> to vector<8x128xf32>
    %17 = arith.negf %16 : vector<8x128xf32>
    %18 = math.exp %17 : vector<8x128xf32>
    %cst_19 = arith.constant 1.000000e+00 : f32
    %19 = vector.broadcast %cst_19 : f32 to vector<8x128xf32>
    %20 = arith.addf %19, %18 : vector<8x128xf32>
    %21 = arith.divf %19, %20 : vector<8x128xf32>
    %22 = vector.extract_strided_slice %15 {offsets = [0, 128], sizes = [8, 128], strides = [1, 1]} : vector<8x256xf32> to vector<8x128xf32>
    %23 = math.tanh %22 : vector<8x128xf32>
    %24 = arith.subf %23, %12 : vector<8x128xf32>
    %25 = arith.mulf %21, %24 : vector<8x128xf32>
    %26 = arith.addf %12, %25 : vector<8x128xf32>
    %cst_20 = arith.constant dense<0.000000e+00> : vector<8x256xf32>
    %27 = tpu.matmul %26, %4, %cst_20 {dimension_numbers = #tpu.dot_dimension_numbers<[1], [0], [0], [1], [0, 0, 1, 1], [], []>} : vector<8x128xf32>, vector<128x256xf32>, vector<8x256xf32> -> vector<8x256xf32>
    %28 = vector.extract_strided_slice %27 {offsets = [0, 0], sizes = [8, 128], strides = [1, 1]} : vector<8x256xf32> to vector<8x128xf32>
    %29 = arith.negf %28 : vector<8x128xf32>
    %30 = math.exp %29 : vector<8x128xf32>
    %cst_21 = arith.constant 1.000000e+00 : f32
    %31 = vector.broadcast %cst_21 : f32 to vector<8x128xf32>
    %32 = arith.addf %31, %30 : vector<8x128xf32>
    %33 = arith.divf %31, %32 : vector<8x128xf32>
    %34 = vector.extract_strided_slice %27 {offsets = [0, 128], sizes = [8, 128], strides = [1, 1]} : vector<8x256xf32> to vector<8x128xf32>
    %35 = arith.negf %34 : vector<8x128xf32>
    %36 = math.exp %35 : vector<8x128xf32>
    %cst_22 = arith.constant 1.000000e+00 : f32
    %37 = vector.broadcast %cst_22 : f32 to vector<8x128xf32>
    %38 = arith.addf %37, %36 : vector<8x128xf32>
    %39 = arith.divf %37, %38 : vector<8x128xf32>
    %40 = arith.subf %39, %26 : vector<8x128xf32>
    %41 = arith.mulf %33, %40 : vector<8x128xf32>
    %42 = arith.addf %26, %41 : vector<8x128xf32>
    %cst_23 = arith.constant dense<0.000000e+00> : vector<8x768xf32>
    %43 = tpu.matmul %42, %5, %cst_23 {dimension_numbers = #tpu.dot_dimension_numbers<[1], [0], [0], [1], [0, 0, 1, 1], [], []>} : vector<8x128xf32>, vector<128x768xf32>, vector<8x768xf32> -> vector<8x768xf32>
    %44 = vector.extract_strided_slice %43 {offsets = [0, 0], sizes = [8, 128], strides = [1, 1]} : vector<8x768xf32> to vector<8x128xf32>
    %45 = arith.negf %44 : vector<8x128xf32>
    %46 = math.exp %45 : vector<8x128xf32>
    %cst_24 = arith.constant 1.000000e+00 : f32
    %47 = vector.broadcast %cst_24 : f32 to vector<8x128xf32>
    %48 = arith.addf %47, %46 : vector<8x128xf32>
    %49 = arith.divf %47, %48 : vector<8x128xf32>
    %50 = vector.extract_strided_slice %43 {offsets = [0, 128], sizes = [8, 128], strides = [1, 1]} : vector<8x768xf32> to vector<8x128xf32>
    %cst_25 = arith.constant 0.000000e+00 : f32
    %51 = vector.broadcast %cst_25 : f32 to vector<8x128xf32>
    %52 = arith.maximumf %50, %51 : vector<8x128xf32>
    %53 = arith.subf %52, %42 : vector<8x128xf32>
    %54 = arith.mulf %49, %53 : vector<8x128xf32>
    %55 = arith.addf %42, %54 : vector<8x128xf32>
    %56 = arith.addf %42, %55 : vector<8x128xf32>
    %57 = vector.extract_strided_slice %43 {offsets = [0, 256], sizes = [8, 128], strides = [1, 1]} : vector<8x768xf32> to vector<8x128xf32>
    %58 = arith.negf %57 : vector<8x128xf32>
    %59 = math.exp %58 : vector<8x128xf32>
    %cst_26 = arith.constant 1.000000e+00 : f32
    %60 = vector.broadcast %cst_26 : f32 to vector<8x128xf32>
    %61 = arith.addf %60, %59 : vector<8x128xf32>
    %62 = arith.divf %60, %61 : vector<8x128xf32>
    %63 = vector.extract_strided_slice %43 {offsets = [0, 384], sizes = [8, 128], strides = [1, 1]} : vector<8x768xf32> to vector<8x128xf32>
    %cst_27 = arith.constant 0.000000e+00 : f32
    %64 = vector.broadcast %cst_27 : f32 to vector<8x128xf32>
    %65 = arith.maximumf %63, %64 : vector<8x128xf32>
    %66 = arith.subf %65, %42 : vector<8x128xf32>
    %67 = arith.mulf %62, %66 : vector<8x128xf32>
    %68 = arith.addf %42, %67 : vector<8x128xf32>
    %69 = arith.addf %56, %68 : vector<8x128xf32>
    %70 = vector.extract_strided_slice %43 {offsets = [0, 512], sizes = [8, 128], strides = [1, 1]} : vector<8x768xf32> to vector<8x128xf32>
    %71 = arith.negf %70 : vector<8x128xf32>
    %72 = math.exp %71 : vector<8x128xf32>
    %cst_28 = arith.constant 1.000000e+00 : f32
    %73 = vector.broadcast %cst_28 : f32 to vector<8x128xf32>
    %74 = arith.addf %73, %72 : vector<8x128xf32>
    %75 = arith.divf %73, %74 : vector<8x128xf32>
    %76 = vector.extract_strided_slice %43 {offsets = [0, 640], sizes = [8, 128], strides = [1, 1]} : vector<8x768xf32> to vector<8x128xf32>
    %77 = arith.subf %76, %42 : vector<8x128xf32>
    %78 = arith.mulf %75, %77 : vector<8x128xf32>
    %79 = arith.addf %42, %78 : vector<8x128xf32>
    %80 = arith.addf %69, %79 : vector<8x128xf32>
    %cst_29 = arith.constant dense<0.000000e+00> : vector<8x256xf32>
    %81 = tpu.matmul %55, %6, %cst_29 {dimension_numbers = #tpu.dot_dimension_numbers<[1], [0], [0], [1], [0, 0, 1, 1], [], []>} : vector<8x128xf32>, vector<128x256xf32>, vector<8x256xf32> -> vector<8x256xf32>
    %82 = vector.extract_strided_slice %81 {offsets = [0, 0], sizes = [8, 128], strides = [1, 1]} : vector<8x256xf32> to vector<8x128xf32>
    %83 = arith.negf %82 : vector<8x128xf32>
    %84 = math.exp %83 : vector<8x128xf32>
    %cst_30 = arith.constant 1.000000e+00 : f32
    %85 = vector.broadcast %cst_30 : f32 to vector<8x128xf32>
    %86 = arith.addf %85, %84 : vector<8x128xf32>
    %87 = arith.divf %85, %86 : vector<8x128xf32>
    %88 = vector.extract_strided_slice %81 {offsets = [0, 128], sizes = [8, 128], strides = [1, 1]} : vector<8x256xf32> to vector<8x128xf32>
    %89 = math.tanh %88 : vector<8x128xf32>
    %90 = arith.subf %89, %55 : vector<8x128xf32>
    %91 = arith.mulf %87, %90 : vector<8x128xf32>
    %92 = arith.addf %55, %91 : vector<8x128xf32>
    %93 = arith.addf %80, %92 : vector<8x128xf32>
    %cst_31 = arith.constant dense<0.000000e+00> : vector<8x256xf32>
    %94 = tpu.matmul %68, %7, %cst_31 {dimension_numbers = #tpu.dot_dimension_numbers<[1], [0], [0], [1], [0, 0, 1, 1], [], []>} : vector<8x128xf32>, vector<128x256xf32>, vector<8x256xf32> -> vector<8x256xf32>
    %95 = vector.extract_strided_slice %94 {offsets = [0, 0], sizes = [8, 128], strides = [1, 1]} : vector<8x256xf32> to vector<8x128xf32>
    %96 = arith.negf %95 : vector<8x128xf32>
    %97 = math.exp %96 : vector<8x128xf32>
    %cst_32 = arith.constant 1.000000e+00 : f32
    %98 = vector.broadcast %cst_32 : f32 to vector<8x128xf32>
    %99 = arith.addf %98, %97 : vector<8x128xf32>
    %100 = arith.divf %98, %99 : vector<8x128xf32>
    %101 = vector.extract_strided_slice %94 {offsets = [0, 128], sizes = [8, 128], strides = [1, 1]} : vector<8x256xf32> to vector<8x128xf32>
    %102 = math.tanh %101 : vector<8x128xf32>
    %103 = arith.subf %102, %68 : vector<8x128xf32>
    %104 = arith.mulf %100, %103 : vector<8x128xf32>
    %105 = arith.addf %68, %104 : vector<8x128xf32>
    %106 = arith.addf %93, %105 : vector<8x128xf32>
    %cst_33 = arith.constant dense<0.000000e+00> : vector<8x512xf32>
    %107 = tpu.matmul %92, %8, %cst_33 {dimension_numbers = #tpu.dot_dimension_numbers<[1], [0], [0], [1], [0, 0, 1, 1], [], []>} : vector<8x128xf32>, vector<128x512xf32>, vector<8x512xf32> -> vector<8x512xf32>
    %108 = vector.extract_strided_slice %107 {offsets = [0, 0], sizes = [8, 128], strides = [1, 1]} : vector<8x512xf32> to vector<8x128xf32>
    %109 = arith.negf %108 : vector<8x128xf32>
    %110 = math.exp %109 : vector<8x128xf32>
    %cst_34 = arith.constant 1.000000e+00 : f32
    %111 = vector.broadcast %cst_34 : f32 to vector<8x128xf32>
    %112 = arith.addf %111, %110 : vector<8x128xf32>
    %113 = arith.divf %111, %112 : vector<8x128xf32>
    %114 = vector.extract_strided_slice %107 {offsets = [0, 128], sizes = [8, 128], strides = [1, 1]} : vector<8x512xf32> to vector<8x128xf32>
    %115 = arith.negf %114 : vector<8x128xf32>
    %116 = math.exp %115 : vector<8x128xf32>
    %cst_35 = arith.constant 1.000000e+00 : f32
    %117 = vector.broadcast %cst_35 : f32 to vector<8x128xf32>
    %118 = arith.addf %117, %116 : vector<8x128xf32>
    %119 = arith.divf %117, %118 : vector<8x128xf32>
    %120 = arith.subf %119, %92 : vector<8x128xf32>
    %121 = arith.mulf %113, %120 : vector<8x128xf32>
    %122 = arith.addf %92, %121 : vector<8x128xf32>
    %123 = arith.addf %106, %122 : vector<8x128xf32>
    %124 = vector.extract_strided_slice %107 {offsets = [0, 256], sizes = [8, 128], strides = [1, 1]} : vector<8x512xf32> to vector<8x128xf32>
    %125 = arith.negf %124 : vector<8x128xf32>
    %126 = math.exp %125 : vector<8x128xf32>
    %cst_36 = arith.constant 1.000000e+00 : f32
    %127 = vector.broadcast %cst_36 : f32 to vector<8x128xf32>
    %128 = arith.addf %127, %126 : vector<8x128xf32>
    %129 = arith.divf %127, %128 : vector<8x128xf32>
    %130 = vector.extract_strided_slice %107 {offsets = [0, 384], sizes = [8, 128], strides = [1, 1]} : vector<8x512xf32> to vector<8x128xf32>
    %cst_37 = arith.constant 0.000000e+00 : f32
    %131 = vector.broadcast %cst_37 : f32 to vector<8x128xf32>
    %132 = arith.maximumf %130, %131 : vector<8x128xf32>
    %133 = arith.subf %132, %92 : vector<8x128xf32>
    %134 = arith.mulf %129, %133 : vector<8x128xf32>
    %135 = arith.addf %92, %134 : vector<8x128xf32>
    %136 = arith.addf %123, %135 : vector<8x128xf32>
    %cst_38 = arith.constant 1.250000e-01 : f32
    %137 = vector.broadcast %cst_38 : f32 to vector<8x128xf32>
    %138 = arith.mulf %136, %137 : vector<8x128xf32>
    %c0_39 = arith.constant 0 : index
    %c0_40 = arith.constant 0 : index
    %139 = vector.load %arg10[%c0_39, %c0_40] : memref<32x128xf32, #tpu.memory_space<vmem>>, vector<8x128xf32>
    tpu.vector_store %arg10[%c0_39, %c0_40], %138 {strides = array<i32>} : memref<32x128xf32, #tpu.memory_space<vmem>>, vector<8x128xf32>,
    %140 = vector.extract_strided_slice %11 {offsets = [8, 0], sizes = [8, 256], strides = [1, 1]} : vector<32x256xf32> to vector<8x256xf32>
    %cst_41 = arith.constant dense<0.000000e+00> : vector<8x256xf32>
    %141 = tpu.matmul %138, %3, %cst_41 {dimension_numbers = #tpu.dot_dimension_numbers<[1], [0], [0], [1], [0, 0, 1, 1], [], []>} : vector<8x128xf32>, vector<128x256xf32>, vector<8x256xf32> -> vector<8x256xf32>
    %142 = arith.addf %140, %141 : vector<8x256xf32>
    %143 = vector.extract_strided_slice %142 {offsets = [0, 0], sizes = [8, 128], strides = [1, 1]} : vector<8x256xf32> to vector<8x128xf32>
    %144 = arith.negf %143 : vector<8x128xf32>
    %145 = math.exp %144 : vector<8x128xf32>
    %cst_42 = arith.constant 1.000000e+00 : f32
    %146 = vector.broadcast %cst_42 : f32 to vector<8x128xf32>
    %147 = arith.addf %146, %145 : vector<8x128xf32>
    %148 = arith.divf %146, %147 : vector<8x128xf32>
    %149 = vector.extract_strided_slice %142 {offsets = [0, 128], sizes = [8, 128], strides = [1, 1]} : vector<8x256xf32> to vector<8x128xf32>
    %150 = math.tanh %149 : vector<8x128xf32>
    %151 = arith.subf %150, %138 : vector<8x128xf32>
    %152 = arith.mulf %148, %151 : vector<8x128xf32>
    %153 = arith.addf %138, %152 : vector<8x128xf32>
    %cst_43 = arith.constant dense<0.000000e+00> : vector<8x256xf32>
    %154 = tpu.matmul %153, %4, %cst_43 {dimension_numbers = #tpu.dot_dimension_numbers<[1], [0], [0], [1], [0, 0, 1, 1], [], []>} : vector<8x128xf32>, vector<128x256xf32>, vector<8x256xf32> -> vector<8x256xf32>
    %155 = vector.extract_strided_slice %154 {offsets = [0, 0], sizes = [8, 128], strides = [1, 1]} : vector<8x256xf32> to vector<8x128xf32>
    %156 = arith.negf %155 : vector<8x128xf32>
    %157 = math.exp %156 : vector<8x128xf32>
    %cst_44 = arith.constant 1.000000e+00 : f32
    %158 = vector.broadcast %cst_44 : f32 to vector<8x128xf32>
    %159 = arith.addf %158, %157 : vector<8x128xf32>
    %160 = arith.divf %158, %159 : vector<8x128xf32>
    %161 = vector.extract_strided_slice %154 {offsets = [0, 128], sizes = [8, 128], strides = [1, 1]} : vector<8x256xf32> to vector<8x128xf32>
    %162 = arith.negf %161 : vector<8x128xf32>
    %163 = math.exp %162 : vector<8x128xf32>
    %cst_45 = arith.constant 1.000000e+00 : f32
    %164 = vector.broadcast %cst_45 : f32 to vector<8x128xf32>
    %165 = arith.addf %164, %163 : vector<8x128xf32>
    %166 = arith.divf %164, %165 : vector<8x128xf32>
    %167 = arith.subf %166, %153 : vector<8x128xf32>
    %168 = arith.mulf %160, %167 : vector<8x128xf32>
    %169 = arith.addf %153, %168 : vector<8x128xf32>
    %cst_46 = arith.constant dense<0.000000e+00> : vector<8x768xf32>
    %170 = tpu.matmul %169, %5, %cst_46 {dimension_numbers = #tpu.dot_dimension_numbers<[1], [0], [0], [1], [0, 0, 1, 1], [], []>} : vector<8x128xf32>, vector<128x768xf32>, vector<8x768xf32> -> vector<8x768xf32>
    %171 = vector.extract_strided_slice %170 {offsets = [0, 0], sizes = [8, 128], strides = [1, 1]} : vector<8x768xf32> to vector<8x128xf32>
    %172 = arith.negf %171 : vector<8x128xf32>
    %173 = math.exp %172 : vector<8x128xf32>
    %cst_47 = arith.constant 1.000000e+00 : f32
    %174 = vector.broadcast %cst_47 : f32 to vector<8x128xf32>
    %175 = arith.addf %174, %173 : vector<8x128xf32>
    %176 = arith.divf %174, %175 : vector<8x128xf32>
    %177 = vector.extract_strided_slice %170 {offsets = [0, 128], sizes = [8, 128], strides = [1, 1]} : vector<8x768xf32> to vector<8x128xf32>
    %cst_48 = arith.constant 0.000000e+00 : f32
    %178 = vector.broadcast %cst_48 : f32 to vector<8x128xf32>
    %179 = arith.maximumf %177, %178 : vector<8x128xf32>
    %180 = arith.subf %179, %169 : vector<8x128xf32>
    %181 = arith.mulf %176, %180 : vector<8x128xf32>
    %182 = arith.addf %169, %181 : vector<8x128xf32>
    %183 = arith.addf %169, %182 : vector<8x128xf32>
    %184 = vector.extract_strided_slice %170 {offsets = [0, 256], sizes = [8, 128], strides = [1, 1]} : vector<8x768xf32> to vector<8x128xf32>
    %185 = arith.negf %184 : vector<8x128xf32>
    %186 = math.exp %185 : vector<8x128xf32>
    %cst_49 = arith.constant 1.000000e+00 : f32
    %187 = vector.broadcast %cst_49 : f32 to vector<8x128xf32>
    %188 = arith.addf %187, %186 : vector<8x128xf32>
    %189 = arith.divf %187, %188 : vector<8x128xf32>
    %190 = vector.extract_strided_slice %170 {offsets = [0, 384], sizes = [8, 128], strides = [1, 1]} : vector<8x768xf32> to vector<8x128xf32>
    %cst_50 = arith.constant 0.000000e+00 : f32
    %191 = vector.broadcast %cst_50 : f32 to vector<8x128xf32>
    %192 = arith.maximumf %190, %191 : vector<8x128xf32>
    %193 = arith.subf %192, %169 : vector<8x128xf32>
    %194 = arith.mulf %189, %193 : vector<8x128xf32>
    %195 = arith.addf %169, %194 : vector<8x128xf32>
    %196 = arith.addf %183, %195 : vector<8x128xf32>
    %197 = vector.extract_strided_slice %170 {offsets = [0, 512], sizes = [8, 128], strides = [1, 1]} : vector<8x768xf32> to vector<8x128xf32>
    %198 = arith.negf %197 : vector<8x128xf32>
    %199 = math.exp %198 : vector<8x128xf32>
    %cst_51 = arith.constant 1.000000e+00 : f32
    %200 = vector.broadcast %cst_51 : f32 to vector<8x128xf32>
    %201 = arith.addf %200, %199 : vector<8x128xf32>
    %202 = arith.divf %200, %201 : vector<8x128xf32>
    %203 = vector.extract_strided_slice %170 {offsets = [0, 640], sizes = [8, 128], strides = [1, 1]} : vector<8x768xf32> to vector<8x128xf32>
    %204 = arith.subf %203, %169 : vector<8x128xf32>
    %205 = arith.mulf %202, %204 : vector<8x128xf32>
    %206 = arith.addf %169, %205 : vector<8x128xf32>
    %207 = arith.addf %196, %206 : vector<8x128xf32>
    %cst_52 = arith.constant dense<0.000000e+00> : vector<8x256xf32>
    %208 = tpu.matmul %182, %6, %cst_52 {dimension_numbers = #tpu.dot_dimension_numbers<[1], [0], [0], [1], [0, 0, 1, 1], [], []>} : vector<8x128xf32>, vector<128x256xf32>, vector<8x256xf32> -> vector<8x256xf32>
    %209 = vector.extract_strided_slice %208 {offsets = [0, 0], sizes = [8, 128], strides = [1, 1]} : vector<8x256xf32> to vector<8x128xf32>
    %210 = arith.negf %209 : vector<8x128xf32>
    %211 = math.exp %210 : vector<8x128xf32>
    %cst_53 = arith.constant 1.000000e+00 : f32
    %212 = vector.broadcast %cst_53 : f32 to vector<8x128xf32>
    %213 = arith.addf %212, %211 : vector<8x128xf32>
    %214 = arith.divf %212, %213 : vector<8x128xf32>
    %215 = vector.extract_strided_slice %208 {offsets = [0, 128], sizes = [8, 128], strides = [1, 1]} : vector<8x256xf32> to vector<8x128xf32>
    %216 = math.tanh %215 : vector<8x128xf32>
    %217 = arith.subf %216, %182 : vector<8x128xf32>
    %218 = arith.mulf %214, %217 : vector<8x128xf32>
    %219 = arith.addf %182, %218 : vector<8x128xf32>
    %220 = arith.addf %207, %219 : vector<8x128xf32>
    %cst_54 = arith.constant dense<0.000000e+00> : vector<8x256xf32>
    %221 = tpu.matmul %195, %7, %cst_54 {dimension_numbers = #tpu.dot_dimension_numbers<[1], [0], [0], [1], [0, 0, 1, 1], [], []>} : vector<8x128xf32>, vector<128x256xf32>, vector<8x256xf32> -> vector<8x256xf32>
    %222 = vector.extract_strided_slice %221 {offsets = [0, 0], sizes = [8, 128], strides = [1, 1]} : vector<8x256xf32> to vector<8x128xf32>
    %223 = arith.negf %222 : vector<8x128xf32>
    %224 = math.exp %223 : vector<8x128xf32>
    %cst_55 = arith.constant 1.000000e+00 : f32
    %225 = vector.broadcast %cst_55 : f32 to vector<8x128xf32>
    %226 = arith.addf %225, %224 : vector<8x128xf32>
    %227 = arith.divf %225, %226 : vector<8x128xf32>
    %228 = vector.extract_strided_slice %221 {offsets = [0, 128], sizes = [8, 128], strides = [1, 1]} : vector<8x256xf32> to vector<8x128xf32>
    %229 = math.tanh %228 : vector<8x128xf32>
    %230 = arith.subf %229, %195 : vector<8x128xf32>
    %231 = arith.mulf %227, %230 : vector<8x128xf32>
    %232 = arith.addf %195, %231 : vector<8x128xf32>
    %233 = arith.addf %220, %232 : vector<8x128xf32>
    %cst_56 = arith.constant dense<0.000000e+00> : vector<8x512xf32>
    %234 = tpu.matmul %219, %8, %cst_56 {dimension_numbers = #tpu.dot_dimension_numbers<[1], [0], [0], [1], [0, 0, 1, 1], [], []>} : vector<8x128xf32>, vector<128x512xf32>, vector<8x512xf32> -> vector<8x512xf32>
    %235 = vector.extract_strided_slice %234 {offsets = [0, 0], sizes = [8, 128], strides = [1, 1]} : vector<8x512xf32> to vector<8x128xf32>
    %236 = arith.negf %235 : vector<8x128xf32>
    %237 = math.exp %236 : vector<8x128xf32>
    %cst_57 = arith.constant 1.000000e+00 : f32
    %238 = vector.broadcast %cst_57 : f32 to vector<8x128xf32>
    %239 = arith.addf %238, %237 : vector<8x128xf32>
    %240 = arith.divf %238, %239 : vector<8x128xf32>
    %241 = vector.extract_strided_slice %234 {offsets = [0, 128], sizes = [8, 128], strides = [1, 1]} : vector<8x512xf32> to vector<8x128xf32>
    %242 = arith.negf %241 : vector<8x128xf32>
    %243 = math.exp %242 : vector<8x128xf32>
    %cst_58 = arith.constant 1.000000e+00 : f32
    %244 = vector.broadcast %cst_58 : f32 to vector<8x128xf32>
    %245 = arith.addf %244, %243 : vector<8x128xf32>
    %246 = arith.divf %244, %245 : vector<8x128xf32>
    %247 = arith.subf %246, %219 : vector<8x128xf32>
    %248 = arith.mulf %240, %247 : vector<8x128xf32>
    %249 = arith.addf %219, %248 : vector<8x128xf32>
    %250 = arith.addf %233, %249 : vector<8x128xf32>
    %251 = vector.extract_strided_slice %234 {offsets = [0, 256], sizes = [8, 128], strides = [1, 1]} : vector<8x512xf32> to vector<8x128xf32>
    %252 = arith.negf %251 : vector<8x128xf32>
    %253 = math.exp %252 : vector<8x128xf32>
    %cst_59 = arith.constant 1.000000e+00 : f32
    %254 = vector.broadcast %cst_59 : f32 to vector<8x128xf32>
    %255 = arith.addf %254, %253 : vector<8x128xf32>
    %256 = arith.divf %254, %255 : vector<8x128xf32>
    %257 = vector.extract_strided_slice %234 {offsets = [0, 384], sizes = [8, 128], strides = [1, 1]} : vector<8x512xf32> to vector<8x128xf32>
    %cst_60 = arith.constant 0.000000e+00 : f32
    %258 = vector.broadcast %cst_60 : f32 to vector<8x128xf32>
    %259 = arith.maximumf %257, %258 : vector<8x128xf32>
    %260 = arith.subf %259, %219 : vector<8x128xf32>
    %261 = arith.mulf %256, %260 : vector<8x128xf32>
    %262 = arith.addf %219, %261 : vector<8x128xf32>
    %263 = arith.addf %250, %262 : vector<8x128xf32>
    %cst_61 = arith.constant 1.250000e-01 : f32
    %264 = vector.broadcast %cst_61 : f32 to vector<8x128xf32>
    %265 = arith.mulf %263, %264 : vector<8x128xf32>
    %c8 = arith.constant 8 : index
    %c0_62 = arith.constant 0 : index
    %266 = vector.load %arg10[%c8, %c0_62] : memref<32x128xf32, #tpu.memory_space<vmem>>, vector<8x128xf32>
    tpu.vector_store %arg10[%c8, %c0_62], %265 {strides = array<i32>} : memref<32x128xf32, #tpu.memory_space<vmem>>, vector<8x128xf32>,
    %267 = vector.extract_strided_slice %11 {offsets = [16, 0], sizes = [8, 256], strides = [1, 1]} : vector<32x256xf32> to vector<8x256xf32>
    %cst_63 = arith.constant dense<0.000000e+00> : vector<8x256xf32>
    %268 = tpu.matmul %265, %3, %cst_63 {dimension_numbers = #tpu.dot_dimension_numbers<[1], [0], [0], [1], [0, 0, 1, 1], [], []>} : vector<8x128xf32>, vector<128x256xf32>, vector<8x256xf32> -> vector<8x256xf32>
    %269 = arith.addf %267, %268 : vector<8x256xf32>
    %270 = vector.extract_strided_slice %269 {offsets = [0, 0], sizes = [8, 128], strides = [1, 1]} : vector<8x256xf32> to vector<8x128xf32>
    %271 = arith.negf %270 : vector<8x128xf32>
    %272 = math.exp %271 : vector<8x128xf32>
    %cst_64 = arith.constant 1.000000e+00 : f32
    %273 = vector.broadcast %cst_64 : f32 to vector<8x128xf32>
    %274 = arith.addf %273, %272 : vector<8x128xf32>
    %275 = arith.divf %273, %274 : vector<8x128xf32>
    %276 = vector.extract_strided_slice %269 {offsets = [0, 128], sizes = [8, 128], strides = [1, 1]} : vector<8x256xf32> to vector<8x128xf32>
    %277 = math.tanh %276 : vector<8x128xf32>
    %278 = arith.subf %277, %265 : vector<8x128xf32>
    %279 = arith.mulf %275, %278 : vector<8x128xf32>
    %280 = arith.addf %265, %279 : vector<8x128xf32>
    %cst_65 = arith.constant dense<0.000000e+00> : vector<8x256xf32>
    %281 = tpu.matmul %280, %4, %cst_65 {dimension_numbers = #tpu.dot_dimension_numbers<[1], [0], [0], [1], [0, 0, 1, 1], [], []>} : vector<8x128xf32>, vector<128x256xf32>, vector<8x256xf32> -> vector<8x256xf32>
    %282 = vector.extract_strided_slice %281 {offsets = [0, 0], sizes = [8, 128], strides = [1, 1]} : vector<8x256xf32> to vector<8x128xf32>
    %283 = arith.negf %282 : vector<8x128xf32>
    %284 = math.exp %283 : vector<8x128xf32>
    %cst_66 = arith.constant 1.000000e+00 : f32
    %285 = vector.broadcast %cst_66 : f32 to vector<8x128xf32>
    %286 = arith.addf %285, %284 : vector<8x128xf32>
    %287 = arith.divf %285, %286 : vector<8x128xf32>
    %288 = vector.extract_strided_slice %281 {offsets = [0, 128], sizes = [8, 128], strides = [1, 1]} : vector<8x256xf32> to vector<8x128xf32>
    %289 = arith.negf %288 : vector<8x128xf32>
    %290 = math.exp %289 : vector<8x128xf32>
    %cst_67 = arith.constant 1.000000e+00 : f32
    %291 = vector.broadcast %cst_67 : f32 to vector<8x128xf32>
    %292 = arith.addf %291, %290 : vector<8x128xf32>
    %293 = arith.divf %291, %292 : vector<8x128xf32>
    %294 = arith.subf %293, %280 : vector<8x128xf32>
    %295 = arith.mulf %287, %294 : vector<8x128xf32>
    %296 = arith.addf %280, %295 : vector<8x128xf32>
    %cst_68 = arith.constant dense<0.000000e+00> : vector<8x768xf32>
    %297 = tpu.matmul %296, %5, %cst_68 {dimension_numbers = #tpu.dot_dimension_numbers<[1], [0], [0], [1], [0, 0, 1, 1], [], []>} : vector<8x128xf32>, vector<128x768xf32>, vector<8x768xf32> -> vector<8x768xf32>
    %298 = vector.extract_strided_slice %297 {offsets = [0, 0], sizes = [8, 128], strides = [1, 1]} : vector<8x768xf32> to vector<8x128xf32>
    %299 = arith.negf %298 : vector<8x128xf32>
    %300 = math.exp %299 : vector<8x128xf32>
    %cst_69 = arith.constant 1.000000e+00 : f32
    %301 = vector.broadcast %cst_69 : f32 to vector<8x128xf32>
    %302 = arith.addf %301, %300 : vector<8x128xf32>
    %303 = arith.divf %301, %302 : vector<8x128xf32>
    %304 = vector.extract_strided_slice %297 {offsets = [0, 128], sizes = [8, 128], strides = [1, 1]} : vector<8x768xf32> to vector<8x128xf32>
    %cst_70 = arith.constant 0.000000e+00 : f32
    %305 = vector.broadcast %cst_70 : f32 to vector<8x128xf32>
    %306 = arith.maximumf %304, %305 : vector<8x128xf32>
    %307 = arith.subf %306, %296 : vector<8x128xf32>
    %308 = arith.mulf %303, %307 : vector<8x128xf32>
    %309 = arith.addf %296, %308 : vector<8x128xf32>
    %310 = arith.addf %296, %309 : vector<8x128xf32>
    %311 = vector.extract_strided_slice %297 {offsets = [0, 256], sizes = [8, 128], strides = [1, 1]} : vector<8x768xf32> to vector<8x128xf32>
    %312 = arith.negf %311 : vector<8x128xf32>
    %313 = math.exp %312 : vector<8x128xf32>
    %cst_71 = arith.constant 1.000000e+00 : f32
    %314 = vector.broadcast %cst_71 : f32 to vector<8x128xf32>
    %315 = arith.addf %314, %313 : vector<8x128xf32>
    %316 = arith.divf %314, %315 : vector<8x128xf32>
    %317 = vector.extract_strided_slice %297 {offsets = [0, 384], sizes = [8, 128], strides = [1, 1]} : vector<8x768xf32> to vector<8x128xf32>
    %cst_72 = arith.constant 0.000000e+00 : f32
    %318 = vector.broadcast %cst_72 : f32 to vector<8x128xf32>
    %319 = arith.maximumf %317, %318 : vector<8x128xf32>
    %320 = arith.subf %319, %296 : vector<8x128xf32>
    %321 = arith.mulf %316, %320 : vector<8x128xf32>
    %322 = arith.addf %296, %321 : vector<8x128xf32>
    %323 = arith.addf %310, %322 : vector<8x128xf32>
    %324 = vector.extract_strided_slice %297 {offsets = [0, 512], sizes = [8, 128], strides = [1, 1]} : vector<8x768xf32> to vector<8x128xf32>
    %325 = arith.negf %324 : vector<8x128xf32>
    %326 = math.exp %325 : vector<8x128xf32>
    %cst_73 = arith.constant 1.000000e+00 : f32
    %327 = vector.broadcast %cst_73 : f32 to vector<8x128xf32>
    %328 = arith.addf %327, %326 : vector<8x128xf32>
    %329 = arith.divf %327, %328 : vector<8x128xf32>
    %330 = vector.extract_strided_slice %297 {offsets = [0, 640], sizes = [8, 128], strides = [1, 1]} : vector<8x768xf32> to vector<8x128xf32>
    %331 = arith.subf %330, %296 : vector<8x128xf32>
    %332 = arith.mulf %329, %331 : vector<8x128xf32>
    %333 = arith.addf %296, %332 : vector<8x128xf32>
    %334 = arith.addf %323, %333 : vector<8x128xf32>
    %cst_74 = arith.constant dense<0.000000e+00> : vector<8x256xf32>
    %335 = tpu.matmul %309, %6, %cst_74 {dimension_numbers = #tpu.dot_dimension_numbers<[1], [0], [0], [1], [0, 0, 1, 1], [], []>} : vector<8x128xf32>, vector<128x256xf32>, vector<8x256xf32> -> vector<8x256xf32>
    %336 = vector.extract_strided_slice %335 {offsets = [0, 0], sizes = [8, 128], strides = [1, 1]} : vector<8x256xf32> to vector<8x128xf32>
    %337 = arith.negf %336 : vector<8x128xf32>
    %338 = math.exp %337 : vector<8x128xf32>
    %cst_75 = arith.constant 1.000000e+00 : f32
    %339 = vector.broadcast %cst_75 : f32 to vector<8x128xf32>
    %340 = arith.addf %339, %338 : vector<8x128xf32>
    %341 = arith.divf %339, %340 : vector<8x128xf32>
    %342 = vector.extract_strided_slice %335 {offsets = [0, 128], sizes = [8, 128], strides = [1, 1]} : vector<8x256xf32> to vector<8x128xf32>
    %343 = math.tanh %342 : vector<8x128xf32>
    %344 = arith.subf %343, %309 : vector<8x128xf32>
    %345 = arith.mulf %341, %344 : vector<8x128xf32>
    %346 = arith.addf %309, %345 : vector<8x128xf32>
    %347 = arith.addf %334, %346 : vector<8x128xf32>
    %cst_76 = arith.constant dense<0.000000e+00> : vector<8x256xf32>
    %348 = tpu.matmul %322, %7, %cst_76 {dimension_numbers = #tpu.dot_dimension_numbers<[1], [0], [0], [1], [0, 0, 1, 1], [], []>} : vector<8x128xf32>, vector<128x256xf32>, vector<8x256xf32> -> vector<8x256xf32>
    %349 = vector.extract_strided_slice %348 {offsets = [0, 0], sizes = [8, 128], strides = [1, 1]} : vector<8x256xf32> to vector<8x128xf32>
    %350 = arith.negf %349 : vector<8x128xf32>
    %351 = math.exp %350 : vector<8x128xf32>
    %cst_77 = arith.constant 1.000000e+00 : f32
    %352 = vector.broadcast %cst_77 : f32 to vector<8x128xf32>
    %353 = arith.addf %352, %351 : vector<8x128xf32>
    %354 = arith.divf %352, %353 : vector<8x128xf32>
    %355 = vector.extract_strided_slice %348 {offsets = [0, 128], sizes = [8, 128], strides = [1, 1]} : vector<8x256xf32> to vector<8x128xf32>
    %356 = math.tanh %355 : vector<8x128xf32>
    %357 = arith.subf %356, %322 : vector<8x128xf32>
    %358 = arith.mulf %354, %357 : vector<8x128xf32>
    %359 = arith.addf %322, %358 : vector<8x128xf32>
    %360 = arith.addf %347, %359 : vector<8x128xf32>
    %cst_78 = arith.constant dense<0.000000e+00> : vector<8x512xf32>
    %361 = tpu.matmul %346, %8, %cst_78 {dimension_numbers = #tpu.dot_dimension_numbers<[1], [0], [0], [1], [0, 0, 1, 1], [], []>} : vector<8x128xf32>, vector<128x512xf32>, vector<8x512xf32> -> vector<8x512xf32>
    %362 = vector.extract_strided_slice %361 {offsets = [0, 0], sizes = [8, 128], strides = [1, 1]} : vector<8x512xf32> to vector<8x128xf32>
    %363 = arith.negf %362 : vector<8x128xf32>
    %364 = math.exp %363 : vector<8x128xf32>
    %cst_79 = arith.constant 1.000000e+00 : f32
    %365 = vector.broadcast %cst_79 : f32 to vector<8x128xf32>
    %366 = arith.addf %365, %364 : vector<8x128xf32>
    %367 = arith.divf %365, %366 : vector<8x128xf32>
    %368 = vector.extract_strided_slice %361 {offsets = [0, 128], sizes = [8, 128], strides = [1, 1]} : vector<8x512xf32> to vector<8x128xf32>
    %369 = arith.negf %368 : vector<8x128xf32>
    %370 = math.exp %369 : vector<8x128xf32>
    %cst_80 = arith.constant 1.000000e+00 : f32
    %371 = vector.broadcast %cst_80 : f32 to vector<8x128xf32>
    %372 = arith.addf %371, %370 : vector<8x128xf32>
    %373 = arith.divf %371, %372 : vector<8x128xf32>
    %374 = arith.subf %373, %346 : vector<8x128xf32>
    %375 = arith.mulf %367, %374 : vector<8x128xf32>
    %376 = arith.addf %346, %375 : vector<8x128xf32>
    %377 = arith.addf %360, %376 : vector<8x128xf32>
    %378 = vector.extract_strided_slice %361 {offsets = [0, 256], sizes = [8, 128], strides = [1, 1]} : vector<8x512xf32> to vector<8x128xf32>
    %379 = arith.negf %378 : vector<8x128xf32>
    %380 = math.exp %379 : vector<8x128xf32>
    %cst_81 = arith.constant 1.000000e+00 : f32
    %381 = vector.broadcast %cst_81 : f32 to vector<8x128xf32>
    %382 = arith.addf %381, %380 : vector<8x128xf32>
    %383 = arith.divf %381, %382 : vector<8x128xf32>
    %384 = vector.extract_strided_slice %361 {offsets = [0, 384], sizes = [8, 128], strides = [1, 1]} : vector<8x512xf32> to vector<8x128xf32>
    %cst_82 = arith.constant 0.000000e+00 : f32
    %385 = vector.broadcast %cst_82 : f32 to vector<8x128xf32>
    %386 = arith.maximumf %384, %385 : vector<8x128xf32>
    %387 = arith.subf %386, %346 : vector<8x128xf32>
    %388 = arith.mulf %383, %387 : vector<8x128xf32>
    %389 = arith.addf %346, %388 : vector<8x128xf32>
    %390 = arith.addf %377, %389 : vector<8x128xf32>
    %cst_83 = arith.constant 1.250000e-01 : f32
    %391 = vector.broadcast %cst_83 : f32 to vector<8x128xf32>
    %392 = arith.mulf %390, %391 : vector<8x128xf32>
    %c16 = arith.constant 16 : index
    %c0_84 = arith.constant 0 : index
    %393 = vector.load %arg10[%c16, %c0_84] : memref<32x128xf32, #tpu.memory_space<vmem>>, vector<8x128xf32>
    tpu.vector_store %arg10[%c16, %c0_84], %392 {strides = array<i32>} : memref<32x128xf32, #tpu.memory_space<vmem>>, vector<8x128xf32>,
    %394 = vector.extract_strided_slice %11 {offsets = [24, 0], sizes = [8, 256], strides = [1, 1]} : vector<32x256xf32> to vector<8x256xf32>
    %cst_85 = arith.constant dense<0.000000e+00> : vector<8x256xf32>
    %395 = tpu.matmul %392, %3, %cst_85 {dimension_numbers = #tpu.dot_dimension_numbers<[1], [0], [0], [1], [0, 0, 1, 1], [], []>} : vector<8x128xf32>, vector<128x256xf32>, vector<8x256xf32> -> vector<8x256xf32>
    %396 = arith.addf %394, %395 : vector<8x256xf32>
    %397 = vector.extract_strided_slice %396 {offsets = [0, 0], sizes = [8, 128], strides = [1, 1]} : vector<8x256xf32> to vector<8x128xf32>
    %398 = arith.negf %397 : vector<8x128xf32>
    %399 = math.exp %398 : vector<8x128xf32>
    %cst_86 = arith.constant 1.000000e+00 : f32
    %400 = vector.broadcast %cst_86 : f32 to vector<8x128xf32>
    %401 = arith.addf %400, %399 : vector<8x128xf32>
    %402 = arith.divf %400, %401 : vector<8x128xf32>
    %403 = vector.extract_strided_slice %396 {offsets = [0, 128], sizes = [8, 128], strides = [1, 1]} : vector<8x256xf32> to vector<8x128xf32>
    %404 = math.tanh %403 : vector<8x128xf32>
    %405 = arith.subf %404, %392 : vector<8x128xf32>
    %406 = arith.mulf %402, %405 : vector<8x128xf32>
    %407 = arith.addf %392, %406 : vector<8x128xf32>
    %cst_87 = arith.constant dense<0.000000e+00> : vector<8x256xf32>
    %408 = tpu.matmul %407, %4, %cst_87 {dimension_numbers = #tpu.dot_dimension_numbers<[1], [0], [0], [1], [0, 0, 1, 1], [], []>} : vector<8x128xf32>, vector<128x256xf32>, vector<8x256xf32> -> vector<8x256xf32>
    %409 = vector.extract_strided_slice %408 {offsets = [0, 0], sizes = [8, 128], strides = [1, 1]} : vector<8x256xf32> to vector<8x128xf32>
    %410 = arith.negf %409 : vector<8x128xf32>
    %411 = math.exp %410 : vector<8x128xf32>
    %cst_88 = arith.constant 1.000000e+00 : f32
    %412 = vector.broadcast %cst_88 : f32 to vector<8x128xf32>
    %413 = arith.addf %412, %411 : vector<8x128xf32>
    %414 = arith.divf %412, %413 : vector<8x128xf32>
    %415 = vector.extract_strided_slice %408 {offsets = [0, 128], sizes = [8, 128], strides = [1, 1]} : vector<8x256xf32> to vector<8x128xf32>
    %416 = arith.negf %415 : vector<8x128xf32>
    %417 = math.exp %416 : vector<8x128xf32>
    %cst_89 = arith.constant 1.000000e+00 : f32
    %418 = vector.broadcast %cst_89 : f32 to vector<8x128xf32>
    %419 = arith.addf %418, %417 : vector<8x128xf32>
    %420 = arith.divf %418, %419 : vector<8x128xf32>
    %421 = arith.subf %420, %407 : vector<8x128xf32>
    %422 = arith.mulf %414, %421 : vector<8x128xf32>
    %423 = arith.addf %407, %422 : vector<8x128xf32>
    %cst_90 = arith.constant dense<0.000000e+00> : vector<8x768xf32>
    %424 = tpu.matmul %423, %5, %cst_90 {dimension_numbers = #tpu.dot_dimension_numbers<[1], [0], [0], [1], [0, 0, 1, 1], [], []>} : vector<8x128xf32>, vector<128x768xf32>, vector<8x768xf32> -> vector<8x768xf32>
    %425 = vector.extract_strided_slice %424 {offsets = [0, 0], sizes = [8, 128], strides = [1, 1]} : vector<8x768xf32> to vector<8x128xf32>
    %426 = arith.negf %425 : vector<8x128xf32>
    %427 = math.exp %426 : vector<8x128xf32>
    %cst_91 = arith.constant 1.000000e+00 : f32
    %428 = vector.broadcast %cst_91 : f32 to vector<8x128xf32>
    %429 = arith.addf %428, %427 : vector<8x128xf32>
    %430 = arith.divf %428, %429 : vector<8x128xf32>
    %431 = vector.extract_strided_slice %424 {offsets = [0, 128], sizes = [8, 128], strides = [1, 1]} : vector<8x768xf32> to vector<8x128xf32>
    %cst_92 = arith.constant 0.000000e+00 : f32
    %432 = vector.broadcast %cst_92 : f32 to vector<8x128xf32>
    %433 = arith.maximumf %431, %432 : vector<8x128xf32>
    %434 = arith.subf %433, %423 : vector<8x128xf32>
    %435 = arith.mulf %430, %434 : vector<8x128xf32>
    %436 = arith.addf %423, %435 : vector<8x128xf32>
    %437 = arith.addf %423, %436 : vector<8x128xf32>
    %438 = vector.extract_strided_slice %424 {offsets = [0, 256], sizes = [8, 128], strides = [1, 1]} : vector<8x768xf32> to vector<8x128xf32>
    %439 = arith.negf %438 : vector<8x128xf32>
    %440 = math.exp %439 : vector<8x128xf32>
    %cst_93 = arith.constant 1.000000e+00 : f32
    %441 = vector.broadcast %cst_93 : f32 to vector<8x128xf32>
    %442 = arith.addf %441, %440 : vector<8x128xf32>
    %443 = arith.divf %441, %442 : vector<8x128xf32>
    %444 = vector.extract_strided_slice %424 {offsets = [0, 384], sizes = [8, 128], strides = [1, 1]} : vector<8x768xf32> to vector<8x128xf32>
    %cst_94 = arith.constant 0.000000e+00 : f32
    %445 = vector.broadcast %cst_94 : f32 to vector<8x128xf32>
    %446 = arith.maximumf %444, %445 : vector<8x128xf32>
    %447 = arith.subf %446, %423 : vector<8x128xf32>
    %448 = arith.mulf %443, %447 : vector<8x128xf32>
    %449 = arith.addf %423, %448 : vector<8x128xf32>
    %450 = arith.addf %437, %449 : vector<8x128xf32>
    %451 = vector.extract_strided_slice %424 {offsets = [0, 512], sizes = [8, 128], strides = [1, 1]} : vector<8x768xf32> to vector<8x128xf32>
    %452 = arith.negf %451 : vector<8x128xf32>
    %453 = math.exp %452 : vector<8x128xf32>
    %cst_95 = arith.constant 1.000000e+00 : f32
    %454 = vector.broadcast %cst_95 : f32 to vector<8x128xf32>
    %455 = arith.addf %454, %453 : vector<8x128xf32>
    %456 = arith.divf %454, %455 : vector<8x128xf32>
    %457 = vector.extract_strided_slice %424 {offsets = [0, 640], sizes = [8, 128], strides = [1, 1]} : vector<8x768xf32> to vector<8x128xf32>
    %458 = arith.subf %457, %423 : vector<8x128xf32>
    %459 = arith.mulf %456, %458 : vector<8x128xf32>
    %460 = arith.addf %423, %459 : vector<8x128xf32>
    %461 = arith.addf %450, %460 : vector<8x128xf32>
    %cst_96 = arith.constant dense<0.000000e+00> : vector<8x256xf32>
    %462 = tpu.matmul %436, %6, %cst_96 {dimension_numbers = #tpu.dot_dimension_numbers<[1], [0], [0], [1], [0, 0, 1, 1], [], []>} : vector<8x128xf32>, vector<128x256xf32>, vector<8x256xf32> -> vector<8x256xf32>
    %463 = vector.extract_strided_slice %462 {offsets = [0, 0], sizes = [8, 128], strides = [1, 1]} : vector<8x256xf32> to vector<8x128xf32>
    %464 = arith.negf %463 : vector<8x128xf32>
    %465 = math.exp %464 : vector<8x128xf32>
    %cst_97 = arith.constant 1.000000e+00 : f32
    %466 = vector.broadcast %cst_97 : f32 to vector<8x128xf32>
    %467 = arith.addf %466, %465 : vector<8x128xf32>
    %468 = arith.divf %466, %467 : vector<8x128xf32>
    %469 = vector.extract_strided_slice %462 {offsets = [0, 128], sizes = [8, 128], strides = [1, 1]} : vector<8x256xf32> to vector<8x128xf32>
    %470 = math.tanh %469 : vector<8x128xf32>
    %471 = arith.subf %470, %436 : vector<8x128xf32>
    %472 = arith.mulf %468, %471 : vector<8x128xf32>
    %473 = arith.addf %436, %472 : vector<8x128xf32>
    %474 = arith.addf %461, %473 : vector<8x128xf32>
    %cst_98 = arith.constant dense<0.000000e+00> : vector<8x256xf32>
    %475 = tpu.matmul %449, %7, %cst_98 {dimension_numbers = #tpu.dot_dimension_numbers<[1], [0], [0], [1], [0, 0, 1, 1], [], []>} : vector<8x128xf32>, vector<128x256xf32>, vector<8x256xf32> -> vector<8x256xf32>
    %476 = vector.extract_strided_slice %475 {offsets = [0, 0], sizes = [8, 128], strides = [1, 1]} : vector<8x256xf32> to vector<8x128xf32>
    %477 = arith.negf %476 : vector<8x128xf32>
    %478 = math.exp %477 : vector<8x128xf32>
    %cst_99 = arith.constant 1.000000e+00 : f32
    %479 = vector.broadcast %cst_99 : f32 to vector<8x128xf32>
    %480 = arith.addf %479, %478 : vector<8x128xf32>
    %481 = arith.divf %479, %480 : vector<8x128xf32>
    %482 = vector.extract_strided_slice %475 {offsets = [0, 128], sizes = [8, 128], strides = [1, 1]} : vector<8x256xf32> to vector<8x128xf32>
    %483 = math.tanh %482 : vector<8x128xf32>
    %484 = arith.subf %483, %449 : vector<8x128xf32>
    %485 = arith.mulf %481, %484 : vector<8x128xf32>
    %486 = arith.addf %449, %485 : vector<8x128xf32>
    %487 = arith.addf %474, %486 : vector<8x128xf32>
    %cst_100 = arith.constant dense<0.000000e+00> : vector<8x512xf32>
    %488 = tpu.matmul %473, %8, %cst_100 {dimension_numbers = #tpu.dot_dimension_numbers<[1], [0], [0], [1], [0, 0, 1, 1], [], []>} : vector<8x128xf32>, vector<128x512xf32>, vector<8x512xf32> -> vector<8x512xf32>
    %489 = vector.extract_strided_slice %488 {offsets = [0, 0], sizes = [8, 128], strides = [1, 1]} : vector<8x512xf32> to vector<8x128xf32>
    %490 = arith.negf %489 : vector<8x128xf32>
    %491 = math.exp %490 : vector<8x128xf32>
    %cst_101 = arith.constant 1.000000e+00 : f32
    %492 = vector.broadcast %cst_101 : f32 to vector<8x128xf32>
    %493 = arith.addf %492, %491 : vector<8x128xf32>
    %494 = arith.divf %492, %493 : vector<8x128xf32>
    %495 = vector.extract_strided_slice %488 {offsets = [0, 128], sizes = [8, 128], strides = [1, 1]} : vector<8x512xf32> to vector<8x128xf32>
    %496 = arith.negf %495 : vector<8x128xf32>
    %497 = math.exp %496 : vector<8x128xf32>
    %cst_102 = arith.constant 1.000000e+00 : f32
    %498 = vector.broadcast %cst_102 : f32 to vector<8x128xf32>
    %499 = arith.addf %498, %497 : vector<8x128xf32>
    %500 = arith.divf %498, %499 : vector<8x128xf32>
    %501 = arith.subf %500, %473 : vector<8x128xf32>
    %502 = arith.mulf %494, %501 : vector<8x128xf32>
    %503 = arith.addf %473, %502 : vector<8x128xf32>
    %504 = arith.addf %487, %503 : vector<8x128xf32>
    %505 = vector.extract_strided_slice %488 {offsets = [0, 256], sizes = [8, 128], strides = [1, 1]} : vector<8x512xf32> to vector<8x128xf32>
    %506 = arith.negf %505 : vector<8x128xf32>
    %507 = math.exp %506 : vector<8x128xf32>
    %cst_103 = arith.constant 1.000000e+00 : f32
    %508 = vector.broadcast %cst_103 : f32 to vector<8x128xf32>
    %509 = arith.addf %508, %507 : vector<8x128xf32>
    %510 = arith.divf %508, %509 : vector<8x128xf32>
    %511 = vector.extract_strided_slice %488 {offsets = [0, 384], sizes = [8, 128], strides = [1, 1]} : vector<8x512xf32> to vector<8x128xf32>
    %cst_104 = arith.constant 0.000000e+00 : f32
    %512 = vector.broadcast %cst_104 : f32 to vector<8x128xf32>
    %513 = arith.maximumf %511, %512 : vector<8x128xf32>
    %514 = arith.subf %513, %473 : vector<8x128xf32>
    %515 = arith.mulf %510, %514 : vector<8x128xf32>
    %516 = arith.addf %473, %515 : vector<8x128xf32>
    %517 = arith.addf %504, %516 : vector<8x128xf32>
    %cst_105 = arith.constant 1.250000e-01 : f32
    %518 = vector.broadcast %cst_105 : f32 to vector<8x128xf32>
    %519 = arith.mulf %517, %518 : vector<8x128xf32>
    %c24 = arith.constant 24 : index
    %c0_106 = arith.constant 0 : index
    %520 = vector.load %arg10[%c24, %c0_106] : memref<32x128xf32, #tpu.memory_space<vmem>>, vector<8x128xf32>
    tpu.vector_store %arg10[%c24, %c0_106], %519 {strides = array<i32>} : memref<32x128xf32, #tpu.memory_space<vmem>>, vector<8x128xf32>,
    %c0_107 = arith.constant 0 : index
    %c0_108 = arith.constant 0 : index
    %521 = vector.load %arg11[%c0_107, %c0_108] : memref<8x128xf32, #tpu.memory_space<vmem>>, vector<8x128xf32>
    tpu.vector_store %arg11[%c0_107, %c0_108], %519 {strides = array<i32>} : memref<8x128xf32, #tpu.memory_space<vmem>>, vector<8x128xf32>,
    return
  }
  func.func @transform_0(%arg0: i32) -> (i32, i32) {
    %c0_i32 = arith.constant 0 : i32
    %c0_i32_0 = arith.constant 0 : i32
    return %arg0, %c0_i32 : i32, i32
  }
  func.func @transform_1(%arg0: i32) -> (i32, i32) {
    %c0_i32 = arith.constant 0 : i32
    %c0_i32_0 = arith.constant 0 : i32
    %c0_i32_1 = arith.constant 0 : i32
    return %c0_i32, %c0_i32_0 : i32, i32
  }
  func.func @transform_2(%arg0: i32) -> (i32, i32) {
    %c0_i32 = arith.constant 0 : i32
    %c0_i32_0 = arith.constant 0 : i32
    %c0_i32_1 = arith.constant 0 : i32
    return %c0_i32, %c0_i32_0 : i32, i32
  }
  func.func @transform_3(%arg0: i32) -> (i32, i32) {
    %c0_i32 = arith.constant 0 : i32
    %c0_i32_0 = arith.constant 0 : i32
    %c0_i32_1 = arith.constant 0 : i32
    return %c0_i32, %c0_i32_0 : i32, i32
  }
  func.func @transform_4(%arg0: i32) -> (i32, i32) {
    %c0_i32 = arith.constant 0 : i32
    %c0_i32_0 = arith.constant 0 : i32
    %c0_i32_1 = arith.constant 0 : i32
    return %c0_i32, %c0_i32_0 : i32, i32
  }
  func.func @transform_5(%arg0: i32) -> (i32, i32) {
    %c0_i32 = arith.constant 0 : i32
    %c0_i32_0 = arith.constant 0 : i32
    %c0_i32_1 = arith.constant 0 : i32
    return %c0_i32, %c0_i32_0 : i32, i32
  }
  func.func @transform_6(%arg0: i32) -> (i32, i32) {
    %c0_i32 = arith.constant 0 : i32
    %c0_i32_0 = arith.constant 0 : i32
    %c0_i32_1 = arith.constant 0 : i32
    return %c0_i32, %c0_i32_0 : i32, i32
  }
  func.func @transform_7(%arg0: i32) -> (i32, i32) {
    %c0_i32 = arith.constant 0 : i32
    %c0_i32_0 = arith.constant 0 : i32
    %c0_i32_1 = arith.constant 0 : i32
    return %c0_i32, %c0_i32_0 : i32, i32
  }
  func.func @transform_8(%arg0: i32) -> (i32, i32) {
    %c0_i32 = arith.constant 0 : i32
    %c0_i32_0 = arith.constant 0 : i32
    %c0_i32_1 = arith.constant 0 : i32
    return %c0_i32, %c0_i32_0 : i32, i32
  }
  func.func @transform_9(%arg0: i32) -> (i32, i32) {
    %c0_i32 = arith.constant 0 : i32
    %c0_i32_0 = arith.constant 0 : i32
    return %arg0, %c0_i32 : i32, i32
  }
}

</mosaic_0001>

<llo_original>
// kernel: tpu_custom_call.1
$region0: #{tpu_custom_call.1}
  #allocation0 [shape = 'u32[]', space=smem, size = 0x4, offset = 0x4, fixed_abs, tag = 'smem constant byte address 0x4 - core index']
  #allocation1 [shape = 'u32[144,128]{1,0:T(1,128)}', space=vmem, size = 0x12000, scoped, tag = 'internal scratch']
  #allocation2 [shape = 'f32[8,128]{1,0:T(8,128)}', space=vmem, size = 0x1000, scoped, tag = 'scratch operand']
  %s0 = inlined_call_operand.hbm [shape: f32[64,128], index: 0, kind: input, shape index: {}]
  %s1 = inlined_call_operand.hbm [shape: f32[8,128], index: 1, kind: input, shape index: {}]
  %s2 = inlined_call_operand.hbm [shape: f32[128,256], index: 2, kind: input, shape index: {}]
  %s3 = inlined_call_operand.hbm [shape: f32[128,256], index: 3, kind: input, shape index: {}]
  %s4 = inlined_call_operand.hbm [shape: f32[128,256], index: 4, kind: input, shape index: {}]
  %s5 = inlined_call_operand.hbm [shape: f32[128,768], index: 5, kind: input, shape index: {}]
  %s6 = inlined_call_operand.hbm [shape: f32[128,256], index: 6, kind: input, shape index: {}]
  %s7 = inlined_call_operand.hbm [shape: f32[128,256], index: 7, kind: input, shape index: {}]
  %s8 = inlined_call_operand.hbm [shape: f32[128,512], index: 8, kind: input, shape index: {}]
  %s9 = inlined_call_operand.hbm [shape: f32[64,128], index: 9, kind: output, shape index: {}]
  %s10 = sld [smem:[#allocation0]]
  $region109: #{tpu_custom_call.1} parent=0
    _
  %s12 = ssub.s32 1, %s10
  %s13 = scalar_select 0, %s12, %s10
  $region1: #{tpu_custom_call.1} parent=0
    #allocation3 [shape = 'u8[32768]{0}', space=vmem, size = 0x8000, scoped, tag = 'input window, operand 0']
    #allocation4 [shape = 's32[2]{0}', space=sflag, size = 0x8, scoped, tag = 'scoped memory for tpu_custom_call.1']
    #allocation5 [shape = 's32[2]{0}', space=sflag, size = 0x8, scoped, tag = 'scoped memory for tpu_custom_call.1']
    #allocation6 [shape = 'u8[4096]{0}', space=vmem, size = 0x1000, scoped, tag = 'input window, operand 1, single buffered']
    #allocation7 [shape = 's32[1]{0}', space=sflag, size = 0x4, scoped, tag = 'scoped memory for tpu_custom_call.1']
    #allocation8 [shape = 'u8[131072]{0}', space=vmem, size = 0x20000, scoped, tag = 'input window, operand 2, single buffered']
    #allocation9 [shape = 'u8[131072]{0}', space=vmem, size = 0x20000, scoped, tag = 'input window, operand 3, single buffered']
    #allocation10 [shape = 's32[1]{0}', space=sflag, size = 0x4, scoped, tag = 'scoped memory for tpu_custom_call.1']
    #allocation11 [shape = 'u8[131072]{0}', space=vmem, size = 0x20000, scoped, tag = 'input window, operand 4, single buffered']
    #allocation12 [shape = 'u8[393216]{0}', space=vmem, size = 0x60000, scoped, tag = 'input window, operand 5, single buffered']
    #allocation13 [shape = 's32[1]{0}', space=sflag, size = 0x4, scoped, tag = 'scoped memory for tpu_custom_call.1']
    #allocation14 [shape = 'u8[131072]{0}', space=vmem, size = 0x20000, scoped, tag = 'input window, operand 6, single buffered']
    #allocation15 [shape = 'u8[131072]{0}', space=vmem, size = 0x20000, scoped, tag = 'input window, operand 7, single buffered']
    #allocation16 [shape = 's32[1]{0}', space=sflag, size = 0x4, scoped, tag = 'scoped memory for tpu_custom_call.1']
    #allocation17 [shape = 'u8[262144]{0}', space=vmem, size = 0x40000, scoped, tag = 'input window, operand 8, single buffered']
    #allocation18 [shape = 'u8[32768]{0}', space=vmem, size = 0x8000, scoped, tag = 'output window, operand 0']
    %14 = vsyncpa [#allocation4], 0
    %s15 = scalar_lea.sflag [#allocation4], 1
    %16 = vsyncpa %s15, 0
    %17 = vsyncpa [#allocation7], 0
    %18 = vsyncpa [#allocation10], 0
    %19 = vsyncpa [#allocation13], 0
    %20 = vsyncpa [#allocation16], 0
    %21 = vsyncpa [#allocation5], 0
    %s22 = scalar_lea.sflag [#allocation5], 1
    %23 = vsyncpa %s22, 0
    loop: start=0, step=1, limit=4
    $region2: #{tpu_custom_call.1} parent=1 // loop_pre_header
      _
    $region3: #{tpu_custom_call.1} parent=1 // loop_header
      %s25 = sphi 0, %s29
      %p26 = scmp.ge.s32.totalorder %s25, 4
      %s35 = sphi 0, %s37
      %s38 = sphi 0, %s35
      %s39 = sphi 0, %s38
      %s55 = sphi 0, %s39
      %s59 = sphi 0, %s59
      %s61 = sphi 0, %s59
      %s62 = sphi 0, %s61
      %s76 = sphi 0, %s62
      %s80 = sphi 0, %s80
      %s82 = sphi 0, %s80
      %s83 = sphi 0, %s82
      %s97 = sphi 0, %s83
      %s101 = sphi 0, %s101
      %s103 = sphi 0, %s101
      %s104 = sphi 0, %s103
      %s118 = sphi 0, %s104
      %s122 = sphi 0, %s122
      %s124 = sphi 0, %s122
      %s125 = sphi 0, %s124
      %s139 = sphi 0, %s125
      %s143 = sphi 0, %s143
      %s145 = sphi 0, %s143
      %s146 = sphi 0, %s145
      %s160 = sphi 0, %s146
      %s164 = sphi 0, %s164
      %s166 = sphi 0, %s164
      %s167 = sphi 0, %s166
      %s181 = sphi 0, %s167
      %s185 = sphi 0, %s185
      %s187 = sphi 0, %s185
      %s188 = sphi 0, %s187
      %s202 = sphi 0, %s188
      %s206 = sphi 0, %s206
      %s208 = sphi 0, %s206
      %s209 = sphi 0, %s208
      %s223 = sphi 0, %s209
      %s229 = sphi 0, %s231
      %s232 = sphi 0, %s229
      %s233 = sphi 0, %s232
      %s249 = sphi 0, %s233
    $region4: #{tpu_custom_call.1} parent=1 // loop_header_branch
      %28 = sbr.rel (%p26) target = $region8
    $region5: #{tpu_custom_call.1} parent=1 // loop_body
      %s30 = ssub.s32 %s25, 1
      %s31 = ssub.s32 %s25, 2
      %s32 = sadd.s32 %s25, 1
      %s33 = ssub.s32 %s25, %s32
      %p34 = scmp.eq.s32.totalorder %s33, 0
      %s36 = sadd.s32 %s35, 1
      %s37 = scalar_select %p34, %s35, %s36
      %p40 = pneg %p34
      %p41 = scmp.eq.s32.totalorder %s25, 1
      %p42 = por %p40, %p41
      %p43 = scmp.ne.s32.totalorder %s35, %s38
      %p44 = scmp.eq.s32.totalorder %s25, 0
      %p45 = por %p43, %p44
      %p46 = scmp.ne.s32.totalorder %s35, %s38
      %p47 = scmp.eq.s32.totalorder %s30, 1
      %p48 = por %p46, %p47
      %p49 = scmp.ne.s32.totalorder %s38, %s39
      %p50 = scmp.eq.s32.totalorder %s30, 0
      %p51 = por %p49, %p50
      %p52 = scmp.ne.s32.totalorder %s38, %s39
      %p53 = scmp.eq.s32.totalorder %s31, 1
      %p54 = por %p52, %p53
      %p56 = scmp.ne.s32.totalorder %s39, %s55
      %p57 = scmp.eq.s32.totalorder %s31, 0
      %p58 = por %p56, %p57
      %s60 = sadd.s32 %s59, 1
      %p63 = scmp.eq.s32.totalorder %s25, 1
      %p64 = scmp.ne.s32.totalorder %s59, %s61
      %p65 = scmp.eq.s32.totalorder %s25, 0
      %p66 = por %p64, %p65
      %p67 = scmp.ne.s32.totalorder %s59, %s61
      %p68 = scmp.eq.s32.totalorder %s30, 1
      %p69 = por %p67, %p68
      %p70 = scmp.ne.s32.totalorder %s61, %s62
      %p71 = scmp.eq.s32.totalorder %s30, 0
      %p72 = por %p70, %p71
      %p73 = scmp.ne.s32.totalorder %s61, %s62
      %p74 = scmp.eq.s32.totalorder %s31, 1
      %p75 = por %p73, %p74
      %p77 = scmp.ne.s32.totalorder %s62, %s76
      %p78 = scmp.eq.s32.totalorder %s31, 0
      %p79 = por %p77, %p78
      %s81 = sadd.s32 %s80, 1
      %p84 = scmp.eq.s32.totalorder %s25, 1
      %p85 = scmp.ne.s32.totalorder %s80, %s82
      %p86 = scmp.eq.s32.totalorder %s25, 0
      %p87 = por %p85, %p86
      %p88 = scmp.ne.s32.totalorder %s80, %s82
      %p89 = scmp.eq.s32.totalorder %s30, 1
      %p90 = por %p88, %p89
      %p91 = scmp.ne.s32.totalorder %s82, %s83
      %p92 = scmp.eq.s32.totalorder %s30, 0
      %p93 = por %p91, %p92
      %p94 = scmp.ne.s32.totalorder %s82, %s83
      %p95 = scmp.eq.s32.totalorder %s31, 1
      %p96 = por %p94, %p95
      %p98 = scmp.ne.s32.totalorder %s83, %s97
      %p99 = scmp.eq.s32.totalorder %s31, 0
      %p100 = por %p98, %p99
      %s102 = sadd.s32 %s101, 1
      %p105 = scmp.eq.s32.totalorder %s25, 1
      %p106 = scmp.ne.s32.totalorder %s101, %s103
      %p107 = scmp.eq.s32.totalorder %s25, 0
      %p108 = por %p106, %p107
      %p109 = scmp.ne.s32.totalorder %s101, %s103
      %p110 = scmp.eq.s32.totalorder %s30, 1
      %p111 = por %p109, %p110
      %p112 = scmp.ne.s32.totalorder %s103, %s104
      %p113 = scmp.eq.s32.totalorder %s30, 0
      %p114 = por %p112, %p113
      %p115 = scmp.ne.s32.totalorder %s103, %s104
      %p116 = scmp.eq.s32.totalorder %s31, 1
      %p117 = por %p115, %p116
      %p119 = scmp.ne.s32.totalorder %s104, %s118
      %p120 = scmp.eq.s32.totalorder %s31, 0
      %p121 = por %p119, %p120
      %s123 = sadd.s32 %s122, 1
      %p126 = scmp.eq.s32.totalorder %s25, 1
      %p127 = scmp.ne.s32.totalorder %s122, %s124
      %p128 = scmp.eq.s32.totalorder %s25, 0
      %p129 = por %p127, %p128
      %p130 = scmp.ne.s32.totalorder %s122, %s124
      %p131 = scmp.eq.s32.totalorder %s30, 1
      %p132 = por %p130, %p131
      %p133 = scmp.ne.s32.totalorder %s124, %s125
      %p134 = scmp.eq.s32.totalorder %s30, 0
      %p135 = por %p133, %p134
      %p136 = scmp.ne.s32.totalorder %s124, %s125
      %p137 = scmp.eq.s32.totalorder %s31, 1
      %p138 = por %p136, %p137
      %p140 = scmp.ne.s32.totalorder %s125, %s139
      %p141 = scmp.eq.s32.totalorder %s31, 0
      %p142 = por %p140, %p141
      %s144 = sadd.s32 %s143, 1
      %p147 = scmp.eq.s32.totalorder %s25, 1
      %p148 = scmp.ne.s32.totalorder %s143, %s145
      %p149 = scmp.eq.s32.totalorder %s25, 0
      %p150 = por %p148, %p149
      %p151 = scmp.ne.s32.totalorder %s143, %s145
      %p152 = scmp.eq.s32.totalorder %s30, 1
      %p153 = por %p151, %p152
      %p154 = scmp.ne.s32.totalorder %s145, %s146
      %p155 = scmp.eq.s32.totalorder %s30, 0
      %p156 = por %p154, %p155
      %p157 = scmp.ne.s32.totalorder %s145, %s146
      %p158 = scmp.eq.s32.totalorder %s31, 1
      %p159 = por %p157, %p158
      %p161 = scmp.ne.s32.totalorder %s146, %s160
      %p162 = scmp.eq.s32.totalorder %s31, 0
      %p163 = por %p161, %p162
      %s165 = sadd.s32 %s164, 1
      %p168 = scmp.eq.s32.totalorder %s25, 1
      %p169 = scmp.ne.s32.totalorder %s164, %s166
      %p170 = scmp.eq.s32.totalorder %s25, 0
      %p171 = por %p169, %p170
      %p172 = scmp.ne.s32.totalorder %s164, %s166
      %p173 = scmp.eq.s32.totalorder %s30, 1
      %p174 = por %p172, %p173
      %p175 = scmp.ne.s32.totalorder %s166, %s167
      %p176 = scmp.eq.s32.totalorder %s30, 0
      %p177 = por %p175, %p176
      %p178 = scmp.ne.s32.totalorder %s166, %s167
      %p179 = scmp.eq.s32.totalorder %s31, 1
      %p180 = por %p178, %p179
      %p182 = scmp.ne.s32.totalorder %s167, %s181
      %p183 = scmp.eq.s32.totalorder %s31, 0
      %p184 = por %p182, %p183
      %s186 = sadd.s32 %s185, 1
      %p189 = scmp.eq.s32.totalorder %s25, 1
      %p190 = scmp.ne.s32.totalorder %s185, %s187
      %p191 = scmp.eq.s32.totalorder %s25, 0
      %p192 = por %p190, %p191
      %p193 = scmp.ne.s32.totalorder %s185, %s187
      %p194 = scmp.eq.s32.totalorder %s30, 1
      %p195 = por %p193, %p194
      %p196 = scmp.ne.s32.totalorder %s187, %s188
      %p197 = scmp.eq.s32.totalorder %s30, 0
      %p198 = por %p196, %p197
      %p199 = scmp.ne.s32.totalorder %s187, %s188
      %p200 = scmp.eq.s32.totalorder %s31, 1
      %p201 = por %p199, %p200
      %p203 = scmp.ne.s32.totalorder %s188, %s202
      %p204 = scmp.eq.s32.totalorder %s31, 0
      %p205 = por %p203, %p204
      %s207 = sadd.s32 %s206, 1
      %p210 = scmp.eq.s32.totalorder %s25, 1
      %p211 = scmp.ne.s32.totalorder %s206, %s208
      %p212 = scmp.eq.s32.totalorder %s25, 0
      %p213 = por %p211, %p212
      %p214 = scmp.ne.s32.totalorder %s206, %s208
      %p215 = scmp.eq.s32.totalorder %s30, 1
      %p216 = por %p214, %p215
      %p217 = scmp.ne.s32.totalorder %s208, %s209
      %p218 = scmp.eq.s32.totalorder %s30, 0
      %p219 = por %p217, %p218
      %p220 = scmp.ne.s32.totalorder %s208, %s209
      %p221 = scmp.eq.s32.totalorder %s31, 1
      %p222 = por %p220, %p221
      %p224 = scmp.ne.s32.totalorder %s209, %s223
      %p225 = scmp.eq.s32.totalorder %s31, 0
      %p226 = por %p224, %p225
      %s227 = ssub.s32 %s25, %s32
      %p228 = scmp.eq.s32.totalorder %s227, 0
      %s230 = sadd.s32 %s229, 1
      %s231 = scalar_select %p228, %s229, %s230
      %p234 = pneg %p228
      %p235 = scmp.eq.s32.totalorder %s25, 1
      %p236 = por %p234, %p235
      %p237 = scmp.ne.s32.totalorder %s229, %s232
      %p238 = scmp.eq.s32.totalorder %s25, 0
      %p239 = por %p237, %p238
      %p240 = scmp.ne.s32.totalorder %s229, %s232
      %p241 = scmp.eq.s32.totalorder %s30, 1
      %p242 = por %p240, %p241
      %p243 = scmp.ne.s32.totalorder %s232, %s233
      %p244 = scmp.eq.s32.totalorder %s30, 0
      %p245 = por %p243, %p244
      %p246 = scmp.ne.s32.totalorder %s232, %s233
      %p247 = scmp.eq.s32.totalorder %s31, 1
      %p248 = por %p246, %p247
      %p250 = scmp.ne.s32.totalorder %s233, %s249
      %p251 = scmp.eq.s32.totalorder %s31, 0
      %p252 = por %p250, %p251
      %p253 = scmp.le.s32.totalorder 1, %s25
      %p254 = scmp.lt.s32.totalorder %s25, 3
      %p255 = pnand %p253, %p254
      %p256 = pneg %p255
      // Predicated region
      $region9: #{tpu_custom_call.1} parent=5 // pred_check
        _
      $region10: #{tpu_custom_call.1} parent=5 // pred_check_branch
        %258 = sbr.rel (%p255) target = $region12
      $region11: #{tpu_custom_call.1} parent=5 // pred_region
        %s259 = ssub.s32 %s25, 1
        // Predicated region
        $region13: #{tpu_custom_call.1} parent=11 // pred_check
          %p260 = pneg %p72
        $region14: #{tpu_custom_call.1} parent=11 // pred_check_branch
          %262 = sbr.rel (%p260) target = $region16
        $region15: #{tpu_custom_call.1} parent=11 // pred_region
          %s264 = ssub.s32 128, 128
          %265 = vsyncadd [#allocation7], %s264
          %s267 = sshll.u32 [#allocation6], 4
          %s268 = int_to_ptr.vmem [resolvable:$true] %s267
          %270 = dma.hbm_to_vmem [thread:$0]  %s1, 128, %s268, [#allocation7]
        $region16: #{tpu_custom_call.1} parent=11 // pred_fallthru
          _
        // Predicated region
        $region17: #{tpu_custom_call.1} parent=11 // pred_check
          %p271 = pneg %p93
        $region18: #{tpu_custom_call.1} parent=11 // pred_check_branch
          %273 = sbr.rel (%p271) target = $region20
        $region19: #{tpu_custom_call.1} parent=11 // pred_region
          %s275 = ssub.s32 4096, 4096
          %276 = vsyncadd [#allocation7], %s275
          %s277 = sshll.u32 [#allocation8], 4
          %s278 = int_to_ptr.vmem [resolvable:$true] %s277
          %283 = dma.hbm_to_vmem [thread:$0]  %s2, 4096, %s278, [#allocation7], 256, 256, 16
        $region20: #{tpu_custom_call.1} parent=11 // pred_fallthru
          _
        // Predicated region
        $region21: #{tpu_custom_call.1} parent=11 // pred_check
          %p284 = pneg %p114
        $region22: #{tpu_custom_call.1} parent=11 // pred_check_branch
          %286 = sbr.rel (%p284) target = $region24
        $region23: #{tpu_custom_call.1} parent=11 // pred_region
          %s288 = ssub.s32 4096, 4096
          %289 = vsyncadd [#allocation10], %s288
          %s290 = sshll.u32 [#allocation9], 4
          %s291 = int_to_ptr.vmem [resolvable:$true] %s290
          %296 = dma.hbm_to_vmem [thread:$0]  %s3, 4096, %s291, [#allocation10], 256, 256, 16
        $region24: #{tpu_custom_call.1} parent=11 // pred_fallthru
          _
        // Predicated region
        $region25: #{tpu_custom_call.1} parent=11 // pred_check
          %p297 = pneg %p135
        $region26: #{tpu_custom_call.1} parent=11 // pred_check_branch
          %299 = sbr.rel (%p297) target = $region28
        $region27: #{tpu_custom_call.1} parent=11 // pred_region
          %s301 = ssub.s32 4096, 4096
          %302 = vsyncadd [#allocation10], %s301
          %s303 = sshll.u32 [#allocation11], 4
          %s304 = int_to_ptr.vmem [resolvable:$true] %s303
          %309 = dma.hbm_to_vmem [thread:$0]  %s4, 4096, %s304, [#allocation10], 256, 256, 16
        $region28: #{tpu_custom_call.1} parent=11 // pred_fallthru
          _
        // Predicated region
        $region29: #{tpu_custom_call.1} parent=11 // pred_check
          %p310 = pneg %p156
        $region30: #{tpu_custom_call.1} parent=11 // pred_check_branch
          %312 = sbr.rel (%p310) target = $region32
        $region31: #{tpu_custom_call.1} parent=11 // pred_region
          %s314 = ssub.s32 12288, 12288
          %315 = vsyncadd [#allocation13], %s314
          %s316 = sshll.u32 [#allocation12], 4
          %s317 = int_to_ptr.vmem [resolvable:$true] %s316
          %322 = dma.hbm_to_vmem [thread:$0]  %s5, 12288, %s317, [#allocation13], 768, 768, 48
        $region32: #{tpu_custom_call.1} parent=11 // pred_fallthru
          _
        // Predicated region
        $region33: #{tpu_custom_call.1} parent=11 // pred_check
          %p323 = pneg %p177
        $region34: #{tpu_custom_call.1} parent=11 // pred_check_branch
          %325 = sbr.rel (%p323) target = $region36
        $region35: #{tpu_custom_call.1} parent=11 // pred_region
          %s327 = ssub.s32 4096, 4096
          %328 = vsyncadd [#allocation13], %s327
          %s329 = sshll.u32 [#allocation14], 4
          %s330 = int_to_ptr.vmem [resolvable:$true] %s329
          %335 = dma.hbm_to_vmem [thread:$0]  %s6, 4096, %s330, [#allocation13], 256, 256, 16
        $region36: #{tpu_custom_call.1} parent=11 // pred_fallthru
          _
        // Predicated region
        $region37: #{tpu_custom_call.1} parent=11 // pred_check
          %p336 = pneg %p198
        $region38: #{tpu_custom_call.1} parent=11 // pred_check_branch
          %338 = sbr.rel (%p336) target = $region40
        $region39: #{tpu_custom_call.1} parent=11 // pred_region
          %s340 = ssub.s32 4096, 4096
          %341 = vsyncadd [#allocation16], %s340
          %s342 = sshll.u32 [#allocation15], 4
          %s343 = int_to_ptr.vmem [resolvable:$true] %s342
          %348 = dma.hbm_to_vmem [thread:$0]  %s7, 4096, %s343, [#allocation16], 256, 256, 16
        $region40: #{tpu_custom_call.1} parent=11 // pred_fallthru
          _
        // Predicated region
        $region41: #{tpu_custom_call.1} parent=11 // pred_check
          %p349 = pneg %p219
        $region42: #{tpu_custom_call.1} parent=11 // pred_check_branch
          %351 = sbr.rel (%p349) target = $region44
        $region43: #{tpu_custom_call.1} parent=11 // pred_region
          %s353 = ssub.s32 8192, 8192
          %354 = vsyncadd [#allocation16], %s353
          %s355 = sshll.u32 [#allocation17], 4
          %s356 = int_to_ptr.vmem [resolvable:$true] %s355
          %361 = dma.hbm_to_vmem [thread:$0]  %s8, 8192, %s356, [#allocation16], 512, 512, 32
        $region44: #{tpu_custom_call.1} parent=11 // pred_fallthru
          _
      $region12: #{tpu_custom_call.1} parent=5 // pred_fallthru
        _
      %p362 = scmp.lt.s32.totalorder %s25, 2
      // Predicated region
      $region45: #{tpu_custom_call.1} parent=5 // pred_check
        %p363 = pneg %p362
      $region46: #{tpu_custom_call.1} parent=5 // pred_check_branch
        %365 = sbr.rel (%p363) target = $region48
      $region47: #{tpu_custom_call.1} parent=5 // pred_region
        // Predicated region
        $region49: #{tpu_custom_call.1} parent=47 // pred_check
          %p366 = pneg %p45
        $region50: #{tpu_custom_call.1} parent=47 // pred_check_branch
          %368 = sbr.rel (%p366) target = $region52
        $region51: #{tpu_custom_call.1} parent=47 // pred_region
          %s369 = sand.u32 %s35, 1
          %s370 = scalar_lea.sflag [#allocation4], %s369
          %s371 = sand.u32 %s35, 1
          %s372 = smul.addr %s371, 32
          %s373 = scalar_lea.vmem [#allocation3], %s372
          %s374 = smul.u32 4, %s25
          %s376 = ssub.s32 512, 512
          %377 = vsyncadd %s370, %s376
          %s378 = smul.addr %s374, 128
          %s379 = scalar_lea.hbm %s0, %s378
          %s380 = sshll.u32 %s373, 4
          %s381 = int_to_ptr.vmem [resolvable:$true] %s380
          %386 = dma.hbm_to_vmem [thread:$0]  %s379, 512, %s381, %s370, 128, 128, 8
        $region52: #{tpu_custom_call.1} parent=47 // pred_fallthru
          _
      $region48: #{tpu_custom_call.1} parent=5 // pred_fallthru
        _
      %p387 = scmp.le.s32.totalorder 1, %s25
      %p388 = scmp.lt.s32.totalorder %s25, 3
      %p389 = pnand %p387, %p388
      %p390 = pneg %p389
      // Predicated region
      $region53: #{tpu_custom_call.1} parent=5 // pred_check
        _
      $region54: #{tpu_custom_call.1} parent=5 // pred_check_branch
        %392 = sbr.rel (%p389) target = $region56
      $region55: #{tpu_custom_call.1} parent=5 // pred_region
        %s393 = ssub.s32 %s25, 1
        %s394 = sand.u32 %s38, 1
        %s395 = scalar_lea.sflag [#allocation4], %s394
        %s396 = sand.u32 %s38, 1
        %s397 = smul.addr %s396, 32
        %s398 = scalar_lea.vmem [#allocation3], %s397
        // Predicated region
        $region57: #{tpu_custom_call.1} parent=55 // pred_check
          %p399 = pneg %p51
        $region58: #{tpu_custom_call.1} parent=55 // pred_check_branch
          %401 = sbr.rel (%p399) target = $region60
        $region59: #{tpu_custom_call.1} parent=55 // pred_region
          %402 = dma.done %s395, 512
        $region60: #{tpu_custom_call.1} parent=55 // pred_fallthru
          _
        // Predicated region
        $region61: #{tpu_custom_call.1} parent=55 // pred_check
          %p403 = pneg %p72
        $region62: #{tpu_custom_call.1} parent=55 // pred_check_branch
          %405 = sbr.rel (%p403) target = $region64
        $region63: #{tpu_custom_call.1} parent=55 // pred_region
          %406 = dma.done [#allocation7], 128
        $region64: #{tpu_custom_call.1} parent=55 // pred_fallthru
          _
        // Predicated region
        $region65: #{tpu_custom_call.1} parent=55 // pred_check
          %p407 = pneg %p93
        $region66: #{tpu_custom_call.1} parent=55 // pred_check_branch
          %409 = sbr.rel (%p407) target = $region68
        $region67: #{tpu_custom_call.1} parent=55 // pred_region
          %410 = dma.done [#allocation7], 4096
        $region68: #{tpu_custom_call.1} parent=55 // pred_fallthru
          _
        // Predicated region
        $region69: #{tpu_custom_call.1} parent=55 // pred_check
          %p411 = pneg %p114
        $region70: #{tpu_custom_call.1} parent=55 // pred_check_branch
          %413 = sbr.rel (%p411) target = $region72
        $region71: #{tpu_custom_call.1} parent=55 // pred_region
          %414 = dma.done [#allocation10], 4096
        $region72: #{tpu_custom_call.1} parent=55 // pred_fallthru
          _
        // Predicated region
        $region73: #{tpu_custom_call.1} parent=55 // pred_check
          %p415 = pneg %p135
        $region74: #{tpu_custom_call.1} parent=55 // pred_check_branch
          %417 = sbr.rel (%p415) target = $region76
        $region75: #{tpu_custom_call.1} parent=55 // pred_region
          %418 = dma.done [#allocation10], 4096
        $region76: #{tpu_custom_call.1} parent=55 // pred_fallthru
          _
        // Predicated region
        $region77: #{tpu_custom_call.1} parent=55 // pred_check
          %p419 = pneg %p156
        $region78: #{tpu_custom_call.1} parent=55 // pred_check_branch
          %421 = sbr.rel (%p419) target = $region80
        $region79: #{tpu_custom_call.1} parent=55 // pred_region
          %422 = dma.done [#allocation13], 12288
        $region80: #{tpu_custom_call.1} parent=55 // pred_fallthru
          _
        // Predicated region
        $region81: #{tpu_custom_call.1} parent=55 // pred_check
          %p423 = pneg %p177
        $region82: #{tpu_custom_call.1} parent=55 // pred_check_branch
          %425 = sbr.rel (%p423) target = $region84
        $region83: #{tpu_custom_call.1} parent=55 // pred_region
          %426 = dma.done [#allocation13], 4096
        $region84: #{tpu_custom_call.1} parent=55 // pred_fallthru
          _
        // Predicated region
        $region85: #{tpu_custom_call.1} parent=55 // pred_check
          %p427 = pneg %p198
        $region86: #{tpu_custom_call.1} parent=55 // pred_check_branch
          %429 = sbr.rel (%p427) target = $region88
        $region87: #{tpu_custom_call.1} parent=55 // pred_region
          %430 = dma.done [#allocation16], 4096
        $region88: #{tpu_custom_call.1} parent=55 // pred_fallthru
          _
        // Predicated region
        $region89: #{tpu_custom_call.1} parent=55 // pred_check
          %p431 = pneg %p219
        $region90: #{tpu_custom_call.1} parent=55 // pred_check_branch
          %433 = sbr.rel (%p431) target = $region92
        $region91: #{tpu_custom_call.1} parent=55 // pred_region
          %434 = dma.done [#allocation16], 8192
        $region92: #{tpu_custom_call.1} parent=55 // pred_fallthru
          _
        %s435 = sand.u32 %s38, 1
        %s436 = scalar_lea.sflag [#allocation4], %s435
        %s437 = sand.u32 %s38, 1
        %s438 = smul.addr %s437, 32
        %s439 = scalar_lea.vmem [#allocation3], %s438
        %p440 = pneg %p51
        %p441 = pneg %p48
        %p442 = pneg %p72
        %p443 = pneg %p69
        %p444 = pneg %p93
        %p445 = pneg %p90
        %p446 = pneg %p114
        %p447 = pneg %p111
        %p448 = pneg %p135
        %p449 = pneg %p132
        %p450 = pneg %p156
        %p451 = pneg %p153
        %p452 = pneg %p177
        %p453 = pneg %p174
        %p454 = pneg %p198
        %p455 = pneg %p195
        %p456 = pneg %p219
        %p457 = pneg %p216
        %p458 = pneg %p245
        %p459 = pneg %p242
        %s460 = sand.u32 %s232, 1
        %s461 = scalar_lea.sflag [#allocation5], %s460
        %s462 = sand.u32 %s232, 1
        %s463 = smul.addr %s462, 32
        %s464 = scalar_lea.vmem [#allocation18], %s463
        %s465 = smul.u32 4, %s30
        %s466 = smul.u32 4, %s30
        %p467 = scmp.eq.s32.totalorder %s30, 0
        // Predicated region
        $region93: #{tpu_custom_call.1} parent=55 // pred_check
          %p468 = pneg %p467
        $region94: #{tpu_custom_call.1} parent=55 // pred_check_branch
          %470 = sbr.rel (%p468) target = $region96
        $region95: #{tpu_custom_call.1} parent=55 // pred_region
          %v471 = vld [vmem:[#allocation6] sm:$0xff]
          %472 = vst [vmem:[#allocation2] sm:$0xff] %v471
        $region96: #{tpu_custom_call.1} parent=55 // pred_fallthru
          _
        %v473 = vld [vmem:[#allocation9] sm:$0xff]
        %v474 = vld [vmem:[#allocation9 + $0x8] sm:$0xff]
        %v475 = vld [vmem:[#allocation9 + $0x10] sm:$0xff]
        %v476 = vld [vmem:[#allocation9 + $0x18] sm:$0xff]
        %v477 = vld [vmem:[#allocation9 + $0x20] sm:$0xff]
        %v478 = vld [vmem:[#allocation9 + $0x28] sm:$0xff]
        %v479 = vld [vmem:[#allocation9 + $0x30] sm:$0xff]
        %v480 = vld [vmem:[#allocation9 + $0x38] sm:$0xff]
        %v481 = vld [vmem:[#allocation9 + $0x40] sm:$0xff]
        %v482 = vld [vmem:[#allocation9 + $0x48] sm:$0xff]
        %v483 = vld [vmem:[#allocation9 + $0x50] sm:$0xff]
        %v484 = vld [vmem:[#allocation9 + $0x58] sm:$0xff]
        %v485 = vld [vmem:[#allocation9 + $0x60] sm:$0xff]
        %v486 = vld [vmem:[#allocation9 + $0x68] sm:$0xff]
        %v487 = vld [vmem:[#allocation9 + $0x70] sm:$0xff]
        %v488 = vld [vmem:[#allocation9 + $0x78] sm:$0xff]
        %v489 = vld [vmem:[#allocation9 + $0x80] sm:$0xff]
        %v490 = vld [vmem:[#allocation9 + $0x88] sm:$0xff]
        %v491 = vld [vmem:[#allocation9 + $0x90] sm:$0xff]
        %v492 = vld [vmem:[#allocation9 + $0x98] sm:$0xff]
        %v493 = vld [vmem:[#allocation9 + $0xa0] sm:$0xff]
        %v494 = vld [vmem:[#allocation9 + $0xa8] sm:$0xff]
        %v495 = vld [vmem:[#allocation9 + $0xb0] sm:$0xff]
        %v496 = vld [vmem:[#allocation9 + $0xb8] sm:$0xff]
        %v497 = vld [vmem:[#allocation9 + $0xc0] sm:$0xff]
        %v498 = vld [vmem:[#allocation9 + $0xc8] sm:$0xff]
        %v499 = vld [vmem:[#allocation9 + $0xd0] sm:$0xff]
        %v500 = vld [vmem:[#allocation9 + $0xd8] sm:$0xff]
        %v501 = vld [vmem:[#allocation9 + $0xe0] sm:$0xff]
        %v502 = vld [vmem:[#allocation9 + $0xe8] sm:$0xff]
        %v503 = vld [vmem:[#allocation9 + $0xf0] sm:$0xff]
        %v504 = vld [vmem:[#allocation9 + $0xf8] sm:$0xff]
        %v505 = vld [vmem:[#allocation11] sm:$0xff]
        %v506 = vld [vmem:[#allocation11 + $0x8] sm:$0xff]
        %v507 = vld [vmem:[#allocation11 + $0x10] sm:$0xff]
        %v508 = vld [vmem:[#allocation11 + $0x18] sm:$0xff]
        %v509 = vld [vmem:[#allocation11 + $0x20] sm:$0xff]
        %v510 = vld [vmem:[#allocation11 + $0x28] sm:$0xff]
        %v511 = vld [vmem:[#allocation11 + $0x30] sm:$0xff]
        %v512 = vld [vmem:[#allocation11 + $0x38] sm:$0xff]
        %v513 = vld [vmem:[#allocation11 + $0x40] sm:$0xff]
        %v514 = vld [vmem:[#allocation11 + $0x48] sm:$0xff]
        %v515 = vld [vmem:[#allocation11 + $0x50] sm:$0xff]
        %v516 = vld [vmem:[#allocation11 + $0x58] sm:$0xff]
        %v517 = vld [vmem:[#allocation11 + $0x60] sm:$0xff]
        %v518 = vld [vmem:[#allocation11 + $0x68] sm:$0xff]
        %v519 = vld [vmem:[#allocation11 + $0x70] sm:$0xff]
        %v520 = vld [vmem:[#allocation11 + $0x78] sm:$0xff]
        %v521 = vld [vmem:[#allocation11 + $0x80] sm:$0xff]
        %v522 = vld [vmem:[#allocation11 + $0x88] sm:$0xff]
        %v523 = vld [vmem:[#allocation11 + $0x90] sm:$0xff]
        %v524 = vld [vmem:[#allocation11 + $0x98] sm:$0xff]
        %v525 = vld [vmem:[#allocation11 + $0xa0] sm:$0xff]
        %v526 = vld [vmem:[#allocation11 + $0xa8] sm:$0xff]
        %v527 = vld [vmem:[#allocation11 + $0xb0] sm:$0xff]
        %v528 = vld [vmem:[#allocation11 + $0xb8] sm:$0xff]
        %v529 = vld [vmem:[#allocation11 + $0xc0] sm:$0xff]
        %v530 = vld [vmem:[#allocation11 + $0xc8] sm:$0xff]
        %v531 = vld [vmem:[#allocation11 + $0xd0] sm:$0xff]
        %v532 = vld [vmem:[#allocation11 + $0xd8] sm:$0xff]
        %v533 = vld [vmem:[#allocation11 + $0xe0] sm:$0xff]
        %v534 = vld [vmem:[#allocation11 + $0xe8] sm:$0xff]
        %v535 = vld [vmem:[#allocation11 + $0xf0] sm:$0xff]
        %v536 = vld [vmem:[#allocation11 + $0xf8] sm:$0xff]
        %v537 = vld [vmem:[#allocation12] sm:$0xff]
        %v538 = vld [vmem:[#allocation12 + $0x8] sm:$0xff]
        %v539 = vld [vmem:[#allocation12 + $0x10] sm:$0xff]
        %v540 = vld [vmem:[#allocation12 + $0x18] sm:$0xff]
        %v541 = vld [vmem:[#allocation12 + $0x20] sm:$0xff]
        %v542 = vld [vmem:[#allocation12 + $0x28] sm:$0xff]
        %v543 = vld [vmem:[#allocation12 + $0x30] sm:$0xff]
        %v544 = vld [vmem:[#allocation12 + $0x38] sm:$0xff]
        %v545 = vld [vmem:[#allocation12 + $0x40] sm:$0xff]
        %v546 = vld [vmem:[#allocation12 + $0x48] sm:$0xff]
        %v547 = vld [vmem:[#allocation12 + $0x50] sm:$0xff]
        %v548 = vld [vmem:[#allocation12 + $0x58] sm:$0xff]
        %v549 = vld [vmem:[#allocation12 + $0x60] sm:$0xff]
        %v550 = vld [vmem:[#allocation12 + $0x68] sm:$0xff]
        %v551 = vld [vmem:[#allocation12 + $0x70] sm:$0xff]
        %v552 = vld [vmem:[#allocation12 + $0x78] sm:$0xff]
        %v553 = vld [vmem:[#allocation12 + $0x80] sm:$0xff]
        %v554 = vld [vmem:[#allocation12 + $0x88] sm:$0xff]
        %v555 = vld [vmem:[#allocation12 + $0x90] sm:$0xff]
        %v556 = vld [vmem:[#allocation12 + $0x98] sm:$0xff]
        %v557 = vld [vmem:[#allocation12 + $0xa0] sm:$0xff]
        %v558 = vld [vmem:[#allocation12 + $0xa8] sm:$0xff]
        %v559 = vld [vmem:[#allocation12 + $0xb0] sm:$0xff]
        %v560 = vld [vmem:[#allocation12 + $0xb8] sm:$0xff]
        %v561 = vld [vmem:[#allocation12 + $0xc0] sm:$0xff]
        %v562 = vld [vmem:[#allocation12 + $0xc8] sm:$0xff]
        %v563 = vld [vmem:[#allocation12 + $0xd0] sm:$0xff]
        %v564 = vld [vmem:[#allocation12 + $0xd8] sm:$0xff]
        %v565 = vld [vmem:[#allocation12 + $0xe0] sm:$0xff]
        %v566 = vld [vmem:[#allocation12 + $0xe8] sm:$0xff]
        %v567 = vld [vmem:[#allocation12 + $0xf0] sm:$0xff]
        %v568 = vld [vmem:[#allocation12 + $0xf8] sm:$0xff]
        %v569 = vld [vmem:[#allocation12 + $0x100] sm:$0xff]
        %v570 = vld [vmem:[#allocation12 + $0x108] sm:$0xff]
        %v571 = vld [vmem:[#allocation12 + $0x110] sm:$0xff]
        %v572 = vld [vmem:[#allocation12 + $0x118] sm:$0xff]
        %v573 = vld [vmem:[#allocation12 + $0x120] sm:$0xff]
        %v574 = vld [vmem:[#allocation12 + $0x128] sm:$0xff]
        %v575 = vld [vmem:[#allocation12 + $0x130] sm:$0xff]
        %v576 = vld [vmem:[#allocation12 + $0x138] sm:$0xff]
        %v577 = vld [vmem:[#allocation12 + $0x140] sm:$0xff]
        %v578 = vld [vmem:[#allocation12 + $0x148] sm:$0xff]
        %v579 = vld [vmem:[#allocation12 + $0x150] sm:$0xff]
        %v580 = vld [vmem:[#allocation12 + $0x158] sm:$0xff]
        %v581 = vld [vmem:[#allocation12 + $0x160] sm:$0xff]
        %v582 = vld [vmem:[#allocation12 + $0x168] sm:$0xff]
        %v583 = vld [vmem:[#allocation12 + $0x170] sm:$0xff]
        %v584 = vld [vmem:[#allocation12 + $0x178] sm:$0xff]
        %v585 = vld [vmem:[#allocation12 + $0x180] sm:$0xff]
        %v586 = vld [vmem:[#allocation12 + $0x188] sm:$0xff]
        %v587 = vld [vmem:[#allocation12 + $0x190] sm:$0xff]
        %v588 = vld [vmem:[#allocation12 + $0x198] sm:$0xff]
        %v589 = vld [vmem:[#allocation12 + $0x1a0] sm:$0xff]
        %v590 = vld [vmem:[#allocation12 + $0x1a8] sm:$0xff]
        %v591 = vld [vmem:[#allocation12 + $0x1b0] sm:$0xff]
        %v592 = vld [vmem:[#allocation12 + $0x1b8] sm:$0xff]
        %v593 = vld [vmem:[#allocation12 + $0x1c0] sm:$0xff]
        %v594 = vld [vmem:[#allocation12 + $0x1c8] sm:$0xff]
        %v595 = vld [vmem:[#allocation12 + $0x1d0] sm:$0xff]
        %v596 = vld [vmem:[#allocation12 + $0x1d8] sm:$0xff]
        %v597 = vld [vmem:[#allocation12 + $0x1e0] sm:$0xff]
        %v598 = vld [vmem:[#allocation12 + $0x1e8] sm:$0xff]
        %v599 = vld [vmem:[#allocation12 + $0x1f0] sm:$0xff]
        %v600 = vld [vmem:[#allocation12 + $0x1f8] sm:$0xff]
        %v601 = vld [vmem:[#allocation12 + $0x200] sm:$0xff]
        %v602 = vld [vmem:[#allocation12 + $0x208] sm:$0xff]
        %v603 = vld [vmem:[#allocation12 + $0x210] sm:$0xff]
        %v604 = vld [vmem:[#allocation12 + $0x218] sm:$0xff]
        %v605 = vld [vmem:[#allocation12 + $0x220] sm:$0xff]
        %v606 = vld [vmem:[#allocation12 + $0x228] sm:$0xff]
        %v607 = vld [vmem:[#allocation12 + $0x230] sm:$0xff]
        %v608 = vld [vmem:[#allocation12 + $0x238] sm:$0xff]
        %v609 = vld [vmem:[#allocation12 + $0x240] sm:$0xff]
        %v610 = vld [vmem:[#allocation12 + $0x248] sm:$0xff]
        %v611 = vld [vmem:[#allocation12 + $0x250] sm:$0xff]
        %v612 = vld [vmem:[#allocation12 + $0x258] sm:$0xff]
        %v613 = vld [vmem:[#allocation12 + $0x260] sm:$0xff]
        %v614 = vld [vmem:[#allocation12 + $0x268] sm:$0xff]
        %v615 = vld [vmem:[#allocation12 + $0x270] sm:$0xff]
        %v616 = vld [vmem:[#allocation12 + $0x278] sm:$0xff]
        %v617 = vld [vmem:[#allocation12 + $0x280] sm:$0xff]
        %v618 = vld [vmem:[#allocation12 + $0x288] sm:$0xff]
        %v619 = vld [vmem:[#allocation12 + $0x290] sm:$0xff]
        %v620 = vld [vmem:[#allocation12 + $0x298] sm:$0xff]
        %v621 = vld [vmem:[#allocation12 + $0x2a0] sm:$0xff]
        %v622 = vld [vmem:[#allocation12 + $0x2a8] sm:$0xff]
        %v623 = vld [vmem:[#allocation12 + $0x2b0] sm:$0xff]
        %v624 = vld [vmem:[#allocation12 + $0x2b8] sm:$0xff]
        %v625 = vld [vmem:[#allocation12 + $0x2c0] sm:$0xff]
        %v626 = vld [vmem:[#allocation12 + $0x2c8] sm:$0xff]
        %v627 = vld [vmem:[#allocation12 + $0x2d0] sm:$0xff]
        %v628 = vld [vmem:[#allocation12 + $0x2d8] sm:$0xff]
        %v629 = vld [vmem:[#allocation12 + $0x2e0] sm:$0xff]
        %v630 = vld [vmem:[#allocation12 + $0x2e8] sm:$0xff]
        %v631 = vld [vmem:[#allocation12 + $0x2f0] sm:$0xff]
        %v632 = vld [vmem:[#allocation12 + $0x2f8] sm:$0xff]
        %v633 = vld [vmem:[#allocation14] sm:$0xff]
        %v634 = vld [vmem:[#allocation14 + $0x8] sm:$0xff]
        %v635 = vld [vmem:[#allocation14 + $0x10] sm:$0xff]
        %v636 = vld [vmem:[#allocation14 + $0x18] sm:$0xff]
        %v637 = vld [vmem:[#allocation14 + $0x20] sm:$0xff]
        %v638 = vld [vmem:[#allocation14 + $0x28] sm:$0xff]
        %v639 = vld [vmem:[#allocation14 + $0x30] sm:$0xff]
        %v640 = vld [vmem:[#allocation14 + $0x38] sm:$0xff]
        %v641 = vld [vmem:[#allocation14 + $0x40] sm:$0xff]
        %v642 = vld [vmem:[#allocation14 + $0x48] sm:$0xff]
        %v643 = vld [vmem:[#allocation14 + $0x50] sm:$0xff]
        %v644 = vld [vmem:[#allocation14 + $0x58] sm:$0xff]
        %v645 = vld [vmem:[#allocation14 + $0x60] sm:$0xff]
        %v646 = vld [vmem:[#allocation14 + $0x68] sm:$0xff]
        %v647 = vld [vmem:[#allocation14 + $0x70] sm:$0xff]
        %v648 = vld [vmem:[#allocation14 + $0x78] sm:$0xff]
        %v649 = vld [vmem:[#allocation14 + $0x80] sm:$0xff]
        %v650 = vld [vmem:[#allocation14 + $0x88] sm:$0xff]
        %v651 = vld [vmem:[#allocation14 + $0x90] sm:$0xff]
        %v652 = vld [vmem:[#allocation14 + $0x98] sm:$0xff]
        %v653 = vld [vmem:[#allocation14 + $0xa0] sm:$0xff]
        %v654 = vld [vmem:[#allocation14 + $0xa8] sm:$0xff]
        %v655 = vld [vmem:[#allocation14 + $0xb0] sm:$0xff]
        %v656 = vld [vmem:[#allocation14 + $0xb8] sm:$0xff]
        %v657 = vld [vmem:[#allocation14 + $0xc0] sm:$0xff]
        %v658 = vld [vmem:[#allocation14 + $0xc8] sm:$0xff]
        %v659 = vld [vmem:[#allocation14 + $0xd0] sm:$0xff]
        %v660 = vld [vmem:[#allocation14 + $0xd8] sm:$0xff]
        %v661 = vld [vmem:[#allocation14 + $0xe0] sm:$0xff]
        %v662 = vld [vmem:[#allocation14 + $0xe8] sm:$0xff]
        %v663 = vld [vmem:[#allocation14 + $0xf0] sm:$0xff]
        %v664 = vld [vmem:[#allocation14 + $0xf8] sm:$0xff]
        %v665 = vld [vmem:[#allocation15] sm:$0xff]
        %v666 = vld [vmem:[#allocation15 + $0x8] sm:$0xff]
        %v667 = vld [vmem:[#allocation15 + $0x10] sm:$0xff]
        %v668 = vld [vmem:[#allocation15 + $0x18] sm:$0xff]
        %v669 = vld [vmem:[#allocation15 + $0x20] sm:$0xff]
        %v670 = vld [vmem:[#allocation15 + $0x28] sm:$0xff]
        %v671 = vld [vmem:[#allocation15 + $0x30] sm:$0xff]
        %v672 = vld [vmem:[#allocation15 + $0x38] sm:$0xff]
        %v673 = vld [vmem:[#allocation15 + $0x40] sm:$0xff]
        %v674 = vld [vmem:[#allocation15 + $0x48] sm:$0xff]
        %v675 = vld [vmem:[#allocation15 + $0x50] sm:$0xff]
        %v676 = vld [vmem:[#allocation15 + $0x58] sm:$0xff]
        %v677 = vld [vmem:[#allocation15 + $0x60] sm:$0xff]
        %v678 = vld [vmem:[#allocation15 + $0x68] sm:$0xff]
        %v679 = vld [vmem:[#allocation15 + $0x70] sm:$0xff]
        %v680 = vld [vmem:[#allocation15 + $0x78] sm:$0xff]
        %v681 = vld [vmem:[#allocation15 + $0x80] sm:$0xff]
        %v682 = vld [vmem:[#allocation15 + $0x88] sm:$0xff]
        %v683 = vld [vmem:[#allocation15 + $0x90] sm:$0xff]
        %v684 = vld [vmem:[#allocation15 + $0x98] sm:$0xff]
        %v685 = vld [vmem:[#allocation15 + $0xa0] sm:$0xff]
        %v686 = vld [vmem:[#allocation15 + $0xa8] sm:$0xff]
        %v687 = vld [vmem:[#allocation15 + $0xb0] sm:$0xff]
        %v688 = vld [vmem:[#allocation15 + $0xb8] sm:$0xff]
        %v689 = vld [vmem:[#allocation15 + $0xc0] sm:$0xff]
        %v690 = vld [vmem:[#allocation15 + $0xc8] sm:$0xff]
        %v691 = vld [vmem:[#allocation15 + $0xd0] sm:$0xff]
        %v692 = vld [vmem:[#allocation15 + $0xd8] sm:$0xff]
        %v693 = vld [vmem:[#allocation15 + $0xe0] sm:$0xff]
        %v694 = vld [vmem:[#allocation15 + $0xe8] sm:$0xff]
        %v695 = vld [vmem:[#allocation15 + $0xf0] sm:$0xff]
        %v696 = vld [vmem:[#allocation15 + $0xf8] sm:$0xff]
        %v697 = vld [vmem:[#allocation17] sm:$0xff]
        %v698 = vld [vmem:[#allocation17 + $0x8] sm:$0xff]
        %v699 = vld [vmem:[#allocation17 + $0x10] sm:$0xff]
        %v700 = vld [vmem:[#allocation17 + $0x18] sm:$0xff]
        %v701 = vld [vmem:[#allocation17 + $0x20] sm:$0xff]
        %v702 = vld [vmem:[#allocation17 + $0x28] sm:$0xff]
        %v703 = vld [vmem:[#allocation17 + $0x30] sm:$0xff]
        %v704 = vld [vmem:[#allocation17 + $0x38] sm:$0xff]
        %v705 = vld [vmem:[#allocation17 + $0x40] sm:$0xff]
        %v706 = vld [vmem:[#allocation17 + $0x48] sm:$0xff]
        %v707 = vld [vmem:[#allocation17 + $0x50] sm:$0xff]
        %v708 = vld [vmem:[#allocation17 + $0x58] sm:$0xff]
        %v709 = vld [vmem:[#allocation17 + $0x60] sm:$0xff]
        %v710 = vld [vmem:[#allocation17 + $0x68] sm:$0xff]
        %v711 = vld [vmem:[#allocation17 + $0x70] sm:$0xff]
        %v712 = vld [vmem:[#allocation17 + $0x78] sm:$0xff]
        %v713 = vld [vmem:[#allocation17 + $0x80] sm:$0xff]
        %v714 = vld [vmem:[#allocation17 + $0x88] sm:$0xff]
        %v715 = vld [vmem:[#allocation17 + $0x90] sm:$0xff]
        %v716 = vld [vmem:[#allocation17 + $0x98] sm:$0xff]
        %v717 = vld [vmem:[#allocation17 + $0xa0] sm:$0xff]
        %v718 = vld [vmem:[#allocation17 + $0xa8] sm:$0xff]
        %v719 = vld [vmem:[#allocation17 + $0xb0] sm:$0xff]
        %v720 = vld [vmem:[#allocation17 + $0xb8] sm:$0xff]
        %v721 = vld [vmem:[#allocation17 + $0xc0] sm:$0xff]
        %v722 = vld [vmem:[#allocation17 + $0xc8] sm:$0xff]
        %v723 = vld [vmem:[#allocation17 + $0xd0] sm:$0xff]
        %v724 = vld [vmem:[#allocation17 + $0xd8] sm:$0xff]
        %v725 = vld [vmem:[#allocation17 + $0xe0] sm:$0xff]
        %v726 = vld [vmem:[#allocation17 + $0xe8] sm:$0xff]
        %v727 = vld [vmem:[#allocation17 + $0xf0] sm:$0xff]
        %v728 = vld [vmem:[#allocation17 + $0xf8] sm:$0xff]
        %v729 = vld [vmem:[#allocation17 + $0x100] sm:$0xff]
        %v730 = vld [vmem:[#allocation17 + $0x108] sm:$0xff]
        %v731 = vld [vmem:[#allocation17 + $0x110] sm:$0xff]
        %v732 = vld [vmem:[#allocation17 + $0x118] sm:$0xff]
        %v733 = vld [vmem:[#allocation17 + $0x120] sm:$0xff]
        %v734 = vld [vmem:[#allocation17 + $0x128] sm:$0xff]
        %v735 = vld [vmem:[#allocation17 + $0x130] sm:$0xff]
        %v736 = vld [vmem:[#allocation17 + $0x138] sm:$0xff]
        %v737 = vld [vmem:[#allocation17 + $0x140] sm:$0xff]
        %v738 = vld [vmem:[#allocation17 + $0x148] sm:$0xff]
        %v739 = vld [vmem:[#allocation17 + $0x150] sm:$0xff]
        %v740 = vld [vmem:[#allocation17 + $0x158] sm:$0xff]
        %v741 = vld [vmem:[#allocation17 + $0x160] sm:$0xff]
        %v742 = vld [vmem:[#allocation17 + $0x168] sm:$0xff]
        %v743 = vld [vmem:[#allocation17 + $0x170] sm:$0xff]
        %v744 = vld [vmem:[#allocation17 + $0x178] sm:$0xff]
        %v745 = vld [vmem:[#allocation17 + $0x180] sm:$0xff]
        %v746 = vld [vmem:[#allocation17 + $0x188] sm:$0xff]
        %v747 = vld [vmem:[#allocation17 + $0x190] sm:$0xff]
        %v748 = vld [vmem:[#allocation17 + $0x198] sm:$0xff]
        %v749 = vld [vmem:[#allocation17 + $0x1a0] sm:$0xff]
        %v750 = vld [vmem:[#allocation17 + $0x1a8] sm:$0xff]
        %v751 = vld [vmem:[#allocation17 + $0x1b0] sm:$0xff]
        %v752 = vld [vmem:[#allocation17 + $0x1b8] sm:$0xff]
        %v753 = vld [vmem:[#allocation17 + $0x1c0] sm:$0xff]
        %v754 = vld [vmem:[#allocation17 + $0x1c8] sm:$0xff]
        %v755 = vld [vmem:[#allocation17 + $0x1d0] sm:$0xff]
        %v756 = vld [vmem:[#allocation17 + $0x1d8] sm:$0xff]
        %v757 = vld [vmem:[#allocation17 + $0x1e0] sm:$0xff]
        %v758 = vld [vmem:[#allocation17 + $0x1e8] sm:$0xff]
        %v759 = vld [vmem:[#allocation17 + $0x1f0] sm:$0xff]
        %v760 = vld [vmem:[#allocation17 + $0x1f8] sm:$0xff]
        %v761 = vld [vmem:[%s398] sm:$0xff]
        %v762 = vld [vmem:[%s398 + $0x8] sm:$0xff]
        %v763 = vld [vmem:[%s398 + $0x10] sm:$0xff]
        %v764 = vld [vmem:[%s398 + $0x18] sm:$0xff]
        %v765 = vld [vmem:[#allocation8] sm:$0xff]
        %v766 = vld [vmem:[#allocation8 + $0x8] sm:$0xff]
        %v767 = vld [vmem:[#allocation8 + $0x10] sm:$0xff]
        %v768 = vld [vmem:[#allocation8 + $0x18] sm:$0xff]
        %v769 = vld [vmem:[#allocation8 + $0x20] sm:$0xff]
        %v770 = vld [vmem:[#allocation8 + $0x28] sm:$0xff]
        %v771 = vld [vmem:[#allocation8 + $0x30] sm:$0xff]
        %v772 = vld [vmem:[#allocation8 + $0x38] sm:$0xff]
        %v773 = vld [vmem:[#allocation8 + $0x40] sm:$0xff]
        %v774 = vld [vmem:[#allocation8 + $0x48] sm:$0xff]
        %v775 = vld [vmem:[#allocation8 + $0x50] sm:$0xff]
        %v776 = vld [vmem:[#allocation8 + $0x58] sm:$0xff]
        %v777 = vld [vmem:[#allocation8 + $0x60] sm:$0xff]
        %v778 = vld [vmem:[#allocation8 + $0x68] sm:$0xff]
        %v779 = vld [vmem:[#allocation8 + $0x70] sm:$0xff]
        %v780 = vld [vmem:[#allocation8 + $0x78] sm:$0xff]
        %v781 = vld [vmem:[#allocation8 + $0x80] sm:$0xff]
        %v782 = vld [vmem:[#allocation8 + $0x88] sm:$0xff]
        %v783 = vld [vmem:[#allocation8 + $0x90] sm:$0xff]
        %v784 = vld [vmem:[#allocation8 + $0x98] sm:$0xff]
        %v785 = vld [vmem:[#allocation8 + $0xa0] sm:$0xff]
        %v786 = vld [vmem:[#allocation8 + $0xa8] sm:$0xff]
        %v787 = vld [vmem:[#allocation8 + $0xb0] sm:$0xff]
        %v788 = vld [vmem:[#allocation8 + $0xb8] sm:$0xff]
        %v789 = vld [vmem:[#allocation8 + $0xc0] sm:$0xff]
        %v790 = vld [vmem:[#allocation8 + $0xc8] sm:$0xff]
        %v791 = vld [vmem:[#allocation8 + $0xd0] sm:$0xff]
        %v792 = vld [vmem:[#allocation8 + $0xd8] sm:$0xff]
        %v793 = vld [vmem:[#allocation8 + $0xe0] sm:$0xff]
        %v794 = vld [vmem:[#allocation8 + $0xe8] sm:$0xff]
        %v795 = vld [vmem:[#allocation8 + $0xf0] sm:$0xff]
        %v796 = vld [vmem:[#allocation8 + $0xf8] sm:$0xff]
        %797 = vmatprep.subr.mxu0 %v796
        %798 = vmatpush1.msra.mxu0 %v795
        %799 = vmatprep.subr.mxu0 %v794
        %800 = vmatpush1.msra.mxu0 %v793
        %801 = vmatprep.subr.mxu0 %v792
        %802 = vmatpush1.msra.mxu0 %v791
        %803 = vmatprep.subr.mxu0 %v790
        %804 = vmatpush1.msra.mxu0 %v789
        %805 = vmatprep.subr.mxu0 %v788
        %806 = vmatpush1.msra.mxu0 %v787
        %807 = vmatprep.subr.mxu0 %v786
        %808 = vmatpush1.msra.mxu0 %v785
        %809 = vmatprep.subr.mxu0 %v784
        %810 = vmatpush1.msra.mxu0 %v783
        %811 = vmatprep.subr.mxu0 %v782
        %812 = vmatpush1.msra.mxu0 %v781
        %813 = vmatprep.subr.mxu0 %v780
        %814 = vmatpush1.msra.mxu0 %v779
        %815 = vmatprep.subr.mxu0 %v778
        %816 = vmatpush1.msra.mxu0 %v777
        %817 = vmatprep.subr.mxu0 %v776
        %818 = vmatpush1.msra.mxu0 %v775
        %819 = vmatprep.subr.mxu0 %v774
        %820 = vmatpush1.msra.mxu0 %v773
        %821 = vmatprep.subr.mxu0 %v772
        %822 = vmatpush1.msra.mxu0 %v771
        %823 = vmatprep.subr.mxu0 %v770
        %824 = vmatpush1.msra.mxu0 %v769
        %825 = vmatprep.subr.mxu0 %v768
        %826 = vmatpush1.msra.mxu0 %v767
        %827 = vmatprep.subr.mxu0 %v766
        %828 = vmatpush1.msra.mxu0 %v765
        %829 = vmatprep.subr.mxu0 0.0
        %830 = vmatpush2.msra.mxu0 0.0
        %831 = vmatprep.subr.mxu0 0.0
        %832 = vmatpush2.msra.mxu0 0.0
        %833 = vmatprep.subr.mxu0 0.0
        %834 = vmatpush2.msra.mxu0 0.0
        %835 = vmatprep.subr.mxu0 0.0
        %836 = vmatpush2.msra.mxu0 0.0
        %837 = vmatprep.subr.mxu0 0.0
        %838 = vmatpush2.msra.mxu0 0.0
        %839 = vmatprep.subr.mxu0 0.0
        %840 = vmatpush2.msra.mxu0 0.0
        %841 = vmatprep.subr.mxu0 0.0
        %842 = vmatpush2.msra.mxu0 0.0
        %843 = vmatprep.subr.mxu0 0.0
        %844 = vmatpush2.msra.mxu0 0.0
        %845 = vmatprep.subr.mxu0 0.0
        %846 = vmatpush2.msra.mxu0 0.0
        %847 = vmatprep.subr.mxu0 0.0
        %848 = vmatpush2.msra.mxu0 0.0
        %849 = vmatprep.subr.mxu0 0.0
        %850 = vmatpush2.msra.mxu0 0.0
        %851 = vmatprep.subr.mxu0 0.0
        %852 = vmatpush2.msra.mxu0 0.0
        %853 = vmatprep.subr.mxu0 0.0
        %854 = vmatpush2.msra.mxu0 0.0
        %855 = vmatprep.subr.mxu0 0.0
        %856 = vmatpush2.msra.mxu0 0.0
        %857 = vmatprep.subr.mxu0 0.0
        %858 = vmatpush2.msra.mxu0 0.0
        %859 = vmatprep.subr.mxu0 0.0
        %860 = vmatpush2.msra.mxu0 0.0
        %861 = vmatprep.mubr.f32.mxu0 0.0
        %862 = vmatmul.mubr.f32.gmra.mxu0 %v761
        %v863 = vpop.f32.mrf.mxu0
        %v864 = vadd.f32 0.0, %v863
        %v865 = vpop.f32.mrf.mxu0
        %v866 = vadd.f32 0.0, %v865
        %867 = vmatprep.mubr.f32.mxu0 0.0
        %868 = vmatmul.mubr.f32.gmra.mxu0 %v762
        %v869 = vpop.f32.mrf.mxu0
        %v870 = vadd.f32 0.0, %v869
        %v871 = vpop.f32.mrf.mxu0
        %v872 = vadd.f32 0.0, %v871
        %873 = vmatprep.mubr.f32.mxu0 0.0
        %874 = vmatmul.mubr.f32.gmra.mxu0 %v763
        %v875 = vpop.f32.mrf.mxu0
        %v876 = vadd.f32 0.0, %v875
        %v877 = vpop.f32.mrf.mxu0
        %v878 = vadd.f32 0.0, %v877
        %879 = vmatprep.mubr.f32.mxu0 0.0
        %880 = vmatmul.mubr.f32.gmra.mxu0 %v764
        %v881 = vpop.f32.mrf.mxu0
        %v882 = vadd.f32 0.0, %v881
        %v883 = vpop.f32.mrf.mxu0
        %v884 = vadd.f32 0.0, %v883
        %885 = vdwg.mxu0
        %v886 = vld [vmem:[#allocation2] sm:$0xff]
        %887 = vmatprep.subr.mxu0 %v504
        %888 = vmatpush1.msra.mxu0 %v503
        %889 = vmatprep.subr.mxu0 %v502
        %890 = vmatpush1.msra.mxu0 %v501
        %891 = vmatprep.subr.mxu0 %v500
        %892 = vmatpush1.msra.mxu0 %v499
        %893 = vmatprep.subr.mxu0 %v498
        %894 = vmatpush1.msra.mxu0 %v497
        %895 = vmatprep.subr.mxu0 %v496
        %896 = vmatpush1.msra.mxu0 %v495
        %897 = vmatprep.subr.mxu0 %v494
        %898 = vmatpush1.msra.mxu0 %v493
        %899 = vmatprep.subr.mxu0 %v492
        %900 = vmatpush1.msra.mxu0 %v491
        %901 = vmatprep.subr.mxu0 %v490
        %902 = vmatpush1.msra.mxu0 %v489
        %903 = vmatprep.subr.mxu0 %v488
        %904 = vmatpush1.msra.mxu0 %v487
        %905 = vmatprep.subr.mxu0 %v486
        %906 = vmatpush1.msra.mxu0 %v485
        %907 = vmatprep.subr.mxu0 %v484
        %908 = vmatpush1.msra.mxu0 %v483
        %909 = vmatprep.subr.mxu0 %v482
        %910 = vmatpush1.msra.mxu0 %v481
        %911 = vmatprep.subr.mxu0 %v480
        %912 = vmatpush1.msra.mxu0 %v479
        %913 = vmatprep.subr.mxu0 %v478
        %914 = vmatpush1.msra.mxu0 %v477
        %915 = vmatprep.subr.mxu0 %v476
        %916 = vmatpush1.msra.mxu0 %v475
        %917 = vmatprep.subr.mxu0 %v474
        %918 = vmatpush1.msra.mxu0 %v473
        %919 = vmatprep.subr.mxu0 0.0
        %920 = vmatpush2.msra.mxu0 0.0
        %921 = vmatprep.subr.mxu0 0.0
        %922 = vmatpush2.msra.mxu0 0.0
        %923 = vmatprep.subr.mxu0 0.0
        %924 = vmatpush2.msra.mxu0 0.0
        %925 = vmatprep.subr.mxu0 0.0
        %926 = vmatpush2.msra.mxu0 0.0
        %927 = vmatprep.subr.mxu0 0.0
        %928 = vmatpush2.msra.mxu0 0.0
        %929 = vmatprep.subr.mxu0 0.0
        %930 = vmatpush2.msra.mxu0 0.0
        %931 = vmatprep.subr.mxu0 0.0
        %932 = vmatpush2.msra.mxu0 0.0
        %933 = vmatprep.subr.mxu0 0.0
        %934 = vmatpush2.msra.mxu0 0.0
        %935 = vmatprep.subr.mxu0 0.0
        %936 = vmatpush2.msra.mxu0 0.0
        %937 = vmatprep.subr.mxu0 0.0
        %938 = vmatpush2.msra.mxu0 0.0
        %939 = vmatprep.subr.mxu0 0.0
        %940 = vmatpush2.msra.mxu0 0.0
        %941 = vmatprep.subr.mxu0 0.0
        %942 = vmatpush2.msra.mxu0 0.0
        %943 = vmatprep.subr.mxu0 0.0
        %944 = vmatpush2.msra.mxu0 0.0
        %945 = vmatprep.subr.mxu0 0.0
        %946 = vmatpush2.msra.mxu0 0.0
        %947 = vmatprep.subr.mxu0 0.0
        %948 = vmatpush2.msra.mxu0 0.0
        %949 = vmatprep.subr.mxu0 0.0
        %950 = vmatpush2.msra.mxu0 0.0
        %951 = vmatprep.mubr.f32.mxu0 0.0
        %952 = vmatmul.mubr.f32.gmra.mxu0 %v886
        %v953 = vpop.f32.mrf.mxu0
        %v954 = vadd.f32 0.0, %v953
        %v955 = vpop.f32.mrf.mxu0
        %v956 = vadd.f32 0.0, %v955
        %957 = vdwg.mxu0
        %v958 = vadd.f32 %v864, %v954
        %v959 = vadd.f32 %v866, %v956
        %v960 = vxor.u32 %v958, 2147483648
        %v961 = vmul.f32 %v960, 1.442695
        %v962 = vpow.pop %v961
        %v963 = vadd.f32 %v962, 1.0
        %v964 = vrcp.pop %v963
        %v965 = vmul.f32 1.0, %v964
        %v966 = vtanh.pop %v959
        %v967 = vsub.f32 %v966, %v886
        %v968 = vmul.f32 %v965, %v967
        %v969 = vadd.f32 %v886, %v968
        %970 = vmatprep.subr.mxu0 %v536
        %971 = vmatpush1.msra.mxu0 %v535
        %972 = vmatprep.subr.mxu0 %v534
        %973 = vmatpush1.msra.mxu0 %v533
        %974 = vmatprep.subr.mxu0 %v532
        %975 = vmatpush1.msra.mxu0 %v531
        %976 = vmatprep.subr.mxu0 %v530
        %977 = vmatpush1.msra.mxu0 %v529
        %978 = vmatprep.subr.mxu0 %v528
        %979 = vmatpush1.msra.mxu0 %v527
        %980 = vmatprep.subr.mxu0 %v526
        %981 = vmatpush1.msra.mxu0 %v525
        %982 = vmatprep.subr.mxu0 %v524
        %983 = vmatpush1.msra.mxu0 %v523
        %984 = vmatprep.subr.mxu0 %v522
        %985 = vmatpush1.msra.mxu0 %v521
        %986 = vmatprep.subr.mxu0 %v520
        %987 = vmatpush1.msra.mxu0 %v519
        %988 = vmatprep.subr.mxu0 %v518
        %989 = vmatpush1.msra.mxu0 %v517
        %990 = vmatprep.subr.mxu0 %v516
        %991 = vmatpush1.msra.mxu0 %v515
        %992 = vmatprep.subr.mxu0 %v514
        %993 = vmatpush1.msra.mxu0 %v513
        %994 = vmatprep.subr.mxu0 %v512
        %995 = vmatpush1.msra.mxu0 %v511
        %996 = vmatprep.subr.mxu0 %v510
        %997 = vmatpush1.msra.mxu0 %v509
        %998 = vmatprep.subr.mxu0 %v508
        %999 = vmatpush1.msra.mxu0 %v507
        %1000 = vmatprep.subr.mxu0 %v506
        %1001 = vmatpush1.msra.mxu0 %v505
        %1002 = vmatprep.subr.mxu0 0.0
        %1003 = vmatpush2.msra.mxu0 0.0
        %1004 = vmatprep.subr.mxu0 0.0
        %1005 = vmatpush2.msra.mxu0 0.0
        %1006 = vmatprep.subr.mxu0 0.0
        %1007 = vmatpush2.msra.mxu0 0.0
        %1008 = vmatprep.subr.mxu0 0.0
        %1009 = vmatpush2.msra.mxu0 0.0
        %1010 = vmatprep.subr.mxu0 0.0
        %1011 = vmatpush2.msra.mxu0 0.0
        %1012 = vmatprep.subr.mxu0 0.0
        %1013 = vmatpush2.msra.mxu0 0.0
        %1014 = vmatprep.subr.mxu0 0.0
        %1015 = vmatpush2.msra.mxu0 0.0
        %1016 = vmatprep.subr.mxu0 0.0
        %1017 = vmatpush2.msra.mxu0 0.0
        %1018 = vmatprep.subr.mxu0 0.0
        %1019 = vmatpush2.msra.mxu0 0.0
        %1020 = vmatprep.subr.mxu0 0.0
        %1021 = vmatpush2.msra.mxu0 0.0
        %1022 = vmatprep.subr.mxu0 0.0
        %1023 = vmatpush2.msra.mxu0 0.0
        %1024 = vmatprep.subr.mxu0 0.0
        %1025 = vmatpush2.msra.mxu0 0.0
        %1026 = vmatprep.subr.mxu0 0.0
        %1027 = vmatpush2.msra.mxu0 0.0
        %1028 = vmatprep.subr.mxu0 0.0
        %1029 = vmatpush2.msra.mxu0 0.0
        %1030 = vmatprep.subr.mxu0 0.0
        %1031 = vmatpush2.msra.mxu0 0.0
        %1032 = vmatprep.subr.mxu0 0.0
        %1033 = vmatpush2.msra.mxu0 0.0
        %1034 = vmatprep.mubr.f32.mxu0 0.0
        %1035 = vmatmul.mubr.f32.gmra.mxu0 %v969
        %v1036 = vpop.f32.mrf.mxu0
        %v1037 = vadd.f32 0.0, %v1036
        %v1038 = vpop.f32.mrf.mxu0
        %v1039 = vadd.f32 0.0, %v1038
        %1040 = vdwg.mxu0
        %v1041 = vxor.u32 %v1037, 2147483648
        %v1042 = vmul.f32 %v1041, 1.442695
        %v1043 = vpow.pop %v1042
        %v1044 = vadd.f32 %v1043, 1.0
        %v1045 = vrcp.pop %v1044
        %v1046 = vmul.f32 1.0, %v1045
        %v1047 = vxor.u32 %v1039, 2147483648
        %v1048 = vmul.f32 %v1047, 1.442695
        %v1049 = vpow.pop %v1048
        %v1050 = vadd.f32 %v1049, 1.0
        %v1051 = vrcp.pop %v1050
        %v1052 = vmul.f32 1.0, %v1051
        %v1053 = vsub.f32 %v1052, %v969
        %v1054 = vmul.f32 %v1046, %v1053
        %v1055 = vadd.f32 %v969, %v1054
        %1056 = vmatprep.subr.mxu0 %v628
        %1057 = vmatpush1.msra.mxu0 %v627
        %1058 = vmatprep.subr.mxu0 %v622
        %1059 = vmatpush1.msra.mxu0 %v621
        %1060 = vmatprep.subr.mxu0 %v616
        %1061 = vmatpush1.msra.mxu0 %v615
        %1062 = vmatprep.subr.mxu0 %v610
        %1063 = vmatpush1.msra.mxu0 %v609
        %1064 = vmatprep.subr.mxu0 %v604
        %1065 = vmatpush1.msra.mxu0 %v603
        %1066 = vmatprep.subr.mxu0 %v598
        %1067 = vmatpush1.msra.mxu0 %v597
        %1068 = vmatprep.subr.mxu0 %v592
        %1069 = vmatpush1.msra.mxu0 %v591
        %1070 = vmatprep.subr.mxu0 %v586
        %1071 = vmatpush1.msra.mxu0 %v585
        %1072 = vmatprep.subr.mxu0 %v580
        %1073 = vmatpush1.msra.mxu0 %v579
        %1074 = vmatprep.subr.mxu0 %v574
        %1075 = vmatpush1.msra.mxu0 %v573
        %1076 = vmatprep.subr.mxu0 %v568
        %1077 = vmatpush1.msra.mxu0 %v567
        %1078 = vmatprep.subr.mxu0 %v562
        %1079 = vmatpush1.msra.mxu0 %v561
        %1080 = vmatprep.subr.mxu0 %v556
        %1081 = vmatpush1.msra.mxu0 %v555
        %1082 = vmatprep.subr.mxu0 %v550
        %1083 = vmatpush1.msra.mxu0 %v549
        %1084 = vmatprep.subr.mxu0 %v544
        %1085 = vmatpush1.msra.mxu0 %v543
        %1086 = vmatprep.subr.mxu0 %v538
        %1087 = vmatpush1.msra.mxu0 %v537
        %1088 = vmatprep.subr.mxu0 0.0
        %1089 = vmatpush2.msra.mxu0 0.0
        %1090 = vmatprep.subr.mxu0 0.0
        %1091 = vmatpush2.msra.mxu0 0.0
        %1092 = vmatprep.subr.mxu0 0.0
        %1093 = vmatpush2.msra.mxu0 0.0
        %1094 = vmatprep.subr.mxu0 0.0
        %1095 = vmatpush2.msra.mxu0 0.0
        %1096 = vmatprep.subr.mxu0 0.0
        %1097 = vmatpush2.msra.mxu0 0.0
        %1098 = vmatprep.subr.mxu0 0.0
        %1099 = vmatpush2.msra.mxu0 0.0
        %1100 = vmatprep.subr.mxu0 0.0
        %1101 = vmatpush2.msra.mxu0 0.0
        %1102 = vmatprep.subr.mxu0 0.0
        %1103 = vmatpush2.msra.mxu0 0.0
        %1104 = vmatprep.subr.mxu0 0.0
        %1105 = vmatpush2.msra.mxu0 0.0
        %1106 = vmatprep.subr.mxu0 0.0
        %1107 = vmatpush2.msra.mxu0 0.0
        %1108 = vmatprep.subr.mxu0 0.0
        %1109 = vmatpush2.msra.mxu0 0.0
        %1110 = vmatprep.subr.mxu0 0.0
        %1111 = vmatpush2.msra.mxu0 0.0
        %1112 = vmatprep.subr.mxu0 0.0
        %1113 = vmatpush2.msra.mxu0 0.0
        %1114 = vmatprep.subr.mxu0 0.0
        %1115 = vmatpush2.msra.mxu0 0.0
        %1116 = vmatprep.subr.mxu0 0.0
        %1117 = vmatpush2.msra.mxu0 0.0
        %1118 = vmatprep.subr.mxu0 0.0
        %1119 = vmatpush2.msra.mxu0 0.0
        %1120 = vmatprep.mubr.f32.mxu0 0.0
        %1121 = vmatmul.mubr.f32.gmra.mxu0 %v1055
        %v1122 = vpop.f32.mrf.mxu0
        %v1123 = vadd.f32 0.0, %v1122
        %v1124 = vpop.f32.mrf.mxu0
        %v1125 = vadd.f32 0.0, %v1124
        %1126 = vdwg.mxu0
        %1127 = vmatprep.subr.mxu0 %v630
        %1128 = vmatpush1.msra.mxu0 %v629
        %1129 = vmatprep.subr.mxu0 %v624
        %1130 = vmatpush1.msra.mxu0 %v623
        %1131 = vmatprep.subr.mxu0 %v618
        %1132 = vmatpush1.msra.mxu0 %v617
        %1133 = vmatprep.subr.mxu0 %v612
        %1134 = vmatpush1.msra.mxu0 %v611
        %1135 = vmatprep.subr.mxu0 %v606
        %1136 = vmatpush1.msra.mxu0 %v605
        %1137 = vmatprep.subr.mxu0 %v600
        %1138 = vmatpush1.msra.mxu0 %v599
        %1139 = vmatprep.subr.mxu0 %v594
        %1140 = vmatpush1.msra.mxu0 %v593
        %1141 = vmatprep.subr.mxu0 %v588
        %1142 = vmatpush1.msra.mxu0 %v587
        %1143 = vmatprep.subr.mxu0 %v582
        %1144 = vmatpush1.msra.mxu0 %v581
        %1145 = vmatprep.subr.mxu0 %v576
        %1146 = vmatpush1.msra.mxu0 %v575
        %1147 = vmatprep.subr.mxu0 %v570
        %1148 = vmatpush1.msra.mxu0 %v569
        %1149 = vmatprep.subr.mxu0 %v564
        %1150 = vmatpush1.msra.mxu0 %v563
        %1151 = vmatprep.subr.mxu0 %v558
        %1152 = vmatpush1.msra.mxu0 %v557
        %1153 = vmatprep.subr.mxu0 %v552
        %1154 = vmatpush1.msra.mxu0 %v551
        %1155 = vmatprep.subr.mxu0 %v546
        %1156 = vmatpush1.msra.mxu0 %v545
        %1157 = vmatprep.subr.mxu0 %v540
        %1158 = vmatpush1.msra.mxu0 %v539
        %1159 = vmatprep.subr.mxu0 0.0
        %1160 = vmatpush2.msra.mxu0 0.0
        %1161 = vmatprep.subr.mxu0 0.0
        %1162 = vmatpush2.msra.mxu0 0.0
        %1163 = vmatprep.subr.mxu0 0.0
        %1164 = vmatpush2.msra.mxu0 0.0
        %1165 = vmatprep.subr.mxu0 0.0
        %1166 = vmatpush2.msra.mxu0 0.0
        %1167 = vmatprep.subr.mxu0 0.0
        %1168 = vmatpush2.msra.mxu0 0.0
        %1169 = vmatprep.subr.mxu0 0.0
        %1170 = vmatpush2.msra.mxu0 0.0
        %1171 = vmatprep.subr.mxu0 0.0
        %1172 = vmatpush2.msra.mxu0 0.0
        %1173 = vmatprep.subr.mxu0 0.0
        %1174 = vmatpush2.msra.mxu0 0.0
        %1175 = vmatprep.subr.mxu0 0.0
        %1176 = vmatpush2.msra.mxu0 0.0
        %1177 = vmatprep.subr.mxu0 0.0
        %1178 = vmatpush2.msra.mxu0 0.0
        %1179 = vmatprep.subr.mxu0 0.0
        %1180 = vmatpush2.msra.mxu0 0.0
        %1181 = vmatprep.subr.mxu0 0.0
        %1182 = vmatpush2.msra.mxu0 0.0
        %1183 = vmatprep.subr.mxu0 0.0
        %1184 = vmatpush2.msra.mxu0 0.0
        %1185 = vmatprep.subr.mxu0 0.0
        %1186 = vmatpush2.msra.mxu0 0.0
        %1187 = vmatprep.subr.mxu0 0.0
        %1188 = vmatpush2.msra.mxu0 0.0
        %1189 = vmatprep.subr.mxu0 0.0
        %1190 = vmatpush2.msra.mxu0 0.0
        %1191 = vmatprep.mubr.f32.mxu0 0.0
        %1192 = vmatmul.mubr.f32.gmra.mxu0 %v1055
        %v1193 = vpop.f32.mrf.mxu0
        %v1194 = vadd.f32 0.0, %v1193
        %v1195 = vpop.f32.mrf.mxu0
        %v1196 = vadd.f32 0.0, %v1195
        %1197 = vdwg.mxu0
        %1198 = vmatprep.subr.mxu0 %v632
        %1199 = vmatpush1.msra.mxu0 %v631
        %1200 = vmatprep.subr.mxu0 %v626
        %1201 = vmatpush1.msra.mxu0 %v625
        %1202 = vmatprep.subr.mxu0 %v620
        %1203 = vmatpush1.msra.mxu0 %v619
        %1204 = vmatprep.subr.mxu0 %v614
        %1205 = vmatpush1.msra.mxu0 %v613
        %1206 = vmatprep.subr.mxu0 %v608
        %1207 = vmatpush1.msra.mxu0 %v607
        %1208 = vmatprep.subr.mxu0 %v602
        %1209 = vmatpush1.msra.mxu0 %v601
        %1210 = vmatprep.subr.mxu0 %v596
        %1211 = vmatpush1.msra.mxu0 %v595
        %1212 = vmatprep.subr.mxu0 %v590
        %1213 = vmatpush1.msra.mxu0 %v589
        %1214 = vmatprep.subr.mxu0 %v584
        %1215 = vmatpush1.msra.mxu0 %v583
        %1216 = vmatprep.subr.mxu0 %v578
        %1217 = vmatpush1.msra.mxu0 %v577
        %1218 = vmatprep.subr.mxu0 %v572
        %1219 = vmatpush1.msra.mxu0 %v571
        %1220 = vmatprep.subr.mxu0 %v566
        %1221 = vmatpush1.msra.mxu0 %v565
        %1222 = vmatprep.subr.mxu0 %v560
        %1223 = vmatpush1.msra.mxu0 %v559
        %1224 = vmatprep.subr.mxu0 %v554
        %1225 = vmatpush1.msra.mxu0 %v553
        %1226 = vmatprep.subr.mxu0 %v548
        %1227 = vmatpush1.msra.mxu0 %v547
        %1228 = vmatprep.subr.mxu0 %v542
        %1229 = vmatpush1.msra.mxu0 %v541
        %1230 = vmatprep.subr.mxu0 0.0
        %1231 = vmatpush2.msra.mxu0 0.0
        %1232 = vmatprep.subr.mxu0 0.0
        %1233 = vmatpush2.msra.mxu0 0.0
        %1234 = vmatprep.subr.mxu0 0.0
        %1235 = vmatpush2.msra.mxu0 0.0
        %1236 = vmatprep.subr.mxu0 0.0
        %1237 = vmatpush2.msra.mxu0 0.0
        %1238 = vmatprep.subr.mxu0 0.0
        %1239 = vmatpush2.msra.mxu0 0.0
        %1240 = vmatprep.subr.mxu0 0.0
        %1241 = vmatpush2.msra.mxu0 0.0
        %1242 = vmatprep.subr.mxu0 0.0
        %1243 = vmatpush2.msra.mxu0 0.0
        %1244 = vmatprep.subr.mxu0 0.0
        %1245 = vmatpush2.msra.mxu0 0.0
        %1246 = vmatprep.subr.mxu0 0.0
        %1247 = vmatpush2.msra.mxu0 0.0
        %1248 = vmatprep.subr.mxu0 0.0
        %1249 = vmatpush2.msra.mxu0 0.0
        %1250 = vmatprep.subr.mxu0 0.0
        %1251 = vmatpush2.msra.mxu0 0.0
        %1252 = vmatprep.subr.mxu0 0.0
        %1253 = vmatpush2.msra.mxu0 0.0
        %1254 = vmatprep.subr.mxu0 0.0
        %1255 = vmatpush2.msra.mxu0 0.0
        %1256 = vmatprep.subr.mxu0 0.0
        %1257 = vmatpush2.msra.mxu0 0.0
        %1258 = vmatprep.subr.mxu0 0.0
        %1259 = vmatpush2.msra.mxu0 0.0
        %1260 = vmatprep.subr.mxu0 0.0
        %1261 = vmatpush2.msra.mxu0 0.0
        %1262 = vmatprep.mubr.f32.mxu0 0.0
        %1263 = vmatmul.mubr.f32.gmra.mxu0 %v1055
        %v1264 = vpop.f32.mrf.mxu0
        %v1265 = vadd.f32 0.0, %v1264
        %v1266 = vpop.f32.mrf.mxu0
        %v1267 = vadd.f32 0.0, %v1266
        %1268 = vdwg.mxu0
        %v1269 = vxor.u32 %v1123, 2147483648
        %v1270 = vmul.f32 %v1269, 1.442695
        %v1271 = vpow.pop %v1270
        %v1272 = vadd.f32 %v1271, 1.0
        %v1273 = vrcp.pop %v1272
        %v1274 = vmul.f32 1.0, %v1273
        %v1275 = vmax.f32 %v1125, 0.0
        %v1276 = vsub.f32 %v1275, %v1055
        %v1277 = vmul.f32 %v1274, %v1276
        %v1278 = vadd.f32 %v1055, %v1277
        %v1279 = vadd.f32 %v1055, %v1278
        %v1280 = vxor.u32 %v1194, 2147483648
        %v1281 = vmul.f32 %v1280, 1.442695
        %v1282 = vpow.pop %v1281
        %v1283 = vadd.f32 %v1282, 1.0
        %v1284 = vrcp.pop %v1283
        %v1285 = vmul.f32 1.0, %v1284
        %v1286 = vmax.f32 %v1196, 0.0
        %v1287 = vsub.f32 %v1286, %v1055
        %v1288 = vmul.f32 %v1285, %v1287
        %v1289 = vadd.f32 %v1055, %v1288
        %v1290 = vadd.f32 %v1279, %v1289
        %v1291 = vxor.u32 %v1265, 2147483648
        %v1292 = vmul.f32 %v1291, 1.442695
        %v1293 = vpow.pop %v1292
        %v1294 = vadd.f32 %v1293, 1.0
        %v1295 = vrcp.pop %v1294
        %v1296 = vmul.f32 1.0, %v1295
        %v1297 = vsub.f32 %v1267, %v1055
        %v1298 = vmul.f32 %v1296, %v1297
        %v1299 = vadd.f32 %v1055, %v1298
        %v1300 = vadd.f32 %v1290, %v1299
        %1301 = vmatprep.subr.mxu0 %v664
        %1302 = vmatpush1.msra.mxu0 %v663
        %1303 = vmatprep.subr.mxu0 %v662
        %1304 = vmatpush1.msra.mxu0 %v661
        %1305 = vmatprep.subr.mxu0 %v660
        %1306 = vmatpush1.msra.mxu0 %v659
        %1307 = vmatprep.subr.mxu0 %v658
        %1308 = vmatpush1.msra.mxu0 %v657
        %1309 = vmatprep.subr.mxu0 %v656
        %1310 = vmatpush1.msra.mxu0 %v655
        %1311 = vmatprep.subr.mxu0 %v654
        %1312 = vmatpush1.msra.mxu0 %v653
        %1313 = vmatprep.subr.mxu0 %v652
        %1314 = vmatpush1.msra.mxu0 %v651
        %1315 = vmatprep.subr.mxu0 %v650
        %1316 = vmatpush1.msra.mxu0 %v649
        %1317 = vmatprep.subr.mxu0 %v648
        %1318 = vmatpush1.msra.mxu0 %v647
        %1319 = vmatprep.subr.mxu0 %v646
        %1320 = vmatpush1.msra.mxu0 %v645
        %1321 = vmatprep.subr.mxu0 %v644
        %1322 = vmatpush1.msra.mxu0 %v643
        %1323 = vmatprep.subr.mxu0 %v642
        %1324 = vmatpush1.msra.mxu0 %v641
        %1325 = vmatprep.subr.mxu0 %v640
        %1326 = vmatpush1.msra.mxu0 %v639
        %1327 = vmatprep.subr.mxu0 %v638
        %1328 = vmatpush1.msra.mxu0 %v637
        %1329 = vmatprep.subr.mxu0 %v636
        %1330 = vmatpush1.msra.mxu0 %v635
        %1331 = vmatprep.subr.mxu0 %v634
        %1332 = vmatpush1.msra.mxu0 %v633
        %1333 = vmatprep.subr.mxu0 0.0
        %1334 = vmatpush2.msra.mxu0 0.0
        %1335 = vmatprep.subr.mxu0 0.0
        %1336 = vmatpush2.msra.mxu0 0.0
        %1337 = vmatprep.subr.mxu0 0.0
        %1338 = vmatpush2.msra.mxu0 0.0
        %1339 = vmatprep.subr.mxu0 0.0
        %1340 = vmatpush2.msra.mxu0 0.0
        %1341 = vmatprep.subr.mxu0 0.0
        %1342 = vmatpush2.msra.mxu0 0.0
        %1343 = vmatprep.subr.mxu0 0.0
        %1344 = vmatpush2.msra.mxu0 0.0
        %1345 = vmatprep.subr.mxu0 0.0
        %1346 = vmatpush2.msra.mxu0 0.0
        %1347 = vmatprep.subr.mxu0 0.0
        %1348 = vmatpush2.msra.mxu0 0.0
        %1349 = vmatprep.subr.mxu0 0.0
        %1350 = vmatpush2.msra.mxu0 0.0
        %1351 = vmatprep.subr.mxu0 0.0
        %1352 = vmatpush2.msra.mxu0 0.0
        %1353 = vmatprep.subr.mxu0 0.0
        %1354 = vmatpush2.msra.mxu0 0.0
        %1355 = vmatprep.subr.mxu0 0.0
        %1356 = vmatpush2.msra.mxu0 0.0
        %1357 = vmatprep.subr.mxu0 0.0
        %1358 = vmatpush2.msra.mxu0 0.0
        %1359 = vmatprep.subr.mxu0 0.0
        %1360 = vmatpush2.msra.mxu0 0.0
        %1361 = vmatprep.subr.mxu0 0.0
        %1362 = vmatpush2.msra.mxu0 0.0
        %1363 = vmatprep.subr.mxu0 0.0
        %1364 = vmatpush2.msra.mxu0 0.0
        %1365 = vmatprep.mubr.f32.mxu0 0.0
        %1366 = vmatmul.mubr.f32.gmra.mxu0 %v1278
        %v1367 = vpop.f32.mrf.mxu0
        %v1368 = vadd.f32 0.0, %v1367
        %v1369 = vpop.f32.mrf.mxu0
        %v1370 = vadd.f32 0.0, %v1369
        %1371 = vdwg.mxu0
        %v1372 = vxor.u32 %v1368, 2147483648
        %v1373 = vmul.f32 %v1372, 1.442695
        %v1374 = vpow.pop %v1373
        %v1375 = vadd.f32 %v1374, 1.0
        %v1376 = vrcp.pop %v1375
        %v1377 = vmul.f32 1.0, %v1376
        %v1378 = vtanh.pop %v1370
        %v1379 = vsub.f32 %v1378, %v1278
        %v1380 = vmul.f32 %v1377, %v1379
        %v1381 = vadd.f32 %v1278, %v1380
        %v1382 = vadd.f32 %v1300, %v1381
        %1383 = vmatprep.subr.mxu0 %v696
        %1384 = vmatpush1.msra.mxu0 %v695
        %1385 = vmatprep.subr.mxu0 %v694
        %1386 = vmatpush1.msra.mxu0 %v693
        %1387 = vmatprep.subr.mxu0 %v692
        %1388 = vmatpush1.msra.mxu0 %v691
        %1389 = vmatprep.subr.mxu0 %v690
        %1390 = vmatpush1.msra.mxu0 %v689
        %1391 = vmatprep.subr.mxu0 %v688
        %1392 = vmatpush1.msra.mxu0 %v687
        %1393 = vmatprep.subr.mxu0 %v686
        %1394 = vmatpush1.msra.mxu0 %v685
        %1395 = vmatprep.subr.mxu0 %v684
        %1396 = vmatpush1.msra.mxu0 %v683
        %1397 = vmatprep.subr.mxu0 %v682
        %1398 = vmatpush1.msra.mxu0 %v681
        %1399 = vmatprep.subr.mxu0 %v680
        %1400 = vmatpush1.msra.mxu0 %v679
        %1401 = vmatprep.subr.mxu0 %v678
        %1402 = vmatpush1.msra.mxu0 %v677
        %1403 = vmatprep.subr.mxu0 %v676
        %1404 = vmatpush1.msra.mxu0 %v675
        %1405 = vmatprep.subr.mxu0 %v674
        %1406 = vmatpush1.msra.mxu0 %v673
        %1407 = vmatprep.subr.mxu0 %v672
        %1408 = vmatpush1.msra.mxu0 %v671
        %1409 = vmatprep.subr.mxu0 %v670
        %1410 = vmatpush1.msra.mxu0 %v669
        %1411 = vmatprep.subr.mxu0 %v668
        %1412 = vmatpush1.msra.mxu0 %v667
        %1413 = vmatprep.subr.mxu0 %v666
        %1414 = vmatpush1.msra.mxu0 %v665
        %1415 = vmatprep.subr.mxu0 0.0
        %1416 = vmatpush2.msra.mxu0 0.0
        %1417 = vmatprep.subr.mxu0 0.0
        %1418 = vmatpush2.msra.mxu0 0.0
        %1419 = vmatprep.subr.mxu0 0.0
        %1420 = vmatpush2.msra.mxu0 0.0
        %1421 = vmatprep.subr.mxu0 0.0
        %1422 = vmatpush2.msra.mxu0 0.0
        %1423 = vmatprep.subr.mxu0 0.0
        %1424 = vmatpush2.msra.mxu0 0.0
        %1425 = vmatprep.subr.mxu0 0.0
        %1426 = vmatpush2.msra.mxu0 0.0
        %1427 = vmatprep.subr.mxu0 0.0
        %1428 = vmatpush2.msra.mxu0 0.0
        %1429 = vmatprep.subr.mxu0 0.0
        %1430 = vmatpush2.msra.mxu0 0.0
        %1431 = vmatprep.subr.mxu0 0.0
        %1432 = vmatpush2.msra.mxu0 0.0
        %1433 = vmatprep.subr.mxu0 0.0
        %1434 = vmatpush2.msra.mxu0 0.0
        %1435 = vmatprep.subr.mxu0 0.0
        %1436 = vmatpush2.msra.mxu0 0.0
        %1437 = vmatprep.subr.mxu0 0.0
        %1438 = vmatpush2.msra.mxu0 0.0
        %1439 = vmatprep.subr.mxu0 0.0
        %1440 = vmatpush2.msra.mxu0 0.0
        %1441 = vmatprep.subr.mxu0 0.0
        %1442 = vmatpush2.msra.mxu0 0.0
        %1443 = vmatprep.subr.mxu0 0.0
        %1444 = vmatpush2.msra.mxu0 0.0
        %1445 = vmatprep.subr.mxu0 0.0
        %1446 = vmatpush2.msra.mxu0 0.0
        %1447 = vmatprep.mubr.f32.mxu0 0.0
        %1448 = vmatmul.mubr.f32.gmra.mxu0 %v1289
        %v1449 = vpop.f32.mrf.mxu0
        %v1450 = vadd.f32 0.0, %v1449
        %v1451 = vpop.f32.mrf.mxu0
        %v1452 = vadd.f32 0.0, %v1451
        %1453 = vdwg.mxu0
        %v1454 = vxor.u32 %v1450, 2147483648
        %v1455 = vmul.f32 %v1454, 1.442695
        %v1456 = vpow.pop %v1455
        %v1457 = vadd.f32 %v1456, 1.0
        %v1458 = vrcp.pop %v1457
        %v1459 = vmul.f32 1.0, %v1458
        %v1460 = vtanh.pop %v1452
        %v1461 = vsub.f32 %v1460, %v1289
        %v1462 = vmul.f32 %v1459, %v1461
        %v1463 = vadd.f32 %v1289, %v1462
        %v1464 = vadd.f32 %v1382, %v1463
        %1465 = vmatprep.subr.mxu0 %v758
        %1466 = vmatpush1.msra.mxu0 %v757
        %1467 = vmatprep.subr.mxu0 %v754
        %1468 = vmatpush1.msra.mxu0 %v753
        %1469 = vmatprep.subr.mxu0 %v750
        %1470 = vmatpush1.msra.mxu0 %v749
        %1471 = vmatprep.subr.mxu0 %v746
        %1472 = vmatpush1.msra.mxu0 %v745
        %1473 = vmatprep.subr.mxu0 %v742
        %1474 = vmatpush1.msra.mxu0 %v741
        %1475 = vmatprep.subr.mxu0 %v738
        %1476 = vmatpush1.msra.mxu0 %v737
        %1477 = vmatprep.subr.mxu0 %v734
        %1478 = vmatpush1.msra.mxu0 %v733
        %1479 = vmatprep.subr.mxu0 %v730
        %1480 = vmatpush1.msra.mxu0 %v729
        %1481 = vmatprep.subr.mxu0 %v726
        %1482 = vmatpush1.msra.mxu0 %v725
        %1483 = vmatprep.subr.mxu0 %v722
        %1484 = vmatpush1.msra.mxu0 %v721
        %1485 = vmatprep.subr.mxu0 %v718
        %1486 = vmatpush1.msra.mxu0 %v717
        %1487 = vmatprep.subr.mxu0 %v714
        %1488 = vmatpush1.msra.mxu0 %v713
        %1489 = vmatprep.subr.mxu0 %v710
        %1490 = vmatpush1.msra.mxu0 %v709
        %1491 = vmatprep.subr.mxu0 %v706
        %1492 = vmatpush1.msra.mxu0 %v705
        %1493 = vmatprep.subr.mxu0 %v702
        %1494 = vmatpush1.msra.mxu0 %v701
        %1495 = vmatprep.subr.mxu0 %v698
        %1496 = vmatpush1.msra.mxu0 %v697
        %1497 = vmatprep.subr.mxu0 0.0
        %1498 = vmatpush2.msra.mxu0 0.0
        %1499 = vmatprep.subr.mxu0 0.0
        %1500 = vmatpush2.msra.mxu0 0.0
        %1501 = vmatprep.subr.mxu0 0.0
        %1502 = vmatpush2.msra.mxu0 0.0
        %1503 = vmatprep.subr.mxu0 0.0
        %1504 = vmatpush2.msra.mxu0 0.0
        %1505 = vmatprep.subr.mxu0 0.0
        %1506 = vmatpush2.msra.mxu0 0.0
        %1507 = vmatprep.subr.mxu0 0.0
        %1508 = vmatpush2.msra.mxu0 0.0
        %1509 = vmatprep.subr.mxu0 0.0
        %1510 = vmatpush2.msra.mxu0 0.0
        %1511 = vmatprep.subr.mxu0 0.0
        %1512 = vmatpush2.msra.mxu0 0.0
        %1513 = vmatprep.subr.mxu0 0.0
        %1514 = vmatpush2.msra.mxu0 0.0
        %1515 = vmatprep.subr.mxu0 0.0
        %1516 = vmatpush2.msra.mxu0 0.0
        %1517 = vmatprep.subr.mxu0 0.0
        %1518 = vmatpush2.msra.mxu0 0.0
        %1519 = vmatprep.subr.mxu0 0.0
        %1520 = vmatpush2.msra.mxu0 0.0
        %1521 = vmatprep.subr.mxu0 0.0
        %1522 = vmatpush2.msra.mxu0 0.0
        %1523 = vmatprep.subr.mxu0 0.0
        %1524 = vmatpush2.msra.mxu0 0.0
        %1525 = vmatprep.subr.mxu0 0.0
        %1526 = vmatpush2.msra.mxu0 0.0
        %1527 = vmatprep.subr.mxu0 0.0
        %1528 = vmatpush2.msra.mxu0 0.0
        %1529 = vmatprep.mubr.f32.mxu0 0.0
        %1530 = vmatmul.mubr.f32.gmra.mxu0 %v1381
        %v1531 = vpop.f32.mrf.mxu0
        %v1532 = vadd.f32 0.0, %v1531
        %v1533 = vpop.f32.mrf.mxu0
        %v1534 = vadd.f32 0.0, %v1533
        %1535 = vdwg.mxu0
        %1536 = vmatprep.subr.mxu0 %v760
        %1537 = vmatpush1.msra.mxu0 %v759
        %1538 = vmatprep.subr.mxu0 %v756
        %1539 = vmatpush1.msra.mxu0 %v755
        %1540 = vmatprep.subr.mxu0 %v752
        %1541 = vmatpush1.msra.mxu0 %v751
        %1542 = vmatprep.subr.mxu0 %v748
        %1543 = vmatpush1.msra.mxu0 %v747
        %1544 = vmatprep.subr.mxu0 %v744
        %1545 = vmatpush1.msra.mxu0 %v743
        %1546 = vmatprep.subr.mxu0 %v740
        %1547 = vmatpush1.msra.mxu0 %v739
        %1548 = vmatprep.subr.mxu0 %v736
        %1549 = vmatpush1.msra.mxu0 %v735
        %1550 = vmatprep.subr.mxu0 %v732
        %1551 = vmatpush1.msra.mxu0 %v731
        %1552 = vmatprep.subr.mxu0 %v728
        %1553 = vmatpush1.msra.mxu0 %v727
        %1554 = vmatprep.subr.mxu0 %v724
        %1555 = vmatpush1.msra.mxu0 %v723
        %1556 = vmatprep.subr.mxu0 %v720
        %1557 = vmatpush1.msra.mxu0 %v719
        %1558 = vmatprep.subr.mxu0 %v716
        %1559 = vmatpush1.msra.mxu0 %v715
        %1560 = vmatprep.subr.mxu0 %v712
        %1561 = vmatpush1.msra.mxu0 %v711
        %1562 = vmatprep.subr.mxu0 %v708
        %1563 = vmatpush1.msra.mxu0 %v707
        %1564 = vmatprep.subr.mxu0 %v704
        %1565 = vmatpush1.msra.mxu0 %v703
        %1566 = vmatprep.subr.mxu0 %v700
        %1567 = vmatpush1.msra.mxu0 %v699
        %1568 = vmatprep.subr.mxu0 0.0
        %1569 = vmatpush2.msra.mxu0 0.0
        %1570 = vmatprep.subr.mxu0 0.0
        %1571 = vmatpush2.msra.mxu0 0.0
        %1572 = vmatprep.subr.mxu0 0.0
        %1573 = vmatpush2.msra.mxu0 0.0
        %1574 = vmatprep.subr.mxu0 0.0
        %1575 = vmatpush2.msra.mxu0 0.0
        %1576 = vmatprep.subr.mxu0 0.0
        %1577 = vmatpush2.msra.mxu0 0.0
        %1578 = vmatprep.subr.mxu0 0.0
        %1579 = vmatpush2.msra.mxu0 0.0
        %1580 = vmatprep.subr.mxu0 0.0
        %1581 = vmatpush2.msra.mxu0 0.0
        %1582 = vmatprep.subr.mxu0 0.0
        %1583 = vmatpush2.msra.mxu0 0.0
        %1584 = vmatprep.subr.mxu0 0.0
        %1585 = vmatpush2.msra.mxu0 0.0
        %1586 = vmatprep.subr.mxu0 0.0
        %1587 = vmatpush2.msra.mxu0 0.0
        %1588 = vmatprep.subr.mxu0 0.0
        %1589 = vmatpush2.msra.mxu0 0.0
        %1590 = vmatprep.subr.mxu0 0.0
        %1591 = vmatpush2.msra.mxu0 0.0
        %1592 = vmatprep.subr.mxu0 0.0
        %1593 = vmatpush2.msra.mxu0 0.0
        %1594 = vmatprep.subr.mxu0 0.0
        %1595 = vmatpush2.msra.mxu0 0.0
        %1596 = vmatprep.subr.mxu0 0.0
        %1597 = vmatpush2.msra.mxu0 0.0
        %1598 = vmatprep.subr.mxu0 0.0
        %1599 = vmatpush2.msra.mxu0 0.0
        %1600 = vmatprep.mubr.f32.mxu0 0.0
        %1601 = vmatmul.mubr.f32.gmra.mxu0 %v1381
        %v1602 = vpop.f32.mrf.mxu0
        %v1603 = vadd.f32 0.0, %v1602
        %v1604 = vpop.f32.mrf.mxu0
        %v1605 = vadd.f32 0.0, %v1604
        %1606 = vdwg.mxu0
        %v1607 = vxor.u32 %v1532, 2147483648
        %v1608 = vmul.f32 %v1607, 1.442695
        %v1609 = vpow.pop %v1608
        %v1610 = vadd.f32 %v1609, 1.0
        %v1611 = vrcp.pop %v1610
        %v1612 = vmul.f32 1.0, %v1611
        %v1613 = vxor.u32 %v1534, 2147483648
        %v1614 = vmul.f32 %v1613, 1.442695
        %v1615 = vpow.pop %v1614
        %v1616 = vadd.f32 %v1615, 1.0
        %v1617 = vrcp.pop %v1616
        %v1618 = vmul.f32 1.0, %v1617
        %v1619 = vsub.f32 %v1618, %v1381
        %v1620 = vmul.f32 %v1612, %v1619
        %v1621 = vadd.f32 %v1381, %v1620
        %v1622 = vadd.f32 %v1464, %v1621
        %v1623 = vxor.u32 %v1603, 2147483648
        %v1624 = vmul.f32 %v1623, 1.442695
        %v1625 = vpow.pop %v1624
        %v1626 = vadd.f32 %v1625, 1.0
        %v1627 = vrcp.pop %v1626
        %v1628 = vmul.f32 1.0, %v1627
        %v1629 = vmax.f32 %v1605, 0.0
        %v1630 = vsub.f32 %v1629, %v1381
        %v1631 = vmul.f32 %v1628, %v1630
        %v1632 = vadd.f32 %v1381, %v1631
        %v1633 = vadd.f32 %v1622, %v1632
        %v1634 = vmul.f32 %v1633, 0.125
        %1635 = vst [vmem:[%s464] sm:$0xff] %v1634
        %1636 = vmatprep.subr.mxu0 %v504
        %1637 = vmatpush1.msra.mxu0 %v503
        %1638 = vmatprep.subr.mxu0 %v502
        %1639 = vmatpush1.msra.mxu0 %v501
        %1640 = vmatprep.subr.mxu0 %v500
        %1641 = vmatpush1.msra.mxu0 %v499
        %1642 = vmatprep.subr.mxu0 %v498
        %1643 = vmatpush1.msra.mxu0 %v497
        %1644 = vmatprep.subr.mxu0 %v496
        %1645 = vmatpush1.msra.mxu0 %v495
        %1646 = vmatprep.subr.mxu0 %v494
        %1647 = vmatpush1.msra.mxu0 %v493
        %1648 = vmatprep.subr.mxu0 %v492
        %1649 = vmatpush1.msra.mxu0 %v491
        %1650 = vmatprep.subr.mxu0 %v490
        %1651 = vmatpush1.msra.mxu0 %v489
        %1652 = vmatprep.subr.mxu0 %v488
        %1653 = vmatpush1.msra.mxu0 %v487
        %1654 = vmatprep.subr.mxu0 %v486
        %1655 = vmatpush1.msra.mxu0 %v485
        %1656 = vmatprep.subr.mxu0 %v484
        %1657 = vmatpush1.msra.mxu0 %v483
        %1658 = vmatprep.subr.mxu0 %v482
        %1659 = vmatpush1.msra.mxu0 %v481
        %1660 = vmatprep.subr.mxu0 %v480
        %1661 = vmatpush1.msra.mxu0 %v479
        %1662 = vmatprep.subr.mxu0 %v478
        %1663 = vmatpush1.msra.mxu0 %v477
        %1664 = vmatprep.subr.mxu0 %v476
        %1665 = vmatpush1.msra.mxu0 %v475
        %1666 = vmatprep.subr.mxu0 %v474
        %1667 = vmatpush1.msra.mxu0 %v473
        %1668 = vmatprep.subr.mxu0 0.0
        %1669 = vmatpush2.msra.mxu0 0.0
        %1670 = vmatprep.subr.mxu0 0.0
        %1671 = vmatpush2.msra.mxu0 0.0
        %1672 = vmatprep.subr.mxu0 0.0
        %1673 = vmatpush2.msra.mxu0 0.0
        %1674 = vmatprep.subr.mxu0 0.0
        %1675 = vmatpush2.msra.mxu0 0.0
        %1676 = vmatprep.subr.mxu0 0.0
        %1677 = vmatpush2.msra.mxu0 0.0
        %1678 = vmatprep.subr.mxu0 0.0
        %1679 = vmatpush2.msra.mxu0 0.0
        %1680 = vmatprep.subr.mxu0 0.0
        %1681 = vmatpush2.msra.mxu0 0.0
        %1682 = vmatprep.subr.mxu0 0.0
        %1683 = vmatpush2.msra.mxu0 0.0
        %1684 = vmatprep.subr.mxu0 0.0
        %1685 = vmatpush2.msra.mxu0 0.0
        %1686 = vmatprep.subr.mxu0 0.0
        %1687 = vmatpush2.msra.mxu0 0.0
        %1688 = vmatprep.subr.mxu0 0.0
        %1689 = vmatpush2.msra.mxu0 0.0
        %1690 = vmatprep.subr.mxu0 0.0
        %1691 = vmatpush2.msra.mxu0 0.0
        %1692 = vmatprep.subr.mxu0 0.0
        %1693 = vmatpush2.msra.mxu0 0.0
        %1694 = vmatprep.subr.mxu0 0.0
        %1695 = vmatpush2.msra.mxu0 0.0
        %1696 = vmatprep.subr.mxu0 0.0
        %1697 = vmatpush2.msra.mxu0 0.0
        %1698 = vmatprep.subr.mxu0 0.0
        %1699 = vmatpush2.msra.mxu0 0.0
        %1700 = vmatprep.mubr.f32.mxu0 0.0
        %1701 = vmatmul.mubr.f32.gmra.mxu0 %v1634
        %v1702 = vpop.f32.mrf.mxu0
        %v1703 = vadd.f32 0.0, %v1702
        %v1704 = vpop.f32.mrf.mxu0
        %v1705 = vadd.f32 0.0, %v1704
        %1706 = vdwg.mxu0
        %v1707 = vadd.f32 %v870, %v1703
        %v1708 = vadd.f32 %v872, %v1705
        %v1709 = vxor.u32 %v1707, 2147483648
        %v1710 = vmul.f32 %v1709, 1.442695
        %v1711 = vpow.pop %v1710
        %v1712 = vadd.f32 %v1711, 1.0
        %v1713 = vrcp.pop %v1712
        %v1714 = vmul.f32 1.0, %v1713
        %v1715 = vtanh.pop %v1708
        %v1716 = vsub.f32 %v1715, %v1634
        %v1717 = vmul.f32 %v1714, %v1716
        %v1718 = vadd.f32 %v1634, %v1717
        %1719 = vmatprep.subr.mxu0 %v536
        %1720 = vmatpush1.msra.mxu0 %v535
        %1721 = vmatprep.subr.mxu0 %v534
        %1722 = vmatpush1.msra.mxu0 %v533
        %1723 = vmatprep.subr.mxu0 %v532
        %1724 = vmatpush1.msra.mxu0 %v531
        %1725 = vmatprep.subr.mxu0 %v530
        %1726 = vmatpush1.msra.mxu0 %v529
        %1727 = vmatprep.subr.mxu0 %v528
        %1728 = vmatpush1.msra.mxu0 %v527
        %1729 = vmatprep.subr.mxu0 %v526
        %1730 = vmatpush1.msra.mxu0 %v525
        %1731 = vmatprep.subr.mxu0 %v524
        %1732 = vmatpush1.msra.mxu0 %v523
        %1733 = vmatprep.subr.mxu0 %v522
        %1734 = vmatpush1.msra.mxu0 %v521
        %1735 = vmatprep.subr.mxu0 %v520
        %1736 = vmatpush1.msra.mxu0 %v519
        %1737 = vmatprep.subr.mxu0 %v518
        %1738 = vmatpush1.msra.mxu0 %v517
        %1739 = vmatprep.subr.mxu0 %v516
        %1740 = vmatpush1.msra.mxu0 %v515
        %1741 = vmatprep.subr.mxu0 %v514
        %1742 = vmatpush1.msra.mxu0 %v513
        %1743 = vmatprep.subr.mxu0 %v512
        %1744 = vmatpush1.msra.mxu0 %v511
        %1745 = vmatprep.subr.mxu0 %v510
        %1746 = vmatpush1.msra.mxu0 %v509
        %1747 = vmatprep.subr.mxu0 %v508
        %1748 = vmatpush1.msra.mxu0 %v507
        %1749 = vmatprep.subr.mxu0 %v506
        %1750 = vmatpush1.msra.mxu0 %v505
        %1751 = vmatprep.subr.mxu0 0.0
        %1752 = vmatpush2.msra.mxu0 0.0
        %1753 = vmatprep.subr.mxu0 0.0
        %1754 = vmatpush2.msra.mxu0 0.0
        %1755 = vmatprep.subr.mxu0 0.0
        %1756 = vmatpush2.msra.mxu0 0.0
        %1757 = vmatprep.subr.mxu0 0.0
        %1758 = vmatpush2.msra.mxu0 0.0
        %1759 = vmatprep.subr.mxu0 0.0
        %1760 = vmatpush2.msra.mxu0 0.0
        %1761 = vmatprep.subr.mxu0 0.0
        %1762 = vmatpush2.msra.mxu0 0.0
        %1763 = vmatprep.subr.mxu0 0.0
        %1764 = vmatpush2.msra.mxu0 0.0
        %1765 = vmatprep.subr.mxu0 0.0
        %1766 = vmatpush2.msra.mxu0 0.0
        %1767 = vmatprep.subr.mxu0 0.0
        %1768 = vmatpush2.msra.mxu0 0.0
        %1769 = vmatprep.subr.mxu0 0.0
        %1770 = vmatpush2.msra.mxu0 0.0
        %1771 = vmatprep.subr.mxu0 0.0
        %1772 = vmatpush2.msra.mxu0 0.0
        %1773 = vmatprep.subr.mxu0 0.0
        %1774 = vmatpush2.msra.mxu0 0.0
        %1775 = vmatprep.subr.mxu0 0.0
        %1776 = vmatpush2.msra.mxu0 0.0
        %1777 = vmatprep.subr.mxu0 0.0
        %1778 = vmatpush2.msra.mxu0 0.0
        %1779 = vmatprep.subr.mxu0 0.0
        %1780 = vmatpush2.msra.mxu0 0.0
        %1781 = vmatprep.subr.mxu0 0.0
        %1782 = vmatpush2.msra.mxu0 0.0
        %1783 = vmatprep.mubr.f32.mxu0 0.0
        %1784 = vmatmul.mubr.f32.gmra.mxu0 %v1718
        %v1785 = vpop.f32.mrf.mxu0
        %v1786 = vadd.f32 0.0, %v1785
        %v1787 = vpop.f32.mrf.mxu0
        %v1788 = vadd.f32 0.0, %v1787
        %1789 = vdwg.mxu0
        %v1790 = vxor.u32 %v1786, 2147483648
        %v1791 = vmul.f32 %v1790, 1.442695
        %v1792 = vpow.pop %v1791
        %v1793 = vadd.f32 %v1792, 1.0
        %v1794 = vrcp.pop %v1793
        %v1795 = vmul.f32 1.0, %v1794
        %v1796 = vxor.u32 %v1788, 2147483648
        %v1797 = vmul.f32 %v1796, 1.442695
        %v1798 = vpow.pop %v1797
        %v1799 = vadd.f32 %v1798, 1.0
        %v1800 = vrcp.pop %v1799
        %v1801 = vmul.f32 1.0, %v1800
        %v1802 = vsub.f32 %v1801, %v1718
        %v1803 = vmul.f32 %v1795, %v1802
        %v1804 = vadd.f32 %v1718, %v1803
        %1805 = vmatprep.subr.mxu0 %v628
        %1806 = vmatpush1.msra.mxu0 %v627
        %1807 = vmatprep.subr.mxu0 %v622
        %1808 = vmatpush1.msra.mxu0 %v621
        %1809 = vmatprep.subr.mxu0 %v616
        %1810 = vmatpush1.msra.mxu0 %v615
        %1811 = vmatprep.subr.mxu0 %v610
        %1812 = vmatpush1.msra.mxu0 %v609
        %1813 = vmatprep.subr.mxu0 %v604
        %1814 = vmatpush1.msra.mxu0 %v603
        %1815 = vmatprep.subr.mxu0 %v598
        %1816 = vmatpush1.msra.mxu0 %v597
        %1817 = vmatprep.subr.mxu0 %v592
        %1818 = vmatpush1.msra.mxu0 %v591
        %1819 = vmatprep.subr.mxu0 %v586
        %1820 = vmatpush1.msra.mxu0 %v585
        %1821 = vmatprep.subr.mxu0 %v580
        %1822 = vmatpush1.msra.mxu0 %v579
        %1823 = vmatprep.subr.mxu0 %v574
        %1824 = vmatpush1.msra.mxu0 %v573
        %1825 = vmatprep.subr.mxu0 %v568
        %1826 = vmatpush1.msra.mxu0 %v567
        %1827 = vmatprep.subr.mxu0 %v562
        %1828 = vmatpush1.msra.mxu0 %v561
        %1829 = vmatprep.subr.mxu0 %v556
        %1830 = vmatpush1.msra.mxu0 %v555
        %1831 = vmatprep.subr.mxu0 %v550
        %1832 = vmatpush1.msra.mxu0 %v549
        %1833 = vmatprep.subr.mxu0 %v544
        %1834 = vmatpush1.msra.mxu0 %v543
        %1835 = vmatprep.subr.mxu0 %v538
        %1836 = vmatpush1.msra.mxu0 %v537
        %1837 = vmatprep.subr.mxu0 0.0
        %1838 = vmatpush2.msra.mxu0 0.0
        %1839 = vmatprep.subr.mxu0 0.0
        %1840 = vmatpush2.msra.mxu0 0.0
        %1841 = vmatprep.subr.mxu0 0.0
        %1842 = vmatpush2.msra.mxu0 0.0
        %1843 = vmatprep.subr.mxu0 0.0
        %1844 = vmatpush2.msra.mxu0 0.0
        %1845 = vmatprep.subr.mxu0 0.0
        %1846 = vmatpush2.msra.mxu0 0.0
        %1847 = vmatprep.subr.mxu0 0.0
        %1848 = vmatpush2.msra.mxu0 0.0
        %1849 = vmatprep.subr.mxu0 0.0
        %1850 = vmatpush2.msra.mxu0 0.0
        %1851 = vmatprep.subr.mxu0 0.0
        %1852 = vmatpush2.msra.mxu0 0.0
        %1853 = vmatprep.subr.mxu0 0.0
        %1854 = vmatpush2.msra.mxu0 0.0
        %1855 = vmatprep.subr.mxu0 0.0
        %1856 = vmatpush2.msra.mxu0 0.0
        %1857 = vmatprep.subr.mxu0 0.0
        %1858 = vmatpush2.msra.mxu0 0.0
        %1859 = vmatprep.subr.mxu0 0.0
        %1860 = vmatpush2.msra.mxu0 0.0
        %1861 = vmatprep.subr.mxu0 0.0
        %1862 = vmatpush2.msra.mxu0 0.0
        %1863 = vmatprep.subr.mxu0 0.0
        %1864 = vmatpush2.msra.mxu0 0.0
        %1865 = vmatprep.subr.mxu0 0.0
        %1866 = vmatpush2.msra.mxu0 0.0
        %1867 = vmatprep.subr.mxu0 0.0
        %1868 = vmatpush2.msra.mxu0 0.0
        %1869 = vmatprep.mubr.f32.mxu0 0.0
        %1870 = vmatmul.mubr.f32.gmra.mxu0 %v1804
        %v1871 = vpop.f32.mrf.mxu0
        %v1872 = vadd.f32 0.0, %v1871
        %v1873 = vpop.f32.mrf.mxu0
        %v1874 = vadd.f32 0.0, %v1873
        %1875 = vdwg.mxu0
        %1876 = vmatprep.subr.mxu0 %v630
        %1877 = vmatpush1.msra.mxu0 %v629
        %1878 = vmatprep.subr.mxu0 %v624
        %1879 = vmatpush1.msra.mxu0 %v623
        %1880 = vmatprep.subr.mxu0 %v618
        %1881 = vmatpush1.msra.mxu0 %v617
        %1882 = vmatprep.subr.mxu0 %v612
        %1883 = vmatpush1.msra.mxu0 %v611
        %1884 = vmatprep.subr.mxu0 %v606
        %1885 = vmatpush1.msra.mxu0 %v605
        %1886 = vmatprep.subr.mxu0 %v600
        %1887 = vmatpush1.msra.mxu0 %v599
        %1888 = vmatprep.subr.mxu0 %v594
        %1889 = vmatpush1.msra.mxu0 %v593
        %1890 = vmatprep.subr.mxu0 %v588
        %1891 = vmatpush1.msra.mxu0 %v587
        %1892 = vmatprep.subr.mxu0 %v582
        %1893 = vmatpush1.msra.mxu0 %v581
        %1894 = vmatprep.subr.mxu0 %v576
        %1895 = vmatpush1.msra.mxu0 %v575
        %1896 = vmatprep.subr.mxu0 %v570
        %1897 = vmatpush1.msra.mxu0 %v569
        %1898 = vmatprep.subr.mxu0 %v564
        %1899 = vmatpush1.msra.mxu0 %v563
        %1900 = vmatprep.subr.mxu0 %v558
        %1901 = vmatpush1.msra.mxu0 %v557
        %1902 = vmatprep.subr.mxu0 %v552
        %1903 = vmatpush1.msra.mxu0 %v551
        %1904 = vmatprep.subr.mxu0 %v546
        %1905 = vmatpush1.msra.mxu0 %v545
        %1906 = vmatprep.subr.mxu0 %v540
        %1907 = vmatpush1.msra.mxu0 %v539
        %1908 = vmatprep.subr.mxu0 0.0
        %1909 = vmatpush2.msra.mxu0 0.0
        %1910 = vmatprep.subr.mxu0 0.0
        %1911 = vmatpush2.msra.mxu0 0.0
        %1912 = vmatprep.subr.mxu0 0.0
        %1913 = vmatpush2.msra.mxu0 0.0
        %1914 = vmatprep.subr.mxu0 0.0
        %1915 = vmatpush2.msra.mxu0 0.0
        %1916 = vmatprep.subr.mxu0 0.0
        %1917 = vmatpush2.msra.mxu0 0.0
        %1918 = vmatprep.subr.mxu0 0.0
        %1919 = vmatpush2.msra.mxu0 0.0
        %1920 = vmatprep.subr.mxu0 0.0
        %1921 = vmatpush2.msra.mxu0 0.0
        %1922 = vmatprep.subr.mxu0 0.0
        %1923 = vmatpush2.msra.mxu0 0.0
        %1924 = vmatprep.subr.mxu0 0.0
        %1925 = vmatpush2.msra.mxu0 0.0
        %1926 = vmatprep.subr.mxu0 0.0
        %1927 = vmatpush2.msra.mxu0 0.0
        %1928 = vmatprep.subr.mxu0 0.0
        %1929 = vmatpush2.msra.mxu0 0.0
        %1930 = vmatprep.subr.mxu0 0.0
        %1931 = vmatpush2.msra.mxu0 0.0
        %1932 = vmatprep.subr.mxu0 0.0
        %1933 = vmatpush2.msra.mxu0 0.0
        %1934 = vmatprep.subr.mxu0 0.0
        %1935 = vmatpush2.msra.mxu0 0.0
        %1936 = vmatprep.subr.mxu0 0.0
        %1937 = vmatpush2.msra.mxu0 0.0
        %1938 = vmatprep.subr.mxu0 0.0
        %1939 = vmatpush2.msra.mxu0 0.0
        %1940 = vmatprep.mubr.f32.mxu0 0.0
        %1941 = vmatmul.mubr.f32.gmra.mxu0 %v1804
        %v1942 = vpop.f32.mrf.mxu0
        %v1943 = vadd.f32 0.0, %v1942
        %v1944 = vpop.f32.mrf.mxu0
        %v1945 = vadd.f32 0.0, %v1944
        %1946 = vdwg.mxu0
        %1947 = vmatprep.subr.mxu0 %v632
        %1948 = vmatpush1.msra.mxu0 %v631
        %1949 = vmatprep.subr.mxu0 %v626
        %1950 = vmatpush1.msra.mxu0 %v625
        %1951 = vmatprep.subr.mxu0 %v620
        %1952 = vmatpush1.msra.mxu0 %v619
        %1953 = vmatprep.subr.mxu0 %v614
        %1954 = vmatpush1.msra.mxu0 %v613
        %1955 = vmatprep.subr.mxu0 %v608
        %1956 = vmatpush1.msra.mxu0 %v607
        %1957 = vmatprep.subr.mxu0 %v602
        %1958 = vmatpush1.msra.mxu0 %v601
        %1959 = vmatprep.subr.mxu0 %v596
        %1960 = vmatpush1.msra.mxu0 %v595
        %1961 = vmatprep.subr.mxu0 %v590
        %1962 = vmatpush1.msra.mxu0 %v589
        %1963 = vmatprep.subr.mxu0 %v584
        %1964 = vmatpush1.msra.mxu0 %v583
        %1965 = vmatprep.subr.mxu0 %v578
        %1966 = vmatpush1.msra.mxu0 %v577
        %1967 = vmatprep.subr.mxu0 %v572
        %1968 = vmatpush1.msra.mxu0 %v571
        %1969 = vmatprep.subr.mxu0 %v566
        %1970 = vmatpush1.msra.mxu0 %v565
        %1971 = vmatprep.subr.mxu0 %v560
        %1972 = vmatpush1.msra.mxu0 %v559
        %1973 = vmatprep.subr.mxu0 %v554
        %1974 = vmatpush1.msra.mxu0 %v553
        %1975 = vmatprep.subr.mxu0 %v548
        %1976 = vmatpush1.msra.mxu0 %v547
        %1977 = vmatprep.subr.mxu0 %v542
        %1978 = vmatpush1.msra.mxu0 %v541
        %1979 = vmatprep.subr.mxu0 0.0
        %1980 = vmatpush2.msra.mxu0 0.0
        %1981 = vmatprep.subr.mxu0 0.0
        %1982 = vmatpush2.msra.mxu0 0.0
        %1983 = vmatprep.subr.mxu0 0.0
        %1984 = vmatpush2.msra.mxu0 0.0
        %1985 = vmatprep.subr.mxu0 0.0
        %1986 = vmatpush2.msra.mxu0 0.0
        %1987 = vmatprep.subr.mxu0 0.0
        %1988 = vmatpush2.msra.mxu0 0.0
        %1989 = vmatprep.subr.mxu0 0.0
        %1990 = vmatpush2.msra.mxu0 0.0
        %1991 = vmatprep.subr.mxu0 0.0
        %1992 = vmatpush2.msra.mxu0 0.0
        %1993 = vmatprep.subr.mxu0 0.0
        %1994 = vmatpush2.msra.mxu0 0.0
        %1995 = vmatprep.subr.mxu0 0.0
        %1996 = vmatpush2.msra.mxu0 0.0
        %1997 = vmatprep.subr.mxu0 0.0
        %1998 = vmatpush2.msra.mxu0 0.0
        %1999 = vmatprep.subr.mxu0 0.0
        %2000 = vmatpush2.msra.mxu0 0.0
        %2001 = vmatprep.subr.mxu0 0.0
        %2002 = vmatpush2.msra.mxu0 0.0
        %2003 = vmatprep.subr.mxu0 0.0
        %2004 = vmatpush2.msra.mxu0 0.0
        %2005 = vmatprep.subr.mxu0 0.0
        %2006 = vmatpush2.msra.mxu0 0.0
        %2007 = vmatprep.subr.mxu0 0.0
        %2008 = vmatpush2.msra.mxu0 0.0
        %2009 = vmatprep.subr.mxu0 0.0
        %2010 = vmatpush2.msra.mxu0 0.0
        %2011 = vmatprep.mubr.f32.mxu0 0.0
        %2012 = vmatmul.mubr.f32.gmra.mxu0 %v1804
        %v2013 = vpop.f32.mrf.mxu0
        %v2014 = vadd.f32 0.0, %v2013
        %v2015 = vpop.f32.mrf.mxu0
        %v2016 = vadd.f32 0.0, %v2015
        %2017 = vdwg.mxu0
        %v2018 = vxor.u32 %v1872, 2147483648
        %v2019 = vmul.f32 %v2018, 1.442695
        %v2020 = vpow.pop %v2019
        %v2021 = vadd.f32 %v2020, 1.0
        %v2022 = vrcp.pop %v2021
        %v2023 = vmul.f32 1.0, %v2022
        %v2024 = vmax.f32 %v1874, 0.0
        %v2025 = vsub.f32 %v2024, %v1804
        %v2026 = vmul.f32 %v2023, %v2025
        %v2027 = vadd.f32 %v1804, %v2026
        %v2028 = vadd.f32 %v1804, %v2027
        %v2029 = vxor.u32 %v1943, 2147483648
        %v2030 = vmul.f32 %v2029, 1.442695
        %v2031 = vpow.pop %v2030
        %v2032 = vadd.f32 %v2031, 1.0
        %v2033 = vrcp.pop %v2032
        %v2034 = vmul.f32 1.0, %v2033
        %v2035 = vmax.f32 %v1945, 0.0
        %v2036 = vsub.f32 %v2035, %v1804
        %v2037 = vmul.f32 %v2034, %v2036
        %v2038 = vadd.f32 %v1804, %v2037
        %v2039 = vadd.f32 %v2028, %v2038
        %v2040 = vxor.u32 %v2014, 2147483648
        %v2041 = vmul.f32 %v2040, 1.442695
        %v2042 = vpow.pop %v2041
        %v2043 = vadd.f32 %v2042, 1.0
        %v2044 = vrcp.pop %v2043
        %v2045 = vmul.f32 1.0, %v2044
        %v2046 = vsub.f32 %v2016, %v1804
        %v2047 = vmul.f32 %v2045, %v2046
        %v2048 = vadd.f32 %v1804, %v2047
        %v2049 = vadd.f32 %v2039, %v2048
        %2050 = vmatprep.subr.mxu0 %v664
        %2051 = vmatpush1.msra.mxu0 %v663
        %2052 = vmatprep.subr.mxu0 %v662
        %2053 = vmatpush1.msra.mxu0 %v661
        %2054 = vmatprep.subr.mxu0 %v660
        %2055 = vmatpush1.msra.mxu0 %v659
        %2056 = vmatprep.subr.mxu0 %v658
        %2057 = vmatpush1.msra.mxu0 %v657
        %2058 = vmatprep.subr.mxu0 %v656
        %2059 = vmatpush1.msra.mxu0 %v655
        %2060 = vmatprep.subr.mxu0 %v654
        %2061 = vmatpush1.msra.mxu0 %v653
        %2062 = vmatprep.subr.mxu0 %v652
        %2063 = vmatpush1.msra.mxu0 %v651
        %2064 = vmatprep.subr.mxu0 %v650
        %2065 = vmatpush1.msra.mxu0 %v649
        %2066 = vmatprep.subr.mxu0 %v648
        %2067 = vmatpush1.msra.mxu0 %v647
        %2068 = vmatprep.subr.mxu0 %v646
        %2069 = vmatpush1.msra.mxu0 %v645
        %2070 = vmatprep.subr.mxu0 %v644
        %2071 = vmatpush1.msra.mxu0 %v643
        %2072 = vmatprep.subr.mxu0 %v642
        %2073 = vmatpush1.msra.mxu0 %v641
        %2074 = vmatprep.subr.mxu0 %v640
        %2075 = vmatpush1.msra.mxu0 %v639
        %2076 = vmatprep.subr.mxu0 %v638
        %2077 = vmatpush1.msra.mxu0 %v637
        %2078 = vmatprep.subr.mxu0 %v636
        %2079 = vmatpush1.msra.mxu0 %v635
        %2080 = vmatprep.subr.mxu0 %v634
        %2081 = vmatpush1.msra.mxu0 %v633
        %2082 = vmatprep.subr.mxu0 0.0
        %2083 = vmatpush2.msra.mxu0 0.0
        %2084 = vmatprep.subr.mxu0 0.0
        %2085 = vmatpush2.msra.mxu0 0.0
        %2086 = vmatprep.subr.mxu0 0.0
        %2087 = vmatpush2.msra.mxu0 0.0
        %2088 = vmatprep.subr.mxu0 0.0
        %2089 = vmatpush2.msra.mxu0 0.0
        %2090 = vmatprep.subr.mxu0 0.0
        %2091 = vmatpush2.msra.mxu0 0.0
        %2092 = vmatprep.subr.mxu0 0.0
        %2093 = vmatpush2.msra.mxu0 0.0
        %2094 = vmatprep.subr.mxu0 0.0
        %2095 = vmatpush2.msra.mxu0 0.0
        %2096 = vmatprep.subr.mxu0 0.0
        %2097 = vmatpush2.msra.mxu0 0.0
        %2098 = vmatprep.subr.mxu0 0.0
        %2099 = vmatpush2.msra.mxu0 0.0
        %2100 = vmatprep.subr.mxu0 0.0
        %2101 = vmatpush2.msra.mxu0 0.0
        %2102 = vmatprep.subr.mxu0 0.0
        %2103 = vmatpush2.msra.mxu0 0.0
        %2104 = vmatprep.subr.mxu0 0.0
        %2105 = vmatpush2.msra.mxu0 0.0
        %2106 = vmatprep.subr.mxu0 0.0
        %2107 = vmatpush2.msra.mxu0 0.0
        %2108 = vmatprep.subr.mxu0 0.0
        %2109 = vmatpush2.msra.mxu0 0.0
        %2110 = vmatprep.subr.mxu0 0.0
        %2111 = vmatpush2.msra.mxu0 0.0
        %2112 = vmatprep.subr.mxu0 0.0
        %2113 = vmatpush2.msra.mxu0 0.0
        %2114 = vmatprep.mubr.f32.mxu0 0.0
        %2115 = vmatmul.mubr.f32.gmra.mxu0 %v2027
        %v2116 = vpop.f32.mrf.mxu0
        %v2117 = vadd.f32 0.0, %v2116
        %v2118 = vpop.f32.mrf.mxu0
        %v2119 = vadd.f32 0.0, %v2118
        %2120 = vdwg.mxu0
        %v2121 = vxor.u32 %v2117, 2147483648
        %v2122 = vmul.f32 %v2121, 1.442695
        %v2123 = vpow.pop %v2122
        %v2124 = vadd.f32 %v2123, 1.0
        %v2125 = vrcp.pop %v2124
        %v2126 = vmul.f32 1.0, %v2125
        %v2127 = vtanh.pop %v2119
        %v2128 = vsub.f32 %v2127, %v2027
        %v2129 = vmul.f32 %v2126, %v2128
        %v2130 = vadd.f32 %v2027, %v2129
        %v2131 = vadd.f32 %v2049, %v2130
        %2132 = vmatprep.subr.mxu0 %v696
        %2133 = vmatpush1.msra.mxu0 %v695
        %2134 = vmatprep.subr.mxu0 %v694
        %2135 = vmatpush1.msra.mxu0 %v693
        %2136 = vmatprep.subr.mxu0 %v692
        %2137 = vmatpush1.msra.mxu0 %v691
        %2138 = vmatprep.subr.mxu0 %v690
        %2139 = vmatpush1.msra.mxu0 %v689
        %2140 = vmatprep.subr.mxu0 %v688
        %2141 = vmatpush1.msra.mxu0 %v687
        %2142 = vmatprep.subr.mxu0 %v686
        %2143 = vmatpush1.msra.mxu0 %v685
        %2144 = vmatprep.subr.mxu0 %v684
        %2145 = vmatpush1.msra.mxu0 %v683
        %2146 = vmatprep.subr.mxu0 %v682
        %2147 = vmatpush1.msra.mxu0 %v681
        %2148 = vmatprep.subr.mxu0 %v680
        %2149 = vmatpush1.msra.mxu0 %v679
        %2150 = vmatprep.subr.mxu0 %v678
        %2151 = vmatpush1.msra.mxu0 %v677
        %2152 = vmatprep.subr.mxu0 %v676
        %2153 = vmatpush1.msra.mxu0 %v675
        %2154 = vmatprep.subr.mxu0 %v674
        %2155 = vmatpush1.msra.mxu0 %v673
        %2156 = vmatprep.subr.mxu0 %v672
        %2157 = vmatpush1.msra.mxu0 %v671
        %2158 = vmatprep.subr.mxu0 %v670
        %2159 = vmatpush1.msra.mxu0 %v669
        %2160 = vmatprep.subr.mxu0 %v668
        %2161 = vmatpush1.msra.mxu0 %v667
        %2162 = vmatprep.subr.mxu0 %v666
        %2163 = vmatpush1.msra.mxu0 %v665
        %2164 = vmatprep.subr.mxu0 0.0
        %2165 = vmatpush2.msra.mxu0 0.0
        %2166 = vmatprep.subr.mxu0 0.0
        %2167 = vmatpush2.msra.mxu0 0.0
        %2168 = vmatprep.subr.mxu0 0.0
        %2169 = vmatpush2.msra.mxu0 0.0
        %2170 = vmatprep.subr.mxu0 0.0
        %2171 = vmatpush2.msra.mxu0 0.0
        %2172 = vmatprep.subr.mxu0 0.0
        %2173 = vmatpush2.msra.mxu0 0.0
        %2174 = vmatprep.subr.mxu0 0.0
        %2175 = vmatpush2.msra.mxu0 0.0
        %2176 = vmatprep.subr.mxu0 0.0
        %2177 = vmatpush2.msra.mxu0 0.0
        %2178 = vmatprep.subr.mxu0 0.0
        %2179 = vmatpush2.msra.mxu0 0.0
        %2180 = vmatprep.subr.mxu0 0.0
        %2181 = vmatpush2.msra.mxu0 0.0
        %2182 = vmatprep.subr.mxu0 0.0
        %2183 = vmatpush2.msra.mxu0 0.0
        %2184 = vmatprep.subr.mxu0 0.0
        %2185 = vmatpush2.msra.mxu0 0.0
        %2186 = vmatprep.subr.mxu0 0.0
        %2187 = vmatpush2.msra.mxu0 0.0
        %2188 = vmatprep.subr.mxu0 0.0
        %2189 = vmatpush2.msra.mxu0 0.0
        %2190 = vmatprep.subr.mxu0 0.0
        %2191 = vmatpush2.msra.mxu0 0.0
        %2192 = vmatprep.subr.mxu0 0.0
        %2193 = vmatpush2.msra.mxu0 0.0
        %2194 = vmatprep.subr.mxu0 0.0
        %2195 = vmatpush2.msra.mxu0 0.0
        %2196 = vmatprep.mubr.f32.mxu0 0.0
        %2197 = vmatmul.mubr.f32.gmra.mxu0 %v2038
        %v2198 = vpop.f32.mrf.mxu0
        %v2199 = vadd.f32 0.0, %v2198
        %v2200 = vpop.f32.mrf.mxu0
        %v2201 = vadd.f32 0.0, %v2200
        %2202 = vdwg.mxu0
        %v2203 = vxor.u32 %v2199, 2147483648
        %v2204 = vmul.f32 %v2203, 1.442695
        %v2205 = vpow.pop %v2204
        %v2206 = vadd.f32 %v2205, 1.0
        %v2207 = vrcp.pop %v2206
        %v2208 = vmul.f32 1.0, %v2207
        %v2209 = vtanh.pop %v2201
        %v2210 = vsub.f32 %v2209, %v2038
        %v2211 = vmul.f32 %v2208, %v2210
        %v2212 = vadd.f32 %v2038, %v2211
        %v2213 = vadd.f32 %v2131, %v2212
        %2214 = vmatprep.subr.mxu0 %v758
        %2215 = vmatpush1.msra.mxu0 %v757
        %2216 = vmatprep.subr.mxu0 %v754
        %2217 = vmatpush1.msra.mxu0 %v753
        %2218 = vmatprep.subr.mxu0 %v750
        %2219 = vmatpush1.msra.mxu0 %v749
        %2220 = vmatprep.subr.mxu0 %v746
        %2221 = vmatpush1.msra.mxu0 %v745
        %2222 = vmatprep.subr.mxu0 %v742
        %2223 = vmatpush1.msra.mxu0 %v741
        %2224 = vmatprep.subr.mxu0 %v738
        %2225 = vmatpush1.msra.mxu0 %v737
        %2226 = vmatprep.subr.mxu0 %v734
        %2227 = vmatpush1.msra.mxu0 %v733
        %2228 = vmatprep.subr.mxu0 %v730
        %2229 = vmatpush1.msra.mxu0 %v729
        %2230 = vmatprep.subr.mxu0 %v726
        %2231 = vmatpush1.msra.mxu0 %v725
        %2232 = vmatprep.subr.mxu0 %v722
        %2233 = vmatpush1.msra.mxu0 %v721
        %2234 = vmatprep.subr.mxu0 %v718
        %2235 = vmatpush1.msra.mxu0 %v717
        %2236 = vmatprep.subr.mxu0 %v714
        %2237 = vmatpush1.msra.mxu0 %v713
        %2238 = vmatprep.subr.mxu0 %v710
        %2239 = vmatpush1.msra.mxu0 %v709
        %2240 = vmatprep.subr.mxu0 %v706
        %2241 = vmatpush1.msra.mxu0 %v705
        %2242 = vmatprep.subr.mxu0 %v702
        %2243 = vmatpush1.msra.mxu0 %v701
        %2244 = vmatprep.subr.mxu0 %v698
        %2245 = vmatpush1.msra.mxu0 %v697
        %2246 = vmatprep.subr.mxu0 0.0
        %2247 = vmatpush2.msra.mxu0 0.0
        %2248 = vmatprep.subr.mxu0 0.0
        %2249 = vmatpush2.msra.mxu0 0.0
        %2250 = vmatprep.subr.mxu0 0.0
        %2251 = vmatpush2.msra.mxu0 0.0
        %2252 = vmatprep.subr.mxu0 0.0
        %2253 = vmatpush2.msra.mxu0 0.0
        %2254 = vmatprep.subr.mxu0 0.0
        %2255 = vmatpush2.msra.mxu0 0.0
        %2256 = vmatprep.subr.mxu0 0.0
        %2257 = vmatpush2.msra.mxu0 0.0
        %2258 = vmatprep.subr.mxu0 0.0
        %2259 = vmatpush2.msra.mxu0 0.0
        %2260 = vmatprep.subr.mxu0 0.0
        %2261 = vmatpush2.msra.mxu0 0.0
        %2262 = vmatprep.subr.mxu0 0.0
        %2263 = vmatpush2.msra.mxu0 0.0
        %2264 = vmatprep.subr.mxu0 0.0
        %2265 = vmatpush2.msra.mxu0 0.0
        %2266 = vmatprep.subr.mxu0 0.0
        %2267 = vmatpush2.msra.mxu0 0.0
        %2268 = vmatprep.subr.mxu0 0.0
        %2269 = vmatpush2.msra.mxu0 0.0
        %2270 = vmatprep.subr.mxu0 0.0
        %2271 = vmatpush2.msra.mxu0 0.0
        %2272 = vmatprep.subr.mxu0 0.0
        %2273 = vmatpush2.msra.mxu0 0.0
        %2274 = vmatprep.subr.mxu0 0.0
        %2275 = vmatpush2.msra.mxu0 0.0
        %2276 = vmatprep.subr.mxu0 0.0
        %2277 = vmatpush2.msra.mxu0 0.0
        %2278 = vmatprep.mubr.f32.mxu0 0.0
        %2279 = vmatmul.mubr.f32.gmra.mxu0 %v2130
        %v2280 = vpop.f32.mrf.mxu0
        %v2281 = vadd.f32 0.0, %v2280
        %v2282 = vpop.f32.mrf.mxu0
        %v2283 = vadd.f32 0.0, %v2282
        %2284 = vdwg.mxu0
        %2285 = vmatprep.subr.mxu0 %v760
        %2286 = vmatpush1.msra.mxu0 %v759
        %2287 = vmatprep.subr.mxu0 %v756
        %2288 = vmatpush1.msra.mxu0 %v755
        %2289 = vmatprep.subr.mxu0 %v752
        %2290 = vmatpush1.msra.mxu0 %v751
        %2291 = vmatprep.subr.mxu0 %v748
        %2292 = vmatpush1.msra.mxu0 %v747
        %2293 = vmatprep.subr.mxu0 %v744
        %2294 = vmatpush1.msra.mxu0 %v743
        %2295 = vmatprep.subr.mxu0 %v740
        %2296 = vmatpush1.msra.mxu0 %v739
        %2297 = vmatprep.subr.mxu0 %v736
        %2298 = vmatpush1.msra.mxu0 %v735
        %2299 = vmatprep.subr.mxu0 %v732
        %2300 = vmatpush1.msra.mxu0 %v731
        %2301 = vmatprep.subr.mxu0 %v728
        %2302 = vmatpush1.msra.mxu0 %v727
        %2303 = vmatprep.subr.mxu0 %v724
        %2304 = vmatpush1.msra.mxu0 %v723
        %2305 = vmatprep.subr.mxu0 %v720
        %2306 = vmatpush1.msra.mxu0 %v719
        %2307 = vmatprep.subr.mxu0 %v716
        %2308 = vmatpush1.msra.mxu0 %v715
        %2309 = vmatprep.subr.mxu0 %v712
        %2310 = vmatpush1.msra.mxu0 %v711
        %2311 = vmatprep.subr.mxu0 %v708
        %2312 = vmatpush1.msra.mxu0 %v707
        %2313 = vmatprep.subr.mxu0 %v704
        %2314 = vmatpush1.msra.mxu0 %v703
        %2315 = vmatprep.subr.mxu0 %v700
        %2316 = vmatpush1.msra.mxu0 %v699
        %2317 = vmatprep.subr.mxu0 0.0
        %2318 = vmatpush2.msra.mxu0 0.0
        %2319 = vmatprep.subr.mxu0 0.0
        %2320 = vmatpush2.msra.mxu0 0.0
        %2321 = vmatprep.subr.mxu0 0.0
        %2322 = vmatpush2.msra.mxu0 0.0
        %2323 = vmatprep.subr.mxu0 0.0
        %2324 = vmatpush2.msra.mxu0 0.0
        %2325 = vmatprep.subr.mxu0 0.0
        %2326 = vmatpush2.msra.mxu0 0.0
        %2327 = vmatprep.subr.mxu0 0.0
        %2328 = vmatpush2.msra.mxu0 0.0
        %2329 = vmatprep.subr.mxu0 0.0
        %2330 = vmatpush2.msra.mxu0 0.0
        %2331 = vmatprep.subr.mxu0 0.0
        %2332 = vmatpush2.msra.mxu0 0.0
        %2333 = vmatprep.subr.mxu0 0.0
        %2334 = vmatpush2.msra.mxu0 0.0
        %2335 = vmatprep.subr.mxu0 0.0
        %2336 = vmatpush2.msra.mxu0 0.0
        %2337 = vmatprep.subr.mxu0 0.0
        %2338 = vmatpush2.msra.mxu0 0.0
        %2339 = vmatprep.subr.mxu0 0.0
        %2340 = vmatpush2.msra.mxu0 0.0
        %2341 = vmatprep.subr.mxu0 0.0
        %2342 = vmatpush2.msra.mxu0 0.0
        %2343 = vmatprep.subr.mxu0 0.0
        %2344 = vmatpush2.msra.mxu0 0.0
        %2345 = vmatprep.subr.mxu0 0.0
        %2346 = vmatpush2.msra.mxu0 0.0
        %2347 = vmatprep.subr.mxu0 0.0
        %2348 = vmatpush2.msra.mxu0 0.0
        %2349 = vmatprep.mubr.f32.mxu0 0.0
        %2350 = vmatmul.mubr.f32.gmra.mxu0 %v2130
        %v2351 = vpop.f32.mrf.mxu0
        %v2352 = vadd.f32 0.0, %v2351
        %v2353 = vpop.f32.mrf.mxu0
        %v2354 = vadd.f32 0.0, %v2353
        %2355 = vdwg.mxu0
        %v2356 = vxor.u32 %v2281, 2147483648
        %v2357 = vmul.f32 %v2356, 1.442695
        %v2358 = vpow.pop %v2357
        %v2359 = vadd.f32 %v2358, 1.0
        %v2360 = vrcp.pop %v2359
        %v2361 = vmul.f32 1.0, %v2360
        %v2362 = vxor.u32 %v2283, 2147483648
        %v2363 = vmul.f32 %v2362, 1.442695
        %v2364 = vpow.pop %v2363
        %v2365 = vadd.f32 %v2364, 1.0
        %v2366 = vrcp.pop %v2365
        %v2367 = vmul.f32 1.0, %v2366
        %v2368 = vsub.f32 %v2367, %v2130
        %v2369 = vmul.f32 %v2361, %v2368
        %v2370 = vadd.f32 %v2130, %v2369
        %v2371 = vadd.f32 %v2213, %v2370
        %v2372 = vxor.u32 %v2352, 2147483648
        %v2373 = vmul.f32 %v2372, 1.442695
        %v2374 = vpow.pop %v2373
        %v2375 = vadd.f32 %v2374, 1.0
        %v2376 = vrcp.pop %v2375
        %v2377 = vmul.f32 1.0, %v2376
        %v2378 = vmax.f32 %v2354, 0.0
        %v2379 = vsub.f32 %v2378, %v2130
        %v2380 = vmul.f32 %v2377, %v2379
        %v2381 = vadd.f32 %v2130, %v2380
        %v2382 = vadd.f32 %v2371, %v2381
        %v2383 = vmul.f32 %v2382, 0.125
        %2384 = vst [vmem:[%s464 + $0x8] sm:$0xff] %v2383
        %2385 = vmatprep.subr.mxu0 %v504
        %2386 = vmatpush1.msra.mxu0 %v503
        %2387 = vmatprep.subr.mxu0 %v502
        %2388 = vmatpush1.msra.mxu0 %v501
        %2389 = vmatprep.subr.mxu0 %v500
        %2390 = vmatpush1.msra.mxu0 %v499
        %2391 = vmatprep.subr.mxu0 %v498
        %2392 = vmatpush1.msra.mxu0 %v497
        %2393 = vmatprep.subr.mxu0 %v496
        %2394 = vmatpush1.msra.mxu0 %v495
        %2395 = vmatprep.subr.mxu0 %v494
        %2396 = vmatpush1.msra.mxu0 %v493
        %2397 = vmatprep.subr.mxu0 %v492
        %2398 = vmatpush1.msra.mxu0 %v491
        %2399 = vmatprep.subr.mxu0 %v490
        %2400 = vmatpush1.msra.mxu0 %v489
        %2401 = vmatprep.subr.mxu0 %v488
        %2402 = vmatpush1.msra.mxu0 %v487
        %2403 = vmatprep.subr.mxu0 %v486
        %2404 = vmatpush1.msra.mxu0 %v485
        %2405 = vmatprep.subr.mxu0 %v484
        %2406 = vmatpush1.msra.mxu0 %v483
        %2407 = vmatprep.subr.mxu0 %v482
        %2408 = vmatpush1.msra.mxu0 %v481
        %2409 = vmatprep.subr.mxu0 %v480
        %2410 = vmatpush1.msra.mxu0 %v479
        %2411 = vmatprep.subr.mxu0 %v478
        %2412 = vmatpush1.msra.mxu0 %v477
        %2413 = vmatprep.subr.mxu0 %v476
        %2414 = vmatpush1.msra.mxu0 %v475
        %2415 = vmatprep.subr.mxu0 %v474
        %2416 = vmatpush1.msra.mxu0 %v473
        %2417 = vmatprep.subr.mxu0 0.0
        %2418 = vmatpush2.msra.mxu0 0.0
        %2419 = vmatprep.subr.mxu0 0.0
        %2420 = vmatpush2.msra.mxu0 0.0
        %2421 = vmatprep.subr.mxu0 0.0
        %2422 = vmatpush2.msra.mxu0 0.0
        %2423 = vmatprep.subr.mxu0 0.0
        %2424 = vmatpush2.msra.mxu0 0.0
        %2425 = vmatprep.subr.mxu0 0.0
        %2426 = vmatpush2.msra.mxu0 0.0
        %2427 = vmatprep.subr.mxu0 0.0
        %2428 = vmatpush2.msra.mxu0 0.0
        %2429 = vmatprep.subr.mxu0 0.0
        %2430 = vmatpush2.msra.mxu0 0.0
        %2431 = vmatprep.subr.mxu0 0.0
        %2432 = vmatpush2.msra.mxu0 0.0
        %2433 = vmatprep.subr.mxu0 0.0
        %2434 = vmatpush2.msra.mxu0 0.0
        %2435 = vmatprep.subr.mxu0 0.0
        %2436 = vmatpush2.msra.mxu0 0.0
        %2437 = vmatprep.subr.mxu0 0.0
        %2438 = vmatpush2.msra.mxu0 0.0
        %2439 = vmatprep.subr.mxu0 0.0
        %2440 = vmatpush2.msra.mxu0 0.0
        %2441 = vmatprep.subr.mxu0 0.0
        %2442 = vmatpush2.msra.mxu0 0.0
        %2443 = vmatprep.subr.mxu0 0.0
        %2444 = vmatpush2.msra.mxu0 0.0
        %2445 = vmatprep.subr.mxu0 0.0
        %2446 = vmatpush2.msra.mxu0 0.0
        %2447 = vmatprep.subr.mxu0 0.0
        %2448 = vmatpush2.msra.mxu0 0.0
        %2449 = vmatprep.mubr.f32.mxu0 0.0
        %2450 = vmatmul.mubr.f32.gmra.mxu0 %v2383
        %v2451 = vpop.f32.mrf.mxu0
        %v2452 = vadd.f32 0.0, %v2451
        %v2453 = vpop.f32.mrf.mxu0
        %v2454 = vadd.f32 0.0, %v2453
        %2455 = vdwg.mxu0
        %v2456 = vadd.f32 %v876, %v2452
        %v2457 = vadd.f32 %v878, %v2454
        %v2458 = vxor.u32 %v2456, 2147483648
        %v2459 = vmul.f32 %v2458, 1.442695
        %v2460 = vpow.pop %v2459
        %v2461 = vadd.f32 %v2460, 1.0
        %v2462 = vrcp.pop %v2461
        %v2463 = vmul.f32 1.0, %v2462
        %v2464 = vtanh.pop %v2457
        %v2465 = vsub.f32 %v2464, %v2383
        %v2466 = vmul.f32 %v2463, %v2465
        %v2467 = vadd.f32 %v2383, %v2466
        %2468 = vmatprep.subr.mxu0 %v536
        %2469 = vmatpush1.msra.mxu0 %v535
        %2470 = vmatprep.subr.mxu0 %v534
        %2471 = vmatpush1.msra.mxu0 %v533
        %2472 = vmatprep.subr.mxu0 %v532
        %2473 = vmatpush1.msra.mxu0 %v531
        %2474 = vmatprep.subr.mxu0 %v530
        %2475 = vmatpush1.msra.mxu0 %v529
        %2476 = vmatprep.subr.mxu0 %v528
        %2477 = vmatpush1.msra.mxu0 %v527
        %2478 = vmatprep.subr.mxu0 %v526
        %2479 = vmatpush1.msra.mxu0 %v525
        %2480 = vmatprep.subr.mxu0 %v524
        %2481 = vmatpush1.msra.mxu0 %v523
        %2482 = vmatprep.subr.mxu0 %v522
        %2483 = vmatpush1.msra.mxu0 %v521
        %2484 = vmatprep.subr.mxu0 %v520
        %2485 = vmatpush1.msra.mxu0 %v519
        %2486 = vmatprep.subr.mxu0 %v518
        %2487 = vmatpush1.msra.mxu0 %v517
        %2488 = vmatprep.subr.mxu0 %v516
        %2489 = vmatpush1.msra.mxu0 %v515
        %2490 = vmatprep.subr.mxu0 %v514
        %2491 = vmatpush1.msra.mxu0 %v513
        %2492 = vmatprep.subr.mxu0 %v512
        %2493 = vmatpush1.msra.mxu0 %v511
        %2494 = vmatprep.subr.mxu0 %v510
        %2495 = vmatpush1.msra.mxu0 %v509
        %2496 = vmatprep.subr.mxu0 %v508
        %2497 = vmatpush1.msra.mxu0 %v507
        %2498 = vmatprep.subr.mxu0 %v506
        %2499 = vmatpush1.msra.mxu0 %v505
        %2500 = vmatprep.subr.mxu0 0.0
        %2501 = vmatpush2.msra.mxu0 0.0
        %2502 = vmatprep.subr.mxu0 0.0
        %2503 = vmatpush2.msra.mxu0 0.0
        %2504 = vmatprep.subr.mxu0 0.0
        %2505 = vmatpush2.msra.mxu0 0.0
        %2506 = vmatprep.subr.mxu0 0.0
        %2507 = vmatpush2.msra.mxu0 0.0
        %2508 = vmatprep.subr.mxu0 0.0
        %2509 = vmatpush2.msra.mxu0 0.0
        %2510 = vmatprep.subr.mxu0 0.0
        %2511 = vmatpush2.msra.mxu0 0.0
        %2512 = vmatprep.subr.mxu0 0.0
        %2513 = vmatpush2.msra.mxu0 0.0
        %2514 = vmatprep.subr.mxu0 0.0
        %2515 = vmatpush2.msra.mxu0 0.0
        %2516 = vmatprep.subr.mxu0 0.0
        %2517 = vmatpush2.msra.mxu0 0.0
        %2518 = vmatprep.subr.mxu0 0.0
        %2519 = vmatpush2.msra.mxu0 0.0
        %2520 = vmatprep.subr.mxu0 0.0
        %2521 = vmatpush2.msra.mxu0 0.0
        %2522 = vmatprep.subr.mxu0 0.0
        %2523 = vmatpush2.msra.mxu0 0.0
        %2524 = vmatprep.subr.mxu0 0.0
        %2525 = vmatpush2.msra.mxu0 0.0
        %2526 = vmatprep.subr.mxu0 0.0
        %2527 = vmatpush2.msra.mxu0 0.0
        %2528 = vmatprep.subr.mxu0 0.0
        %2529 = vmatpush2.msra.mxu0 0.0
        %2530 = vmatprep.subr.mxu0 0.0
        %2531 = vmatpush2.msra.mxu0 0.0
        %2532 = vmatprep.mubr.f32.mxu0 0.0
        %2533 = vmatmul.mubr.f32.gmra.mxu0 %v2467
        %v2534 = vpop.f32.mrf.mxu0
        %v2535 = vadd.f32 0.0, %v2534
        %v2536 = vpop.f32.mrf.mxu0
        %v2537 = vadd.f32 0.0, %v2536
        %2538 = vdwg.mxu0
        %v2539 = vxor.u32 %v2535, 2147483648
        %v2540 = vmul.f32 %v2539, 1.442695
        %v2541 = vpow.pop %v2540
        %v2542 = vadd.f32 %v2541, 1.0
        %v2543 = vrcp.pop %v2542
        %v2544 = vmul.f32 1.0, %v2543
        %v2545 = vxor.u32 %v2537, 2147483648
        %v2546 = vmul.f32 %v2545, 1.442695
        %v2547 = vpow.pop %v2546
        %v2548 = vadd.f32 %v2547, 1.0
        %v2549 = vrcp.pop %v2548
        %v2550 = vmul.f32 1.0, %v2549
        %v2551 = vsub.f32 %v2550, %v2467
        %v2552 = vmul.f32 %v2544, %v2551
        %v2553 = vadd.f32 %v2467, %v2552
        %2554 = vmatprep.subr.mxu0 %v628
        %2555 = vmatpush1.msra.mxu0 %v627
        %2556 = vmatprep.subr.mxu0 %v622
        %2557 = vmatpush1.msra.mxu0 %v621
        %2558 = vmatprep.subr.mxu0 %v616
        %2559 = vmatpush1.msra.mxu0 %v615
        %2560 = vmatprep.subr.mxu0 %v610
        %2561 = vmatpush1.msra.mxu0 %v609
        %2562 = vmatprep.subr.mxu0 %v604
        %2563 = vmatpush1.msra.mxu0 %v603
        %2564 = vmatprep.subr.mxu0 %v598
        %2565 = vmatpush1.msra.mxu0 %v597
        %2566 = vmatprep.subr.mxu0 %v592
        %2567 = vmatpush1.msra.mxu0 %v591
        %2568 = vmatprep.subr.mxu0 %v586
        %2569 = vmatpush1.msra.mxu0 %v585
        %2570 = vmatprep.subr.mxu0 %v580
        %2571 = vmatpush1.msra.mxu0 %v579
        %2572 = vmatprep.subr.mxu0 %v574
        %2573 = vmatpush1.msra.mxu0 %v573
        %2574 = vmatprep.subr.mxu0 %v568
        %2575 = vmatpush1.msra.mxu0 %v567
        %2576 = vmatprep.subr.mxu0 %v562
        %2577 = vmatpush1.msra.mxu0 %v561
        %2578 = vmatprep.subr.mxu0 %v556
        %2579 = vmatpush1.msra.mxu0 %v555
        %2580 = vmatprep.subr.mxu0 %v550
        %2581 = vmatpush1.msra.mxu0 %v549
        %2582 = vmatprep.subr.mxu0 %v544
        %2583 = vmatpush1.msra.mxu0 %v543
        %2584 = vmatprep.subr.mxu0 %v538
        %2585 = vmatpush1.msra.mxu0 %v537
        %2586 = vmatprep.subr.mxu0 0.0
        %2587 = vmatpush2.msra.mxu0 0.0
        %2588 = vmatprep.subr.mxu0 0.0
        %2589 = vmatpush2.msra.mxu0 0.0
        %2590 = vmatprep.subr.mxu0 0.0
        %2591 = vmatpush2.msra.mxu0 0.0
        %2592 = vmatprep.subr.mxu0 0.0
        %2593 = vmatpush2.msra.mxu0 0.0
        %2594 = vmatprep.subr.mxu0 0.0
        %2595 = vmatpush2.msra.mxu0 0.0
        %2596 = vmatprep.subr.mxu0 0.0
        %2597 = vmatpush2.msra.mxu0 0.0
        %2598 = vmatprep.subr.mxu0 0.0
        %2599 = vmatpush2.msra.mxu0 0.0
        %2600 = vmatprep.subr.mxu0 0.0
        %2601 = vmatpush2.msra.mxu0 0.0
        %2602 = vmatprep.subr.mxu0 0.0
        %2603 = vmatpush2.msra.mxu0 0.0
        %2604 = vmatprep.subr.mxu0 0.0
        %2605 = vmatpush2.msra.mxu0 0.0
        %2606 = vmatprep.subr.mxu0 0.0
        %2607 = vmatpush2.msra.mxu0 0.0
        %2608 = vmatprep.subr.mxu0 0.0
        %2609 = vmatpush2.msra.mxu0 0.0
        %2610 = vmatprep.subr.mxu0 0.0
        %2611 = vmatpush2.msra.mxu0 0.0
        %2612 = vmatprep.subr.mxu0 0.0
        %2613 = vmatpush2.msra.mxu0 0.0
        %2614 = vmatprep.subr.mxu0 0.0
        %2615 = vmatpush2.msra.mxu0 0.0
        %2616 = vmatprep.subr.mxu0 0.0
        %2617 = vmatpush2.msra.mxu0 0.0
        %2618 = vmatprep.mubr.f32.mxu0 0.0
        %2619 = vmatmul.mubr.f32.gmra.mxu0 %v2553
        %v2620 = vpop.f32.mrf.mxu0
        %v2621 = vadd.f32 0.0, %v2620
        %v2622 = vpop.f32.mrf.mxu0
        %v2623 = vadd.f32 0.0, %v2622
        %2624 = vdwg.mxu0
        %2625 = vmatprep.subr.mxu0 %v630
        %2626 = vmatpush1.msra.mxu0 %v629
        %2627 = vmatprep.subr.mxu0 %v624
        %2628 = vmatpush1.msra.mxu0 %v623
        %2629 = vmatprep.subr.mxu0 %v618
        %2630 = vmatpush1.msra.mxu0 %v617
        %2631 = vmatprep.subr.mxu0 %v612
        %2632 = vmatpush1.msra.mxu0 %v611
        %2633 = vmatprep.subr.mxu0 %v606
        %2634 = vmatpush1.msra.mxu0 %v605
        %2635 = vmatprep.subr.mxu0 %v600
        %2636 = vmatpush1.msra.mxu0 %v599
        %2637 = vmatprep.subr.mxu0 %v594
        %2638 = vmatpush1.msra.mxu0 %v593
        %2639 = vmatprep.subr.mxu0 %v588
        %2640 = vmatpush1.msra.mxu0 %v587
        %2641 = vmatprep.subr.mxu0 %v582
        %2642 = vmatpush1.msra.mxu0 %v581
        %2643 = vmatprep.subr.mxu0 %v576
        %2644 = vmatpush1.msra.mxu0 %v575
        %2645 = vmatprep.subr.mxu0 %v570
        %2646 = vmatpush1.msra.mxu0 %v569
        %2647 = vmatprep.subr.mxu0 %v564
        %2648 = vmatpush1.msra.mxu0 %v563
        %2649 = vmatprep.subr.mxu0 %v558
        %2650 = vmatpush1.msra.mxu0 %v557
        %2651 = vmatprep.subr.mxu0 %v552
        %2652 = vmatpush1.msra.mxu0 %v551
        %2653 = vmatprep.subr.mxu0 %v546
        %2654 = vmatpush1.msra.mxu0 %v545
        %2655 = vmatprep.subr.mxu0 %v540
        %2656 = vmatpush1.msra.mxu0 %v539
        %2657 = vmatprep.subr.mxu0 0.0
        %2658 = vmatpush2.msra.mxu0 0.0
        %2659 = vmatprep.subr.mxu0 0.0
        %2660 = vmatpush2.msra.mxu0 0.0
        %2661 = vmatprep.subr.mxu0 0.0
        %2662 = vmatpush2.msra.mxu0 0.0
        %2663 = vmatprep.subr.mxu0 0.0
        %2664 = vmatpush2.msra.mxu0 0.0
        %2665 = vmatprep.subr.mxu0 0.0
        %2666 = vmatpush2.msra.mxu0 0.0
        %2667 = vmatprep.subr.mxu0 0.0
        %2668 = vmatpush2.msra.mxu0 0.0
        %2669 = vmatprep.subr.mxu0 0.0
        %2670 = vmatpush2.msra.mxu0 0.0
        %2671 = vmatprep.subr.mxu0 0.0
        %2672 = vmatpush2.msra.mxu0 0.0
        %2673 = vmatprep.subr.mxu0 0.0
        %2674 = vmatpush2.msra.mxu0 0.0
        %2675 = vmatprep.subr.mxu0 0.0
        %2676 = vmatpush2.msra.mxu0 0.0
        %2677 = vmatprep.subr.mxu0 0.0
        %2678 = vmatpush2.msra.mxu0 0.0
        %2679 = vmatprep.subr.mxu0 0.0
        %2680 = vmatpush2.msra.mxu0 0.0
        %2681 = vmatprep.subr.mxu0 0.0
        %2682 = vmatpush2.msra.mxu0 0.0
        %2683 = vmatprep.subr.mxu0 0.0
        %2684 = vmatpush2.msra.mxu0 0.0
        %2685 = vmatprep.subr.mxu0 0.0
        %2686 = vmatpush2.msra.mxu0 0.0
        %2687 = vmatprep.subr.mxu0 0.0
        %2688 = vmatpush2.msra.mxu0 0.0
        %2689 = vmatprep.mubr.f32.mxu0 0.0
        %2690 = vmatmul.mubr.f32.gmra.mxu0 %v2553
        %v2691 = vpop.f32.mrf.mxu0
        %v2692 = vadd.f32 0.0, %v2691
        %v2693 = vpop.f32.mrf.mxu0
        %v2694 = vadd.f32 0.0, %v2693
        %2695 = vdwg.mxu0
        %2696 = vmatprep.subr.mxu0 %v632
        %2697 = vmatpush1.msra.mxu0 %v631
        %2698 = vmatprep.subr.mxu0 %v626
        %2699 = vmatpush1.msra.mxu0 %v625
        %2700 = vmatprep.subr.mxu0 %v620
        %2701 = vmatpush1.msra.mxu0 %v619
        %2702 = vmatprep.subr.mxu0 %v614
        %2703 = vmatpush1.msra.mxu0 %v613
        %2704 = vmatprep.subr.mxu0 %v608
        %2705 = vmatpush1.msra.mxu0 %v607
        %2706 = vmatprep.subr.mxu0 %v602
        %2707 = vmatpush1.msra.mxu0 %v601
        %2708 = vmatprep.subr.mxu0 %v596
        %2709 = vmatpush1.msra.mxu0 %v595
        %2710 = vmatprep.subr.mxu0 %v590
        %2711 = vmatpush1.msra.mxu0 %v589
        %2712 = vmatprep.subr.mxu0 %v584
        %2713 = vmatpush1.msra.mxu0 %v583
        %2714 = vmatprep.subr.mxu0 %v578
        %2715 = vmatpush1.msra.mxu0 %v577
        %2716 = vmatprep.subr.mxu0 %v572
        %2717 = vmatpush1.msra.mxu0 %v571
        %2718 = vmatprep.subr.mxu0 %v566
        %2719 = vmatpush1.msra.mxu0 %v565
        %2720 = vmatprep.subr.mxu0 %v560
        %2721 = vmatpush1.msra.mxu0 %v559
        %2722 = vmatprep.subr.mxu0 %v554
        %2723 = vmatpush1.msra.mxu0 %v553
        %2724 = vmatprep.subr.mxu0 %v548
        %2725 = vmatpush1.msra.mxu0 %v547
        %2726 = vmatprep.subr.mxu0 %v542
        %2727 = vmatpush1.msra.mxu0 %v541
        %2728 = vmatprep.subr.mxu0 0.0
        %2729 = vmatpush2.msra.mxu0 0.0
        %2730 = vmatprep.subr.mxu0 0.0
        %2731 = vmatpush2.msra.mxu0 0.0
        %2732 = vmatprep.subr.mxu0 0.0
        %2733 = vmatpush2.msra.mxu0 0.0
        %2734 = vmatprep.subr.mxu0 0.0
        %2735 = vmatpush2.msra.mxu0 0.0
        %2736 = vmatprep.subr.mxu0 0.0
        %2737 = vmatpush2.msra.mxu0 0.0
        %2738 = vmatprep.subr.mxu0 0.0
        %2739 = vmatpush2.msra.mxu0 0.0
        %2740 = vmatprep.subr.mxu0 0.0
        %2741 = vmatpush2.msra.mxu0 0.0
        %2742 = vmatprep.subr.mxu0 0.0
        %2743 = vmatpush2.msra.mxu0 0.0
        %2744 = vmatprep.subr.mxu0 0.0
        %2745 = vmatpush2.msra.mxu0 0.0
        %2746 = vmatprep.subr.mxu0 0.0
        %2747 = vmatpush2.msra.mxu0 0.0
        %2748 = vmatprep.subr.mxu0 0.0
        %2749 = vmatpush2.msra.mxu0 0.0
        %2750 = vmatprep.subr.mxu0 0.0
        %2751 = vmatpush2.msra.mxu0 0.0
        %2752 = vmatprep.subr.mxu0 0.0
        %2753 = vmatpush2.msra.mxu0 0.0
        %2754 = vmatprep.subr.mxu0 0.0
        %2755 = vmatpush2.msra.mxu0 0.0
        %2756 = vmatprep.subr.mxu0 0.0
        %2757 = vmatpush2.msra.mxu0 0.0
        %2758 = vmatprep.subr.mxu0 0.0
        %2759 = vmatpush2.msra.mxu0 0.0
        %2760 = vmatprep.mubr.f32.mxu0 0.0
        %2761 = vmatmul.mubr.f32.gmra.mxu0 %v2553
        %v2762 = vpop.f32.mrf.mxu0
        %v2763 = vadd.f32 0.0, %v2762
        %v2764 = vpop.f32.mrf.mxu0
        %v2765 = vadd.f32 0.0, %v2764
        %2766 = vdwg.mxu0
        %v2767 = vxor.u32 %v2621, 2147483648
        %v2768 = vmul.f32 %v2767, 1.442695
        %v2769 = vpow.pop %v2768
        %v2770 = vadd.f32 %v2769, 1.0
        %v2771 = vrcp.pop %v2770
        %v2772 = vmul.f32 1.0, %v2771
        %v2773 = vmax.f32 %v2623, 0.0
        %v2774 = vsub.f32 %v2773, %v2553
        %v2775 = vmul.f32 %v2772, %v2774
        %v2776 = vadd.f32 %v2553, %v2775
        %v2777 = vadd.f32 %v2553, %v2776
        %v2778 = vxor.u32 %v2692, 2147483648
        %v2779 = vmul.f32 %v2778, 1.442695
        %v2780 = vpow.pop %v2779
        %v2781 = vadd.f32 %v2780, 1.0
        %v2782 = vrcp.pop %v2781
        %v2783 = vmul.f32 1.0, %v2782
        %v2784 = vmax.f32 %v2694, 0.0
        %v2785 = vsub.f32 %v2784, %v2553
        %v2786 = vmul.f32 %v2783, %v2785
        %v2787 = vadd.f32 %v2553, %v2786
        %v2788 = vadd.f32 %v2777, %v2787
        %v2789 = vxor.u32 %v2763, 2147483648
        %v2790 = vmul.f32 %v2789, 1.442695
        %v2791 = vpow.pop %v2790
        %v2792 = vadd.f32 %v2791, 1.0
        %v2793 = vrcp.pop %v2792
        %v2794 = vmul.f32 1.0, %v2793
        %v2795 = vsub.f32 %v2765, %v2553
        %v2796 = vmul.f32 %v2794, %v2795
        %v2797 = vadd.f32 %v2553, %v2796
        %v2798 = vadd.f32 %v2788, %v2797
        %2799 = vmatprep.subr.mxu0 %v664
        %2800 = vmatpush1.msra.mxu0 %v663
        %2801 = vmatprep.subr.mxu0 %v662
        %2802 = vmatpush1.msra.mxu0 %v661
        %2803 = vmatprep.subr.mxu0 %v660
        %2804 = vmatpush1.msra.mxu0 %v659
        %2805 = vmatprep.subr.mxu0 %v658
        %2806 = vmatpush1.msra.mxu0 %v657
        %2807 = vmatprep.subr.mxu0 %v656
        %2808 = vmatpush1.msra.mxu0 %v655
        %2809 = vmatprep.subr.mxu0 %v654
        %2810 = vmatpush1.msra.mxu0 %v653
        %2811 = vmatprep.subr.mxu0 %v652
        %2812 = vmatpush1.msra.mxu0 %v651
        %2813 = vmatprep.subr.mxu0 %v650
        %2814 = vmatpush1.msra.mxu0 %v649
        %2815 = vmatprep.subr.mxu0 %v648
        %2816 = vmatpush1.msra.mxu0 %v647
        %2817 = vmatprep.subr.mxu0 %v646
        %2818 = vmatpush1.msra.mxu0 %v645
        %2819 = vmatprep.subr.mxu0 %v644
        %2820 = vmatpush1.msra.mxu0 %v643
        %2821 = vmatprep.subr.mxu0 %v642
        %2822 = vmatpush1.msra.mxu0 %v641
        %2823 = vmatprep.subr.mxu0 %v640
        %2824 = vmatpush1.msra.mxu0 %v639
        %2825 = vmatprep.subr.mxu0 %v638
        %2826 = vmatpush1.msra.mxu0 %v637
        %2827 = vmatprep.subr.mxu0 %v636
        %2828 = vmatpush1.msra.mxu0 %v635
        %2829 = vmatprep.subr.mxu0 %v634
        %2830 = vmatpush1.msra.mxu0 %v633
        %2831 = vmatprep.subr.mxu0 0.0
        %2832 = vmatpush2.msra.mxu0 0.0
        %2833 = vmatprep.subr.mxu0 0.0
        %2834 = vmatpush2.msra.mxu0 0.0
        %2835 = vmatprep.subr.mxu0 0.0
        %2836 = vmatpush2.msra.mxu0 0.0
        %2837 = vmatprep.subr.mxu0 0.0
        %2838 = vmatpush2.msra.mxu0 0.0
        %2839 = vmatprep.subr.mxu0 0.0
        %2840 = vmatpush2.msra.mxu0 0.0
        %2841 = vmatprep.subr.mxu0 0.0
        %2842 = vmatpush2.msra.mxu0 0.0
        %2843 = vmatprep.subr.mxu0 0.0
        %2844 = vmatpush2.msra.mxu0 0.0
        %2845 = vmatprep.subr.mxu0 0.0
        %2846 = vmatpush2.msra.mxu0 0.0
        %2847 = vmatprep.subr.mxu0 0.0
        %2848 = vmatpush2.msra.mxu0 0.0
        %2849 = vmatprep.subr.mxu0 0.0
        %2850 = vmatpush2.msra.mxu0 0.0
        %2851 = vmatprep.subr.mxu0 0.0
        %2852 = vmatpush2.msra.mxu0 0.0
        %2853 = vmatprep.subr.mxu0 0.0
        %2854 = vmatpush2.msra.mxu0 0.0
        %2855 = vmatprep.subr.mxu0 0.0
        %2856 = vmatpush2.msra.mxu0 0.0
        %2857 = vmatprep.subr.mxu0 0.0
        %2858 = vmatpush2.msra.mxu0 0.0
        %2859 = vmatprep.subr.mxu0 0.0
        %2860 = vmatpush2.msra.mxu0 0.0
        %2861 = vmatprep.subr.mxu0 0.0
        %2862 = vmatpush2.msra.mxu0 0.0
        %2863 = vmatprep.mubr.f32.mxu0 0.0
        %2864 = vmatmul.mubr.f32.gmra.mxu0 %v2776
        %v2865 = vpop.f32.mrf.mxu0
        %v2866 = vadd.f32 0.0, %v2865
        %v2867 = vpop.f32.mrf.mxu0
        %v2868 = vadd.f32 0.0, %v2867
        %2869 = vdwg.mxu0
        %v2870 = vxor.u32 %v2866, 2147483648
        %v2871 = vmul.f32 %v2870, 1.442695
        %v2872 = vpow.pop %v2871
        %v2873 = vadd.f32 %v2872, 1.0
        %v2874 = vrcp.pop %v2873
        %v2875 = vmul.f32 1.0, %v2874
        %v2876 = vtanh.pop %v2868
        %v2877 = vsub.f32 %v2876, %v2776
        %v2878 = vmul.f32 %v2875, %v2877
        %v2879 = vadd.f32 %v2776, %v2878
        %v2880 = vadd.f32 %v2798, %v2879
        %2881 = vmatprep.subr.mxu0 %v696
        %2882 = vmatpush1.msra.mxu0 %v695
        %2883 = vmatprep.subr.mxu0 %v694
        %2884 = vmatpush1.msra.mxu0 %v693
        %2885 = vmatprep.subr.mxu0 %v692
        %2886 = vmatpush1.msra.mxu0 %v691
        %2887 = vmatprep.subr.mxu0 %v690
        %2888 = vmatpush1.msra.mxu0 %v689
        %2889 = vmatprep.subr.mxu0 %v688
        %2890 = vmatpush1.msra.mxu0 %v687
        %2891 = vmatprep.subr.mxu0 %v686
        %2892 = vmatpush1.msra.mxu0 %v685
        %2893 = vmatprep.subr.mxu0 %v684
        %2894 = vmatpush1.msra.mxu0 %v683
        %2895 = vmatprep.subr.mxu0 %v682
        %2896 = vmatpush1.msra.mxu0 %v681
        %2897 = vmatprep.subr.mxu0 %v680
        %2898 = vmatpush1.msra.mxu0 %v679
        %2899 = vmatprep.subr.mxu0 %v678
        %2900 = vmatpush1.msra.mxu0 %v677
        %2901 = vmatprep.subr.mxu0 %v676
        %2902 = vmatpush1.msra.mxu0 %v675
        %2903 = vmatprep.subr.mxu0 %v674
        %2904 = vmatpush1.msra.mxu0 %v673
        %2905 = vmatprep.subr.mxu0 %v672
        %2906 = vmatpush1.msra.mxu0 %v671
        %2907 = vmatprep.subr.mxu0 %v670
        %2908 = vmatpush1.msra.mxu0 %v669
        %2909 = vmatprep.subr.mxu0 %v668
        %2910 = vmatpush1.msra.mxu0 %v667
        %2911 = vmatprep.subr.mxu0 %v666
        %2912 = vmatpush1.msra.mxu0 %v665
        %2913 = vmatprep.subr.mxu0 0.0
        %2914 = vmatpush2.msra.mxu0 0.0
        %2915 = vmatprep.subr.mxu0 0.0
        %2916 = vmatpush2.msra.mxu0 0.0
        %2917 = vmatprep.subr.mxu0 0.0
        %2918 = vmatpush2.msra.mxu0 0.0
        %2919 = vmatprep.subr.mxu0 0.0
        %2920 = vmatpush2.msra.mxu0 0.0
        %2921 = vmatprep.subr.mxu0 0.0
        %2922 = vmatpush2.msra.mxu0 0.0
        %2923 = vmatprep.subr.mxu0 0.0
        %2924 = vmatpush2.msra.mxu0 0.0
        %2925 = vmatprep.subr.mxu0 0.0
        %2926 = vmatpush2.msra.mxu0 0.0
        %2927 = vmatprep.subr.mxu0 0.0
        %2928 = vmatpush2.msra.mxu0 0.0
        %2929 = vmatprep.subr.mxu0 0.0
        %2930 = vmatpush2.msra.mxu0 0.0
        %2931 = vmatprep.subr.mxu0 0.0
        %2932 = vmatpush2.msra.mxu0 0.0
        %2933 = vmatprep.subr.mxu0 0.0
        %2934 = vmatpush2.msra.mxu0 0.0
        %2935 = vmatprep.subr.mxu0 0.0
        %2936 = vmatpush2.msra.mxu0 0.0
        %2937 = vmatprep.subr.mxu0 0.0
        %2938 = vmatpush2.msra.mxu0 0.0
        %2939 = vmatprep.subr.mxu0 0.0
        %2940 = vmatpush2.msra.mxu0 0.0
        %2941 = vmatprep.subr.mxu0 0.0
        %2942 = vmatpush2.msra.mxu0 0.0
        %2943 = vmatprep.subr.mxu0 0.0
        %2944 = vmatpush2.msra.mxu0 0.0
        %2945 = vmatprep.mubr.f32.mxu0 0.0
        %2946 = vmatmul.mubr.f32.gmra.mxu0 %v2787
        %v2947 = vpop.f32.mrf.mxu0
        %v2948 = vadd.f32 0.0, %v2947
        %v2949 = vpop.f32.mrf.mxu0
        %v2950 = vadd.f32 0.0, %v2949
        %2951 = vdwg.mxu0
        %v2952 = vxor.u32 %v2948, 2147483648
        %v2953 = vmul.f32 %v2952, 1.442695
        %v2954 = vpow.pop %v2953
        %v2955 = vadd.f32 %v2954, 1.0
        %v2956 = vrcp.pop %v2955
        %v2957 = vmul.f32 1.0, %v2956
        %v2958 = vtanh.pop %v2950
        %v2959 = vsub.f32 %v2958, %v2787
        %v2960 = vmul.f32 %v2957, %v2959
        %v2961 = vadd.f32 %v2787, %v2960
        %v2962 = vadd.f32 %v2880, %v2961
        %2963 = vmatprep.subr.mxu0 %v758
        %2964 = vmatpush1.msra.mxu0 %v757
        %2965 = vmatprep.subr.mxu0 %v754
        %2966 = vmatpush1.msra.mxu0 %v753
        %2967 = vmatprep.subr.mxu0 %v750
        %2968 = vmatpush1.msra.mxu0 %v749
        %2969 = vmatprep.subr.mxu0 %v746
        %2970 = vmatpush1.msra.mxu0 %v745
        %2971 = vmatprep.subr.mxu0 %v742
        %2972 = vmatpush1.msra.mxu0 %v741
        %2973 = vmatprep.subr.mxu0 %v738
        %2974 = vmatpush1.msra.mxu0 %v737
        %2975 = vmatprep.subr.mxu0 %v734
        %2976 = vmatpush1.msra.mxu0 %v733
        %2977 = vmatprep.subr.mxu0 %v730
        %2978 = vmatpush1.msra.mxu0 %v729
        %2979 = vmatprep.subr.mxu0 %v726
        %2980 = vmatpush1.msra.mxu0 %v725
        %2981 = vmatprep.subr.mxu0 %v722
        %2982 = vmatpush1.msra.mxu0 %v721
        %2983 = vmatprep.subr.mxu0 %v718
        %2984 = vmatpush1.msra.mxu0 %v717
        %2985 = vmatprep.subr.mxu0 %v714
        %2986 = vmatpush1.msra.mxu0 %v713
        %2987 = vmatprep.subr.mxu0 %v710
        %2988 = vmatpush1.msra.mxu0 %v709
        %2989 = vmatprep.subr.mxu0 %v706
        %2990 = vmatpush1.msra.mxu0 %v705
        %2991 = vmatprep.subr.mxu0 %v702
        %2992 = vmatpush1.msra.mxu0 %v701
        %2993 = vmatprep.subr.mxu0 %v698
        %2994 = vmatpush1.msra.mxu0 %v697
        %2995 = vmatprep.subr.mxu0 0.0
        %2996 = vmatpush2.msra.mxu0 0.0
        %2997 = vmatprep.subr.mxu0 0.0
        %2998 = vmatpush2.msra.mxu0 0.0
        %2999 = vmatprep.subr.mxu0 0.0
        %3000 = vmatpush2.msra.mxu0 0.0
        %3001 = vmatprep.subr.mxu0 0.0
        %3002 = vmatpush2.msra.mxu0 0.0
        %3003 = vmatprep.subr.mxu0 0.0
        %3004 = vmatpush2.msra.mxu0 0.0
        %3005 = vmatprep.subr.mxu0 0.0
        %3006 = vmatpush2.msra.mxu0 0.0
        %3007 = vmatprep.subr.mxu0 0.0
        %3008 = vmatpush2.msra.mxu0 0.0
        %3009 = vmatprep.subr.mxu0 0.0
        %3010 = vmatpush2.msra.mxu0 0.0
        %3011 = vmatprep.subr.mxu0 0.0
        %3012 = vmatpush2.msra.mxu0 0.0
        %3013 = vmatprep.subr.mxu0 0.0
        %3014 = vmatpush2.msra.mxu0 0.0
        %3015 = vmatprep.subr.mxu0 0.0
        %3016 = vmatpush2.msra.mxu0 0.0
        %3017 = vmatprep.subr.mxu0 0.0
        %3018 = vmatpush2.msra.mxu0 0.0
        %3019 = vmatprep.subr.mxu0 0.0
        %3020 = vmatpush2.msra.mxu0 0.0
        %3021 = vmatprep.subr.mxu0 0.0
        %3022 = vmatpush2.msra.mxu0 0.0
        %3023 = vmatprep.subr.mxu0 0.0
        %3024 = vmatpush2.msra.mxu0 0.0
        %3025 = vmatprep.subr.mxu0 0.0
        %3026 = vmatpush2.msra.mxu0 0.0
        %3027 = vmatprep.mubr.f32.mxu0 0.0
        %3028 = vmatmul.mubr.f32.gmra.mxu0 %v2879
        %v3029 = vpop.f32.mrf.mxu0
        %v3030 = vadd.f32 0.0, %v3029
        %v3031 = vpop.f32.mrf.mxu0
        %v3032 = vadd.f32 0.0, %v3031
        %3033 = vdwg.mxu0
        %3034 = vmatprep.subr.mxu0 %v760
        %3035 = vmatpush1.msra.mxu0 %v759
        %3036 = vmatprep.subr.mxu0 %v756
        %3037 = vmatpush1.msra.mxu0 %v755
        %3038 = vmatprep.subr.mxu0 %v752
        %3039 = vmatpush1.msra.mxu0 %v751
        %3040 = vmatprep.subr.mxu0 %v748
        %3041 = vmatpush1.msra.mxu0 %v747
        %3042 = vmatprep.subr.mxu0 %v744
        %3043 = vmatpush1.msra.mxu0 %v743
        %3044 = vmatprep.subr.mxu0 %v740
        %3045 = vmatpush1.msra.mxu0 %v739
        %3046 = vmatprep.subr.mxu0 %v736
        %3047 = vmatpush1.msra.mxu0 %v735
        %3048 = vmatprep.subr.mxu0 %v732
        %3049 = vmatpush1.msra.mxu0 %v731
        %3050 = vmatprep.subr.mxu0 %v728
        %3051 = vmatpush1.msra.mxu0 %v727
        %3052 = vmatprep.subr.mxu0 %v724
        %3053 = vmatpush1.msra.mxu0 %v723
        %3054 = vmatprep.subr.mxu0 %v720
        %3055 = vmatpush1.msra.mxu0 %v719
        %3056 = vmatprep.subr.mxu0 %v716
        %3057 = vmatpush1.msra.mxu0 %v715
        %3058 = vmatprep.subr.mxu0 %v712
        %3059 = vmatpush1.msra.mxu0 %v711
        %3060 = vmatprep.subr.mxu0 %v708
        %3061 = vmatpush1.msra.mxu0 %v707
        %3062 = vmatprep.subr.mxu0 %v704
        %3063 = vmatpush1.msra.mxu0 %v703
        %3064 = vmatprep.subr.mxu0 %v700
        %3065 = vmatpush1.msra.mxu0 %v699
        %3066 = vmatprep.subr.mxu0 0.0
        %3067 = vmatpush2.msra.mxu0 0.0
        %3068 = vmatprep.subr.mxu0 0.0
        %3069 = vmatpush2.msra.mxu0 0.0
        %3070 = vmatprep.subr.mxu0 0.0
        %3071 = vmatpush2.msra.mxu0 0.0
        %3072 = vmatprep.subr.mxu0 0.0
        %3073 = vmatpush2.msra.mxu0 0.0
        %3074 = vmatprep.subr.mxu0 0.0
        %3075 = vmatpush2.msra.mxu0 0.0
        %3076 = vmatprep.subr.mxu0 0.0
        %3077 = vmatpush2.msra.mxu0 0.0
        %3078 = vmatprep.subr.mxu0 0.0
        %3079 = vmatpush2.msra.mxu0 0.0
        %3080 = vmatprep.subr.mxu0 0.0
        %3081 = vmatpush2.msra.mxu0 0.0
        %3082 = vmatprep.subr.mxu0 0.0
        %3083 = vmatpush2.msra.mxu0 0.0
        %3084 = vmatprep.subr.mxu0 0.0
        %3085 = vmatpush2.msra.mxu0 0.0
        %3086 = vmatprep.subr.mxu0 0.0
        %3087 = vmatpush2.msra.mxu0 0.0
        %3088 = vmatprep.subr.mxu0 0.0
        %3089 = vmatpush2.msra.mxu0 0.0
        %3090 = vmatprep.subr.mxu0 0.0
        %3091 = vmatpush2.msra.mxu0 0.0
        %3092 = vmatprep.subr.mxu0 0.0
        %3093 = vmatpush2.msra.mxu0 0.0
        %3094 = vmatprep.subr.mxu0 0.0
        %3095 = vmatpush2.msra.mxu0 0.0
        %3096 = vmatprep.subr.mxu0 0.0
        %3097 = vmatpush2.msra.mxu0 0.0
        %3098 = vmatprep.mubr.f32.mxu0 0.0
        %3099 = vmatmul.mubr.f32.gmra.mxu0 %v2879
        %v3100 = vpop.f32.mrf.mxu0
        %v3101 = vadd.f32 0.0, %v3100
        %v3102 = vpop.f32.mrf.mxu0
        %v3103 = vadd.f32 0.0, %v3102
        %3104 = vdwg.mxu0
        %v3105 = vxor.u32 %v3030, 2147483648
        %v3106 = vmul.f32 %v3105, 1.442695
        %v3107 = vpow.pop %v3106
        %v3108 = vadd.f32 %v3107, 1.0
        %v3109 = vrcp.pop %v3108
        %v3110 = vmul.f32 1.0, %v3109
        %v3111 = vxor.u32 %v3032, 2147483648
        %v3112 = vmul.f32 %v3111, 1.442695
        %v3113 = vpow.pop %v3112
        %v3114 = vadd.f32 %v3113, 1.0
        %v3115 = vrcp.pop %v3114
        %v3116 = vmul.f32 1.0, %v3115
        %v3117 = vsub.f32 %v3116, %v2879
        %v3118 = vmul.f32 %v3110, %v3117
        %v3119 = vadd.f32 %v2879, %v3118
        %v3120 = vadd.f32 %v2962, %v3119
        %v3121 = vxor.u32 %v3101, 2147483648
        %v3122 = vmul.f32 %v3121, 1.442695
        %v3123 = vpow.pop %v3122
        %v3124 = vadd.f32 %v3123, 1.0
        %v3125 = vrcp.pop %v3124
        %v3126 = vmul.f32 1.0, %v3125
        %v3127 = vmax.f32 %v3103, 0.0
        %v3128 = vsub.f32 %v3127, %v2879
        %v3129 = vmul.f32 %v3126, %v3128
        %v3130 = vadd.f32 %v2879, %v3129
        %v3131 = vadd.f32 %v3120, %v3130
        %v3132 = vmul.f32 %v3131, 0.125
        %3133 = vst [vmem:[%s464 + $0x10] sm:$0xff] %v3132
        %3134 = vmatprep.subr.mxu0 %v504
        %3135 = vmatpush1.msra.mxu0 %v503
        %3136 = vmatprep.subr.mxu0 %v502
        %3137 = vmatpush1.msra.mxu0 %v501
        %3138 = vmatprep.subr.mxu0 %v500
        %3139 = vmatpush1.msra.mxu0 %v499
        %3140 = vmatprep.subr.mxu0 %v498
        %3141 = vmatpush1.msra.mxu0 %v497
        %3142 = vmatprep.subr.mxu0 %v496
        %3143 = vmatpush1.msra.mxu0 %v495
        %3144 = vmatprep.subr.mxu0 %v494
        %3145 = vmatpush1.msra.mxu0 %v493
        %3146 = vmatprep.subr.mxu0 %v492
        %3147 = vmatpush1.msra.mxu0 %v491
        %3148 = vmatprep.subr.mxu0 %v490
        %3149 = vmatpush1.msra.mxu0 %v489
        %3150 = vmatprep.subr.mxu0 %v488
        %3151 = vmatpush1.msra.mxu0 %v487
        %3152 = vmatprep.subr.mxu0 %v486
        %3153 = vmatpush1.msra.mxu0 %v485
        %3154 = vmatprep.subr.mxu0 %v484
        %3155 = vmatpush1.msra.mxu0 %v483
        %3156 = vmatprep.subr.mxu0 %v482
        %3157 = vmatpush1.msra.mxu0 %v481
        %3158 = vmatprep.subr.mxu0 %v480
        %3159 = vmatpush1.msra.mxu0 %v479
        %3160 = vmatprep.subr.mxu0 %v478
        %3161 = vmatpush1.msra.mxu0 %v477
        %3162 = vmatprep.subr.mxu0 %v476
        %3163 = vmatpush1.msra.mxu0 %v475
        %3164 = vmatprep.subr.mxu0 %v474
        %3165 = vmatpush1.msra.mxu0 %v473
        %3166 = vmatprep.subr.mxu0 0.0
        %3167 = vmatpush2.msra.mxu0 0.0
        %3168 = vmatprep.subr.mxu0 0.0
        %3169 = vmatpush2.msra.mxu0 0.0
        %3170 = vmatprep.subr.mxu0 0.0
        %3171 = vmatpush2.msra.mxu0 0.0
        %3172 = vmatprep.subr.mxu0 0.0
        %3173 = vmatpush2.msra.mxu0 0.0
        %3174 = vmatprep.subr.mxu0 0.0
        %3175 = vmatpush2.msra.mxu0 0.0
        %3176 = vmatprep.subr.mxu0 0.0
        %3177 = vmatpush2.msra.mxu0 0.0
        %3178 = vmatprep.subr.mxu0 0.0
        %3179 = vmatpush2.msra.mxu0 0.0
        %3180 = vmatprep.subr.mxu0 0.0
        %3181 = vmatpush2.msra.mxu0 0.0
        %3182 = vmatprep.subr.mxu0 0.0
        %3183 = vmatpush2.msra.mxu0 0.0
        %3184 = vmatprep.subr.mxu0 0.0
        %3185 = vmatpush2.msra.mxu0 0.0
        %3186 = vmatprep.subr.mxu0 0.0
        %3187 = vmatpush2.msra.mxu0 0.0
        %3188 = vmatprep.subr.mxu0 0.0
        %3189 = vmatpush2.msra.mxu0 0.0
        %3190 = vmatprep.subr.mxu0 0.0
        %3191 = vmatpush2.msra.mxu0 0.0
        %3192 = vmatprep.subr.mxu0 0.0
        %3193 = vmatpush2.msra.mxu0 0.0
        %3194 = vmatprep.subr.mxu0 0.0
        %3195 = vmatpush2.msra.mxu0 0.0
        %3196 = vmatprep.subr.mxu0 0.0
        %3197 = vmatpush2.msra.mxu0 0.0
        %3198 = vmatprep.mubr.f32.mxu0 0.0
        %3199 = vmatmul.mubr.f32.gmra.mxu0 %v3132
        %v3200 = vpop.f32.mrf.mxu0
        %v3201 = vadd.f32 0.0, %v3200
        %v3202 = vpop.f32.mrf.mxu0
        %v3203 = vadd.f32 0.0, %v3202
        %3204 = vdwg.mxu0
        %v3205 = vadd.f32 %v882, %v3201
        %v3206 = vadd.f32 %v884, %v3203
        %v3207 = vxor.u32 %v3205, 2147483648
        %v3208 = vmul.f32 %v3207, 1.442695
        %v3209 = vpow.pop %v3208
        %v3210 = vadd.f32 %v3209, 1.0
        %v3211 = vrcp.pop %v3210
        %v3212 = vmul.f32 1.0, %v3211
        %v3213 = vtanh.pop %v3206
        %v3214 = vsub.f32 %v3213, %v3132
        %v3215 = vmul.f32 %v3212, %v3214
        %v3216 = vadd.f32 %v3132, %v3215
        %3217 = vmatprep.subr.mxu0 %v536
        %3218 = vmatpush1.msra.mxu0 %v535
        %3219 = vmatprep.subr.mxu0 %v534
        %3220 = vmatpush1.msra.mxu0 %v533
        %3221 = vmatprep.subr.mxu0 %v532
        %3222 = vmatpush1.msra.mxu0 %v531
        %3223 = vmatprep.subr.mxu0 %v530
        %3224 = vmatpush1.msra.mxu0 %v529
        %3225 = vmatprep.subr.mxu0 %v528
        %3226 = vmatpush1.msra.mxu0 %v527
        %3227 = vmatprep.subr.mxu0 %v526
        %3228 = vmatpush1.msra.mxu0 %v525
        %3229 = vmatprep.subr.mxu0 %v524
        %3230 = vmatpush1.msra.mxu0 %v523
        %3231 = vmatprep.subr.mxu0 %v522
        %3232 = vmatpush1.msra.mxu0 %v521
        %3233 = vmatprep.subr.mxu0 %v520
        %3234 = vmatpush1.msra.mxu0 %v519
        %3235 = vmatprep.subr.mxu0 %v518
        %3236 = vmatpush1.msra.mxu0 %v517
        %3237 = vmatprep.subr.mxu0 %v516
        %3238 = vmatpush1.msra.mxu0 %v515
        %3239 = vmatprep.subr.mxu0 %v514
        %3240 = vmatpush1.msra.mxu0 %v513
        %3241 = vmatprep.subr.mxu0 %v512
        %3242 = vmatpush1.msra.mxu0 %v511
        %3243 = vmatprep.subr.mxu0 %v510
        %3244 = vmatpush1.msra.mxu0 %v509
        %3245 = vmatprep.subr.mxu0 %v508
        %3246 = vmatpush1.msra.mxu0 %v507
        %3247 = vmatprep.subr.mxu0 %v506
        %3248 = vmatpush1.msra.mxu0 %v505
        %3249 = vmatprep.subr.mxu0 0.0
        %3250 = vmatpush2.msra.mxu0 0.0
        %3251 = vmatprep.subr.mxu0 0.0
        %3252 = vmatpush2.msra.mxu0 0.0
        %3253 = vmatprep.subr.mxu0 0.0
        %3254 = vmatpush2.msra.mxu0 0.0
        %3255 = vmatprep.subr.mxu0 0.0
        %3256 = vmatpush2.msra.mxu0 0.0
        %3257 = vmatprep.subr.mxu0 0.0
        %3258 = vmatpush2.msra.mxu0 0.0
        %3259 = vmatprep.subr.mxu0 0.0
        %3260 = vmatpush2.msra.mxu0 0.0
        %3261 = vmatprep.subr.mxu0 0.0
        %3262 = vmatpush2.msra.mxu0 0.0
        %3263 = vmatprep.subr.mxu0 0.0
        %3264 = vmatpush2.msra.mxu0 0.0
        %3265 = vmatprep.subr.mxu0 0.0
        %3266 = vmatpush2.msra.mxu0 0.0
        %3267 = vmatprep.subr.mxu0 0.0
        %3268 = vmatpush2.msra.mxu0 0.0
        %3269 = vmatprep.subr.mxu0 0.0
        %3270 = vmatpush2.msra.mxu0 0.0
        %3271 = vmatprep.subr.mxu0 0.0
        %3272 = vmatpush2.msra.mxu0 0.0
        %3273 = vmatprep.subr.mxu0 0.0
        %3274 = vmatpush2.msra.mxu0 0.0
        %3275 = vmatprep.subr.mxu0 0.0
        %3276 = vmatpush2.msra.mxu0 0.0
        %3277 = vmatprep.subr.mxu0 0.0
        %3278 = vmatpush2.msra.mxu0 0.0
        %3279 = vmatprep.subr.mxu0 0.0
        %3280 = vmatpush2.msra.mxu0 0.0
        %3281 = vmatprep.mubr.f32.mxu0 0.0
        %3282 = vmatmul.mubr.f32.gmra.mxu0 %v3216
        %v3283 = vpop.f32.mrf.mxu0
        %v3284 = vadd.f32 0.0, %v3283
        %v3285 = vpop.f32.mrf.mxu0
        %v3286 = vadd.f32 0.0, %v3285
        %3287 = vdwg.mxu0
        %v3288 = vxor.u32 %v3284, 2147483648
        %v3289 = vmul.f32 %v3288, 1.442695
        %v3290 = vpow.pop %v3289
        %v3291 = vadd.f32 %v3290, 1.0
        %v3292 = vrcp.pop %v3291
        %v3293 = vmul.f32 1.0, %v3292
        %v3294 = vxor.u32 %v3286, 2147483648
        %v3295 = vmul.f32 %v3294, 1.442695
        %v3296 = vpow.pop %v3295
        %v3297 = vadd.f32 %v3296, 1.0
        %v3298 = vrcp.pop %v3297
        %v3299 = vmul.f32 1.0, %v3298
        %v3300 = vsub.f32 %v3299, %v3216
        %v3301 = vmul.f32 %v3293, %v3300
        %v3302 = vadd.f32 %v3216, %v3301
        %3303 = vmatprep.subr.mxu0 %v628
        %3304 = vmatpush1.msra.mxu0 %v627
        %3305 = vmatprep.subr.mxu0 %v622
        %3306 = vmatpush1.msra.mxu0 %v621
        %3307 = vmatprep.subr.mxu0 %v616
        %3308 = vmatpush1.msra.mxu0 %v615
        %3309 = vmatprep.subr.mxu0 %v610
        %3310 = vmatpush1.msra.mxu0 %v609
        %3311 = vmatprep.subr.mxu0 %v604
        %3312 = vmatpush1.msra.mxu0 %v603
        %3313 = vmatprep.subr.mxu0 %v598
        %3314 = vmatpush1.msra.mxu0 %v597
        %3315 = vmatprep.subr.mxu0 %v592
        %3316 = vmatpush1.msra.mxu0 %v591
        %3317 = vmatprep.subr.mxu0 %v586
        %3318 = vmatpush1.msra.mxu0 %v585
        %3319 = vmatprep.subr.mxu0 %v580
        %3320 = vmatpush1.msra.mxu0 %v579
        %3321 = vmatprep.subr.mxu0 %v574
        %3322 = vmatpush1.msra.mxu0 %v573
        %3323 = vmatprep.subr.mxu0 %v568
        %3324 = vmatpush1.msra.mxu0 %v567
        %3325 = vmatprep.subr.mxu0 %v562
        %3326 = vmatpush1.msra.mxu0 %v561
        %3327 = vmatprep.subr.mxu0 %v556
        %3328 = vmatpush1.msra.mxu0 %v555
        %3329 = vmatprep.subr.mxu0 %v550
        %3330 = vmatpush1.msra.mxu0 %v549
        %3331 = vmatprep.subr.mxu0 %v544
        %3332 = vmatpush1.msra.mxu0 %v543
        %3333 = vmatprep.subr.mxu0 %v538
        %3334 = vmatpush1.msra.mxu0 %v537
        %3335 = vmatprep.subr.mxu0 0.0
        %3336 = vmatpush2.msra.mxu0 0.0
        %3337 = vmatprep.subr.mxu0 0.0
        %3338 = vmatpush2.msra.mxu0 0.0
        %3339 = vmatprep.subr.mxu0 0.0
        %3340 = vmatpush2.msra.mxu0 0.0
        %3341 = vmatprep.subr.mxu0 0.0
        %3342 = vmatpush2.msra.mxu0 0.0
        %3343 = vmatprep.subr.mxu0 0.0
        %3344 = vmatpush2.msra.mxu0 0.0
        %3345 = vmatprep.subr.mxu0 0.0
        %3346 = vmatpush2.msra.mxu0 0.0
        %3347 = vmatprep.subr.mxu0 0.0
        %3348 = vmatpush2.msra.mxu0 0.0
        %3349 = vmatprep.subr.mxu0 0.0
        %3350 = vmatpush2.msra.mxu0 0.0
        %3351 = vmatprep.subr.mxu0 0.0
        %3352 = vmatpush2.msra.mxu0 0.0
        %3353 = vmatprep.subr.mxu0 0.0
        %3354 = vmatpush2.msra.mxu0 0.0
        %3355 = vmatprep.subr.mxu0 0.0
        %3356 = vmatpush2.msra.mxu0 0.0
        %3357 = vmatprep.subr.mxu0 0.0
        %3358 = vmatpush2.msra.mxu0 0.0
        %3359 = vmatprep.subr.mxu0 0.0
        %3360 = vmatpush2.msra.mxu0 0.0
        %3361 = vmatprep.subr.mxu0 0.0
        %3362 = vmatpush2.msra.mxu0 0.0
        %3363 = vmatprep.subr.mxu0 0.0
        %3364 = vmatpush2.msra.mxu0 0.0
        %3365 = vmatprep.subr.mxu0 0.0
        %3366 = vmatpush2.msra.mxu0 0.0
        %3367 = vmatprep.mubr.f32.mxu0 0.0
        %3368 = vmatmul.mubr.f32.gmra.mxu0 %v3302
        %v3369 = vpop.f32.mrf.mxu0
        %v3370 = vadd.f32 0.0, %v3369
        %v3371 = vpop.f32.mrf.mxu0
        %v3372 = vadd.f32 0.0, %v3371
        %3373 = vdwg.mxu0
        %3374 = vmatprep.subr.mxu0 %v630
        %3375 = vmatpush1.msra.mxu0 %v629
        %3376 = vmatprep.subr.mxu0 %v624
        %3377 = vmatpush1.msra.mxu0 %v623
        %3378 = vmatprep.subr.mxu0 %v618
        %3379 = vmatpush1.msra.mxu0 %v617
        %3380 = vmatprep.subr.mxu0 %v612
        %3381 = vmatpush1.msra.mxu0 %v611
        %3382 = vmatprep.subr.mxu0 %v606
        %3383 = vmatpush1.msra.mxu0 %v605
        %3384 = vmatprep.subr.mxu0 %v600
        %3385 = vmatpush1.msra.mxu0 %v599
        %3386 = vmatprep.subr.mxu0 %v594
        %3387 = vmatpush1.msra.mxu0 %v593
        %3388 = vmatprep.subr.mxu0 %v588
        %3389 = vmatpush1.msra.mxu0 %v587
        %3390 = vmatprep.subr.mxu0 %v582
        %3391 = vmatpush1.msra.mxu0 %v581
        %3392 = vmatprep.subr.mxu0 %v576
        %3393 = vmatpush1.msra.mxu0 %v575
        %3394 = vmatprep.subr.mxu0 %v570
        %3395 = vmatpush1.msra.mxu0 %v569
        %3396 = vmatprep.subr.mxu0 %v564
        %3397 = vmatpush1.msra.mxu0 %v563
        %3398 = vmatprep.subr.mxu0 %v558
        %3399 = vmatpush1.msra.mxu0 %v557
        %3400 = vmatprep.subr.mxu0 %v552
        %3401 = vmatpush1.msra.mxu0 %v551
        %3402 = vmatprep.subr.mxu0 %v546
        %3403 = vmatpush1.msra.mxu0 %v545
        %3404 = vmatprep.subr.mxu0 %v540
        %3405 = vmatpush1.msra.mxu0 %v539
        %3406 = vmatprep.subr.mxu0 0.0
        %3407 = vmatpush2.msra.mxu0 0.0
        %3408 = vmatprep.subr.mxu0 0.0
        %3409 = vmatpush2.msra.mxu0 0.0
        %3410 = vmatprep.subr.mxu0 0.0
        %3411 = vmatpush2.msra.mxu0 0.0
        %3412 = vmatprep.subr.mxu0 0.0
        %3413 = vmatpush2.msra.mxu0 0.0
        %3414 = vmatprep.subr.mxu0 0.0
        %3415 = vmatpush2.msra.mxu0 0.0
        %3416 = vmatprep.subr.mxu0 0.0
        %3417 = vmatpush2.msra.mxu0 0.0
        %3418 = vmatprep.subr.mxu0 0.0
        %3419 = vmatpush2.msra.mxu0 0.0
        %3420 = vmatprep.subr.mxu0 0.0
        %3421 = vmatpush2.msra.mxu0 0.0
        %3422 = vmatprep.subr.mxu0 0.0
        %3423 = vmatpush2.msra.mxu0 0.0
        %3424 = vmatprep.subr.mxu0 0.0
        %3425 = vmatpush2.msra.mxu0 0.0
        %3426 = vmatprep.subr.mxu0 0.0
        %3427 = vmatpush2.msra.mxu0 0.0
        %3428 = vmatprep.subr.mxu0 0.0
        %3429 = vmatpush2.msra.mxu0 0.0
        %3430 = vmatprep.subr.mxu0 0.0
        %3431 = vmatpush2.msra.mxu0 0.0
        %3432 = vmatprep.subr.mxu0 0.0
        %3433 = vmatpush2.msra.mxu0 0.0
        %3434 = vmatprep.subr.mxu0 0.0
        %3435 = vmatpush2.msra.mxu0 0.0
        %3436 = vmatprep.subr.mxu0 0.0
        %3437 = vmatpush2.msra.mxu0 0.0
        %3438 = vmatprep.mubr.f32.mxu0 0.0
        %3439 = vmatmul.mubr.f32.gmra.mxu0 %v3302
        %v3440 = vpop.f32.mrf.mxu0
        %v3441 = vadd.f32 0.0, %v3440
        %v3442 = vpop.f32.mrf.mxu0
        %v3443 = vadd.f32 0.0, %v3442
        %3444 = vdwg.mxu0
        %3445 = vmatprep.subr.mxu0 %v632
        %3446 = vmatpush1.msra.mxu0 %v631
        %3447 = vmatprep.subr.mxu0 %v626
        %3448 = vmatpush1.msra.mxu0 %v625
        %3449 = vmatprep.subr.mxu0 %v620
        %3450 = vmatpush1.msra.mxu0 %v619
        %3451 = vmatprep.subr.mxu0 %v614
        %3452 = vmatpush1.msra.mxu0 %v613
        %3453 = vmatprep.subr.mxu0 %v608
        %3454 = vmatpush1.msra.mxu0 %v607
        %3455 = vmatprep.subr.mxu0 %v602
        %3456 = vmatpush1.msra.mxu0 %v601
        %3457 = vmatprep.subr.mxu0 %v596
        %3458 = vmatpush1.msra.mxu0 %v595
        %3459 = vmatprep.subr.mxu0 %v590
        %3460 = vmatpush1.msra.mxu0 %v589
        %3461 = vmatprep.subr.mxu0 %v584
        %3462 = vmatpush1.msra.mxu0 %v583
        %3463 = vmatprep.subr.mxu0 %v578
        %3464 = vmatpush1.msra.mxu0 %v577
        %3465 = vmatprep.subr.mxu0 %v572
        %3466 = vmatpush1.msra.mxu0 %v571
        %3467 = vmatprep.subr.mxu0 %v566
        %3468 = vmatpush1.msra.mxu0 %v565
        %3469 = vmatprep.subr.mxu0 %v560
        %3470 = vmatpush1.msra.mxu0 %v559
        %3471 = vmatprep.subr.mxu0 %v554
        %3472 = vmatpush1.msra.mxu0 %v553
        %3473 = vmatprep.subr.mxu0 %v548
        %3474 = vmatpush1.msra.mxu0 %v547
        %3475 = vmatprep.subr.mxu0 %v542
        %3476 = vmatpush1.msra.mxu0 %v541
        %3477 = vmatprep.subr.mxu0 0.0
        %3478 = vmatpush2.msra.mxu0 0.0
        %3479 = vmatprep.subr.mxu0 0.0
        %3480 = vmatpush2.msra.mxu0 0.0
        %3481 = vmatprep.subr.mxu0 0.0
        %3482 = vmatpush2.msra.mxu0 0.0
        %3483 = vmatprep.subr.mxu0 0.0
        %3484 = vmatpush2.msra.mxu0 0.0
        %3485 = vmatprep.subr.mxu0 0.0
        %3486 = vmatpush2.msra.mxu0 0.0
        %3487 = vmatprep.subr.mxu0 0.0
        %3488 = vmatpush2.msra.mxu0 0.0
        %3489 = vmatprep.subr.mxu0 0.0
        %3490 = vmatpush2.msra.mxu0 0.0
        %3491 = vmatprep.subr.mxu0 0.0
        %3492 = vmatpush2.msra.mxu0 0.0
        %3493 = vmatprep.subr.mxu0 0.0
        %3494 = vmatpush2.msra.mxu0 0.0
        %3495 = vmatprep.subr.mxu0 0.0
        %3496 = vmatpush2.msra.mxu0 0.0
        %3497 = vmatprep.subr.mxu0 0.0
        %3498 = vmatpush2.msra.mxu0 0.0
        %3499 = vmatprep.subr.mxu0 0.0
        %3500 = vmatpush2.msra.mxu0 0.0
        %3501 = vmatprep.subr.mxu0 0.0
        %3502 = vmatpush2.msra.mxu0 0.0
        %3503 = vmatprep.subr.mxu0 0.0
        %3504 = vmatpush2.msra.mxu0 0.0
        %3505 = vmatprep.subr.mxu0 0.0
        %3506 = vmatpush2.msra.mxu0 0.0
        %3507 = vmatprep.subr.mxu0 0.0
        %3508 = vmatpush2.msra.mxu0 0.0
        %3509 = vmatprep.mubr.f32.mxu0 0.0
        %3510 = vmatmul.mubr.f32.gmra.mxu0 %v3302
        %v3511 = vpop.f32.mrf.mxu0
        %v3512 = vadd.f32 0.0, %v3511
        %v3513 = vpop.f32.mrf.mxu0
        %v3514 = vadd.f32 0.0, %v3513
        %3515 = vdwg.mxu0
        %v3516 = vxor.u32 %v3370, 2147483648
        %v3517 = vmul.f32 %v3516, 1.442695
        %v3518 = vpow.pop %v3517
        %v3519 = vadd.f32 %v3518, 1.0
        %v3520 = vrcp.pop %v3519
        %v3521 = vmul.f32 1.0, %v3520
        %v3522 = vmax.f32 %v3372, 0.0
        %v3523 = vsub.f32 %v3522, %v3302
        %v3524 = vmul.f32 %v3521, %v3523
        %v3525 = vadd.f32 %v3302, %v3524
        %v3526 = vadd.f32 %v3302, %v3525
        %v3527 = vxor.u32 %v3441, 2147483648
        %v3528 = vmul.f32 %v3527, 1.442695
        %v3529 = vpow.pop %v3528
        %v3530 = vadd.f32 %v3529, 1.0
        %v3531 = vrcp.pop %v3530
        %v3532 = vmul.f32 1.0, %v3531
        %v3533 = vmax.f32 %v3443, 0.0
        %v3534 = vsub.f32 %v3533, %v3302
        %v3535 = vmul.f32 %v3532, %v3534
        %v3536 = vadd.f32 %v3302, %v3535
        %v3537 = vadd.f32 %v3526, %v3536
        %v3538 = vxor.u32 %v3512, 2147483648
        %v3539 = vmul.f32 %v3538, 1.442695
        %v3540 = vpow.pop %v3539
        %v3541 = vadd.f32 %v3540, 1.0
        %v3542 = vrcp.pop %v3541
        %v3543 = vmul.f32 1.0, %v3542
        %v3544 = vsub.f32 %v3514, %v3302
        %v3545 = vmul.f32 %v3543, %v3544
        %v3546 = vadd.f32 %v3302, %v3545
        %v3547 = vadd.f32 %v3537, %v3546
        %3548 = vmatprep.subr.mxu0 %v664
        %3549 = vmatpush1.msra.mxu0 %v663
        %3550 = vmatprep.subr.mxu0 %v662
        %3551 = vmatpush1.msra.mxu0 %v661
        %3552 = vmatprep.subr.mxu0 %v660
        %3553 = vmatpush1.msra.mxu0 %v659
        %3554 = vmatprep.subr.mxu0 %v658
        %3555 = vmatpush1.msra.mxu0 %v657
        %3556 = vmatprep.subr.mxu0 %v656
        %3557 = vmatpush1.msra.mxu0 %v655
        %3558 = vmatprep.subr.mxu0 %v654
        %3559 = vmatpush1.msra.mxu0 %v653
        %3560 = vmatprep.subr.mxu0 %v652
        %3561 = vmatpush1.msra.mxu0 %v651
        %3562 = vmatprep.subr.mxu0 %v650
        %3563 = vmatpush1.msra.mxu0 %v649
        %3564 = vmatprep.subr.mxu0 %v648
        %3565 = vmatpush1.msra.mxu0 %v647
        %3566 = vmatprep.subr.mxu0 %v646
        %3567 = vmatpush1.msra.mxu0 %v645
        %3568 = vmatprep.subr.mxu0 %v644
        %3569 = vmatpush1.msra.mxu0 %v643
        %3570 = vmatprep.subr.mxu0 %v642
        %3571 = vmatpush1.msra.mxu0 %v641
        %3572 = vmatprep.subr.mxu0 %v640
        %3573 = vmatpush1.msra.mxu0 %v639
        %3574 = vmatprep.subr.mxu0 %v638
        %3575 = vmatpush1.msra.mxu0 %v637
        %3576 = vmatprep.subr.mxu0 %v636
        %3577 = vmatpush1.msra.mxu0 %v635
        %3578 = vmatprep.subr.mxu0 %v634
        %3579 = vmatpush1.msra.mxu0 %v633
        %3580 = vmatprep.subr.mxu0 0.0
        %3581 = vmatpush2.msra.mxu0 0.0
        %3582 = vmatprep.subr.mxu0 0.0
        %3583 = vmatpush2.msra.mxu0 0.0
        %3584 = vmatprep.subr.mxu0 0.0
        %3585 = vmatpush2.msra.mxu0 0.0
        %3586 = vmatprep.subr.mxu0 0.0
        %3587 = vmatpush2.msra.mxu0 0.0
        %3588 = vmatprep.subr.mxu0 0.0
        %3589 = vmatpush2.msra.mxu0 0.0
        %3590 = vmatprep.subr.mxu0 0.0
        %3591 = vmatpush2.msra.mxu0 0.0
        %3592 = vmatprep.subr.mxu0 0.0
        %3593 = vmatpush2.msra.mxu0 0.0
        %3594 = vmatprep.subr.mxu0 0.0
        %3595 = vmatpush2.msra.mxu0 0.0
        %3596 = vmatprep.subr.mxu0 0.0
        %3597 = vmatpush2.msra.mxu0 0.0
        %3598 = vmatprep.subr.mxu0 0.0
        %3599 = vmatpush2.msra.mxu0 0.0
        %3600 = vmatprep.subr.mxu0 0.0
        %3601 = vmatpush2.msra.mxu0 0.0
        %3602 = vmatprep.subr.mxu0 0.0
        %3603 = vmatpush2.msra.mxu0 0.0
        %3604 = vmatprep.subr.mxu0 0.0
        %3605 = vmatpush2.msra.mxu0 0.0
        %3606 = vmatprep.subr.mxu0 0.0
        %3607 = vmatpush2.msra.mxu0 0.0
        %3608 = vmatprep.subr.mxu0 0.0
        %3609 = vmatpush2.msra.mxu0 0.0
        %3610 = vmatprep.subr.mxu0 0.0
        %3611 = vmatpush2.msra.mxu0 0.0
        %3612 = vmatprep.mubr.f32.mxu0 0.0
        %3613 = vmatmul.mubr.f32.gmra.mxu0 %v3525
        %v3614 = vpop.f32.mrf.mxu0
        %v3615 = vadd.f32 0.0, %v3614
        %v3616 = vpop.f32.mrf.mxu0
        %v3617 = vadd.f32 0.0, %v3616
        %3618 = vdwg.mxu0
        %v3619 = vxor.u32 %v3615, 2147483648
        %v3620 = vmul.f32 %v3619, 1.442695
        %v3621 = vpow.pop %v3620
        %v3622 = vadd.f32 %v3621, 1.0
        %v3623 = vrcp.pop %v3622
        %v3624 = vmul.f32 1.0, %v3623
        %v3625 = vtanh.pop %v3617
        %v3626 = vsub.f32 %v3625, %v3525
        %v3627 = vmul.f32 %v3624, %v3626
        %v3628 = vadd.f32 %v3525, %v3627
        %v3629 = vadd.f32 %v3547, %v3628
        %3630 = vmatprep.subr.mxu0 %v696
        %3631 = vmatpush1.msra.mxu0 %v695
        %3632 = vmatprep.subr.mxu0 %v694
        %3633 = vmatpush1.msra.mxu0 %v693
        %3634 = vmatprep.subr.mxu0 %v692
        %3635 = vmatpush1.msra.mxu0 %v691
        %3636 = vmatprep.subr.mxu0 %v690
        %3637 = vmatpush1.msra.mxu0 %v689
        %3638 = vmatprep.subr.mxu0 %v688
        %3639 = vmatpush1.msra.mxu0 %v687
        %3640 = vmatprep.subr.mxu0 %v686
        %3641 = vmatpush1.msra.mxu0 %v685
        %3642 = vmatprep.subr.mxu0 %v684
        %3643 = vmatpush1.msra.mxu0 %v683
        %3644 = vmatprep.subr.mxu0 %v682
        %3645 = vmatpush1.msra.mxu0 %v681
        %3646 = vmatprep.subr.mxu0 %v680
        %3647 = vmatpush1.msra.mxu0 %v679
        %3648 = vmatprep.subr.mxu0 %v678
        %3649 = vmatpush1.msra.mxu0 %v677
        %3650 = vmatprep.subr.mxu0 %v676
        %3651 = vmatpush1.msra.mxu0 %v675
        %3652 = vmatprep.subr.mxu0 %v674
        %3653 = vmatpush1.msra.mxu0 %v673
        %3654 = vmatprep.subr.mxu0 %v672
        %3655 = vmatpush1.msra.mxu0 %v671
        %3656 = vmatprep.subr.mxu0 %v670
        %3657 = vmatpush1.msra.mxu0 %v669
        %3658 = vmatprep.subr.mxu0 %v668
        %3659 = vmatpush1.msra.mxu0 %v667
        %3660 = vmatprep.subr.mxu0 %v666
        %3661 = vmatpush1.msra.mxu0 %v665
        %3662 = vmatprep.subr.mxu0 0.0
        %3663 = vmatpush2.msra.mxu0 0.0
        %3664 = vmatprep.subr.mxu0 0.0
        %3665 = vmatpush2.msra.mxu0 0.0
        %3666 = vmatprep.subr.mxu0 0.0
        %3667 = vmatpush2.msra.mxu0 0.0
        %3668 = vmatprep.subr.mxu0 0.0
        %3669 = vmatpush2.msra.mxu0 0.0
        %3670 = vmatprep.subr.mxu0 0.0
        %3671 = vmatpush2.msra.mxu0 0.0
        %3672 = vmatprep.subr.mxu0 0.0
        %3673 = vmatpush2.msra.mxu0 0.0
        %3674 = vmatprep.subr.mxu0 0.0
        %3675 = vmatpush2.msra.mxu0 0.0
        %3676 = vmatprep.subr.mxu0 0.0
        %3677 = vmatpush2.msra.mxu0 0.0
        %3678 = vmatprep.subr.mxu0 0.0
        %3679 = vmatpush2.msra.mxu0 0.0
        %3680 = vmatprep.subr.mxu0 0.0
        %3681 = vmatpush2.msra.mxu0 0.0
        %3682 = vmatprep.subr.mxu0 0.0
        %3683 = vmatpush2.msra.mxu0 0.0
        %3684 = vmatprep.subr.mxu0 0.0
        %3685 = vmatpush2.msra.mxu0 0.0
        %3686 = vmatprep.subr.mxu0 0.0
        %3687 = vmatpush2.msra.mxu0 0.0
        %3688 = vmatprep.subr.mxu0 0.0
        %3689 = vmatpush2.msra.mxu0 0.0
        %3690 = vmatprep.subr.mxu0 0.0
        %3691 = vmatpush2.msra.mxu0 0.0
        %3692 = vmatprep.subr.mxu0 0.0
        %3693 = vmatpush2.msra.mxu0 0.0
        %3694 = vmatprep.mubr.f32.mxu0 0.0
        %3695 = vmatmul.mubr.f32.gmra.mxu0 %v3536
        %v3696 = vpop.f32.mrf.mxu0
        %v3697 = vadd.f32 0.0, %v3696
        %v3698 = vpop.f32.mrf.mxu0
        %v3699 = vadd.f32 0.0, %v3698
        %3700 = vdwg.mxu0
        %v3701 = vxor.u32 %v3697, 2147483648
        %v3702 = vmul.f32 %v3701, 1.442695
        %v3703 = vpow.pop %v3702
        %v3704 = vadd.f32 %v3703, 1.0
        %v3705 = vrcp.pop %v3704
        %v3706 = vmul.f32 1.0, %v3705
        %v3707 = vtanh.pop %v3699
        %v3708 = vsub.f32 %v3707, %v3536
        %v3709 = vmul.f32 %v3706, %v3708
        %v3710 = vadd.f32 %v3536, %v3709
        %v3711 = vadd.f32 %v3629, %v3710
        %3712 = vmatprep.subr.mxu0 %v758
        %3713 = vmatpush1.msra.mxu0 %v757
        %3714 = vmatprep.subr.mxu0 %v754
        %3715 = vmatpush1.msra.mxu0 %v753
        %3716 = vmatprep.subr.mxu0 %v750
        %3717 = vmatpush1.msra.mxu0 %v749
        %3718 = vmatprep.subr.mxu0 %v746
        %3719 = vmatpush1.msra.mxu0 %v745
        %3720 = vmatprep.subr.mxu0 %v742
        %3721 = vmatpush1.msra.mxu0 %v741
        %3722 = vmatprep.subr.mxu0 %v738
        %3723 = vmatpush1.msra.mxu0 %v737
        %3724 = vmatprep.subr.mxu0 %v734
        %3725 = vmatpush1.msra.mxu0 %v733
        %3726 = vmatprep.subr.mxu0 %v730
        %3727 = vmatpush1.msra.mxu0 %v729
        %3728 = vmatprep.subr.mxu0 %v726
        %3729 = vmatpush1.msra.mxu0 %v725
        %3730 = vmatprep.subr.mxu0 %v722
        %3731 = vmatpush1.msra.mxu0 %v721
        %3732 = vmatprep.subr.mxu0 %v718
        %3733 = vmatpush1.msra.mxu0 %v717
        %3734 = vmatprep.subr.mxu0 %v714
        %3735 = vmatpush1.msra.mxu0 %v713
        %3736 = vmatprep.subr.mxu0 %v710
        %3737 = vmatpush1.msra.mxu0 %v709
        %3738 = vmatprep.subr.mxu0 %v706
        %3739 = vmatpush1.msra.mxu0 %v705
        %3740 = vmatprep.subr.mxu0 %v702
        %3741 = vmatpush1.msra.mxu0 %v701
        %3742 = vmatprep.subr.mxu0 %v698
        %3743 = vmatpush1.msra.mxu0 %v697
        %3744 = vmatprep.subr.mxu0 0.0
        %3745 = vmatpush2.msra.mxu0 0.0
        %3746 = vmatprep.subr.mxu0 0.0
        %3747 = vmatpush2.msra.mxu0 0.0
        %3748 = vmatprep.subr.mxu0 0.0
        %3749 = vmatpush2.msra.mxu0 0.0
        %3750 = vmatprep.subr.mxu0 0.0
        %3751 = vmatpush2.msra.mxu0 0.0
        %3752 = vmatprep.subr.mxu0 0.0
        %3753 = vmatpush2.msra.mxu0 0.0
        %3754 = vmatprep.subr.mxu0 0.0
        %3755 = vmatpush2.msra.mxu0 0.0
        %3756 = vmatprep.subr.mxu0 0.0
        %3757 = vmatpush2.msra.mxu0 0.0
        %3758 = vmatprep.subr.mxu0 0.0
        %3759 = vmatpush2.msra.mxu0 0.0
        %3760 = vmatprep.subr.mxu0 0.0
        %3761 = vmatpush2.msra.mxu0 0.0
        %3762 = vmatprep.subr.mxu0 0.0
        %3763 = vmatpush2.msra.mxu0 0.0
        %3764 = vmatprep.subr.mxu0 0.0
        %3765 = vmatpush2.msra.mxu0 0.0
        %3766 = vmatprep.subr.mxu0 0.0
        %3767 = vmatpush2.msra.mxu0 0.0
        %3768 = vmatprep.subr.mxu0 0.0
        %3769 = vmatpush2.msra.mxu0 0.0
        %3770 = vmatprep.subr.mxu0 0.0
        %3771 = vmatpush2.msra.mxu0 0.0
        %3772 = vmatprep.subr.mxu0 0.0
        %3773 = vmatpush2.msra.mxu0 0.0
        %3774 = vmatprep.subr.mxu0 0.0
        %3775 = vmatpush2.msra.mxu0 0.0
        %3776 = vmatprep.mubr.f32.mxu0 0.0
        %3777 = vmatmul.mubr.f32.gmra.mxu0 %v3628
        %v3778 = vpop.f32.mrf.mxu0
        %v3779 = vadd.f32 0.0, %v3778
        %v3780 = vpop.f32.mrf.mxu0
        %v3781 = vadd.f32 0.0, %v3780
        %3782 = vdwg.mxu0
        %3783 = vmatprep.subr.mxu0 %v760
        %3784 = vmatpush1.msra.mxu0 %v759
        %3785 = vmatprep.subr.mxu0 %v756
        %3786 = vmatpush1.msra.mxu0 %v755
        %3787 = vmatprep.subr.mxu0 %v752
        %3788 = vmatpush1.msra.mxu0 %v751
        %3789 = vmatprep.subr.mxu0 %v748
        %3790 = vmatpush1.msra.mxu0 %v747
        %3791 = vmatprep.subr.mxu0 %v744
        %3792 = vmatpush1.msra.mxu0 %v743
        %3793 = vmatprep.subr.mxu0 %v740
        %3794 = vmatpush1.msra.mxu0 %v739
        %3795 = vmatprep.subr.mxu0 %v736
        %3796 = vmatpush1.msra.mxu0 %v735
        %3797 = vmatprep.subr.mxu0 %v732
        %3798 = vmatpush1.msra.mxu0 %v731
        %3799 = vmatprep.subr.mxu0 %v728
        %3800 = vmatpush1.msra.mxu0 %v727
        %3801 = vmatprep.subr.mxu0 %v724
        %3802 = vmatpush1.msra.mxu0 %v723
        %3803 = vmatprep.subr.mxu0 %v720
        %3804 = vmatpush1.msra.mxu0 %v719
        %3805 = vmatprep.subr.mxu0 %v716
        %3806 = vmatpush1.msra.mxu0 %v715
        %3807 = vmatprep.subr.mxu0 %v712
        %3808 = vmatpush1.msra.mxu0 %v711
        %3809 = vmatprep.subr.mxu0 %v708
        %3810 = vmatpush1.msra.mxu0 %v707
        %3811 = vmatprep.subr.mxu0 %v704
        %3812 = vmatpush1.msra.mxu0 %v703
        %3813 = vmatprep.subr.mxu0 %v700
        %3814 = vmatpush1.msra.mxu0 %v699
        %3815 = vmatprep.subr.mxu0 0.0
        %3816 = vmatpush2.msra.mxu0 0.0
        %3817 = vmatprep.subr.mxu0 0.0
        %3818 = vmatpush2.msra.mxu0 0.0
        %3819 = vmatprep.subr.mxu0 0.0
        %3820 = vmatpush2.msra.mxu0 0.0
        %3821 = vmatprep.subr.mxu0 0.0
        %3822 = vmatpush2.msra.mxu0 0.0
        %3823 = vmatprep.subr.mxu0 0.0
        %3824 = vmatpush2.msra.mxu0 0.0
        %3825 = vmatprep.subr.mxu0 0.0
        %3826 = vmatpush2.msra.mxu0 0.0
        %3827 = vmatprep.subr.mxu0 0.0
        %3828 = vmatpush2.msra.mxu0 0.0
        %3829 = vmatprep.subr.mxu0 0.0
        %3830 = vmatpush2.msra.mxu0 0.0
        %3831 = vmatprep.subr.mxu0 0.0
        %3832 = vmatpush2.msra.mxu0 0.0
        %3833 = vmatprep.subr.mxu0 0.0
        %3834 = vmatpush2.msra.mxu0 0.0
        %3835 = vmatprep.subr.mxu0 0.0
        %3836 = vmatpush2.msra.mxu0 0.0
        %3837 = vmatprep.subr.mxu0 0.0
        %3838 = vmatpush2.msra.mxu0 0.0
        %3839 = vmatprep.subr.mxu0 0.0
        %3840 = vmatpush2.msra.mxu0 0.0
        %3841 = vmatprep.subr.mxu0 0.0
        %3842 = vmatpush2.msra.mxu0 0.0
        %3843 = vmatprep.subr.mxu0 0.0
        %3844 = vmatpush2.msra.mxu0 0.0
        %3845 = vmatprep.subr.mxu0 0.0
        %3846 = vmatpush2.msra.mxu0 0.0
        %3847 = vmatprep.mubr.f32.mxu0 0.0
        %3848 = vmatmul.mubr.f32.gmra.mxu0 %v3628
        %v3849 = vpop.f32.mrf.mxu0
        %v3850 = vadd.f32 0.0, %v3849
        %v3851 = vpop.f32.mrf.mxu0
        %v3852 = vadd.f32 0.0, %v3851
        %3853 = vdwg.mxu0
        %v3854 = vxor.u32 %v3779, 2147483648
        %v3855 = vmul.f32 %v3854, 1.442695
        %v3856 = vpow.pop %v3855
        %v3857 = vadd.f32 %v3856, 1.0
        %v3858 = vrcp.pop %v3857
        %v3859 = vmul.f32 1.0, %v3858
        %v3860 = vxor.u32 %v3781, 2147483648
        %v3861 = vmul.f32 %v3860, 1.442695
        %v3862 = vpow.pop %v3861
        %v3863 = vadd.f32 %v3862, 1.0
        %v3864 = vrcp.pop %v3863
        %v3865 = vmul.f32 1.0, %v3864
        %v3866 = vsub.f32 %v3865, %v3628
        %v3867 = vmul.f32 %v3859, %v3866
        %v3868 = vadd.f32 %v3628, %v3867
        %v3869 = vadd.f32 %v3711, %v3868
        %v3870 = vxor.u32 %v3850, 2147483648
        %v3871 = vmul.f32 %v3870, 1.442695
        %v3872 = vpow.pop %v3871
        %v3873 = vadd.f32 %v3872, 1.0
        %v3874 = vrcp.pop %v3873
        %v3875 = vmul.f32 1.0, %v3874
        %v3876 = vmax.f32 %v3852, 0.0
        %v3877 = vsub.f32 %v3876, %v3628
        %v3878 = vmul.f32 %v3875, %v3877
        %v3879 = vadd.f32 %v3628, %v3878
        %v3880 = vadd.f32 %v3869, %v3879
        %v3881 = vmul.f32 %v3880, 0.125
        %3882 = vst [vmem:[%s464 + $0x18] sm:$0xff] %v3881
        %3883 = vst [vmem:[#allocation2] sm:$0xff] %v3881
        %s3884 = sand.u32 %s232, 1
        %s3885 = scalar_lea.sflag [#allocation5], %s3884
        %s3886 = sand.u32 %s232, 1
        %s3887 = smul.addr %s3886, 32
        %s3888 = scalar_lea.vmem [#allocation18], %s3887
        // Predicated region
        $region97: #{tpu_custom_call.1} parent=55 // pred_check
          %p3889 = pneg %p242
        $region98: #{tpu_custom_call.1} parent=55 // pred_check_branch
          %3891 = sbr.rel (%p3889) target = $region100
        $region99: #{tpu_custom_call.1} parent=55 // pred_region
          %s3892 = smul.u32 4, %s30
          %s3894 = ssub.s32 512, 512
          %3895 = vsyncadd %s3885, %s3894
          %s3896 = smul.addr %s3892, 128
          %s3897 = scalar_lea.hbm %s9, %s3896
          %s3898 = sshll.u32 %s3888, 4
          %s3899 = int_to_ptr.vmem [resolvable:$true] %s3898
          %3904 = dma.vmem_to_hbm [thread:$0]  %s3899, 512, %s3897, %s3885, 128, 128, 8
        $region100: #{tpu_custom_call.1} parent=55 // pred_fallthru
          _
      $region56: #{tpu_custom_call.1} parent=5 // pred_fallthru
        _
      %p3905 = scmp.le.s32.totalorder 2, %s25
      // Predicated region
      $region101: #{tpu_custom_call.1} parent=5 // pred_check
        %p3906 = pneg %p3905
      $region102: #{tpu_custom_call.1} parent=5 // pred_check_branch
        %3908 = sbr.rel (%p3906) target = $region104
      $region103: #{tpu_custom_call.1} parent=5 // pred_region
        %s3909 = ssub.s32 %s25, 2
        // Predicated region
        $region105: #{tpu_custom_call.1} parent=103 // pred_check
          %p3910 = pneg %p248
        $region106: #{tpu_custom_call.1} parent=103 // pred_check_branch
          %3912 = sbr.rel (%p3910) target = $region108
        $region107: #{tpu_custom_call.1} parent=103 // pred_region
          %s3913 = sand.u32 %s233, 1
          %s3914 = scalar_lea.sflag [#allocation5], %s3913
          %s3915 = sand.u32 %s233, 1
          %s3916 = smul.addr %s3915, 32
          %s3917 = scalar_lea.vmem [#allocation18], %s3916
          %3918 = dma.done %s3914, 512
        $region108: #{tpu_custom_call.1} parent=103 // pred_fallthru
          _
      $region104: #{tpu_custom_call.1} parent=5 // pred_fallthru
        _
    $region6: #{tpu_custom_call.1} parent=1 // loop_footer
      %s29 = sadd.s32 1, %s25
    $region7: #{tpu_custom_call.1} parent=1 // loop_footer_branch
      %24 = sbr.rel target = $region3
    $region8: #{tpu_custom_call.1} parent=1 // loop_exit
      _
    %3919 = vsyncpa [#allocation4], 1
    %s3920 = scalar_lea.sflag [#allocation4], 1
    %3921 = vsyncpa %s3920, 1
    %3922 = vsyncpa [#allocation7], 1
    %3923 = vsyncpa [#allocation10], 1
    %3924 = vsyncpa [#allocation13], 1
    %3925 = vsyncpa [#allocation16], 1
    %3926 = vsyncpa [#allocation5], 1
    %s3927 = scalar_lea.sflag [#allocation5], 1
    %3928 = vsyncpa %s3927, 1

</llo_original>
